<compile_context>
chip_gen: v7x
topology: tpu7x:2x2x1
jax: 0.10.0
libtpu: 0.0.40
codegen_flags: <defaults>
</compile_context>

<pallas_src>
import functools

import jax
import jax.numpy as jnp
from jax.experimental import pallas as pl
from jax.experimental.pallas import tpu as pltpu


def sentiment_kernel(x_ref,                     # (T*B, E) f32 gathered embeddings (time-major)
                     wih1_ref, whh1_ref, b1_ref,  # (E, 4H), (H, 4H), (1, 4H)  layer 1
                     wih2_ref, whh2_ref, b2_ref,  # (H, 4H), (H, 4H), (1, 4H)  layer 2
                     gamma_ref, beta_ref,         # (1, H) LayerNorm affine
                     wfc1_ref, bfc1_ref,          # (H, 16), (1, 16)
                     wfc2_ref, bfc2_ref,          # (16, 128), (1, 128)  lane-padded fc2
                     out_ref,                     # (B, 128) lane-dense output slab
                     *, seq_len, batch, hidden_dim, eps):
    H = hidden_dim
    whh1 = whh1_ref[...]
    wih2 = wih2_ref[...]
    whh2 = whh2_ref[...]

    # Layer-1 input projection for the whole sequence in one MXU call; bias b1
    # folded in here (broadcast happens exactly once).
    xp = jnp.dot(x_ref[...], wih1_ref[...],
                 preferred_element_type=jnp.float32) + b1_ref[...]   # (T*B, 4H)

    # Hoisted bias broadcast for layer 2.
    b2b = jnp.broadcast_to(b2_ref[...], (batch, 4 * H))              # (B, 4H)

    def gates(g, c):
        # Gate order was permuted in the wrapper to [i, f, o | g]:
        # one sigmoid over a contiguous 3H slice + one tanh over H lanes.
        sig = jax.nn.sigmoid(g[:, :3 * H])
        i = sig[:, 0 * H:1 * H]
        f = sig[:, 1 * H:2 * H]
        o = sig[:, 2 * H:3 * H]
        u = jnp.tanh(g[:, 3 * H:4 * H])
        c_new = f * c + i * u
        h_new = o * jnp.tanh(c_new)
        return h_new, c_new

    zeros = jnp.zeros((batch, H), jnp.float32)
    h1, c1, h2, c2 = zeros, zeros, zeros, zeros

    # Statically unrolled recurrence (T is small); h/c stay in vregs.
    for t in range(seq_len):
        xp_t = xp[t * batch:(t + 1) * batch, :]                       # static slice, (B, 4H)
        g1 = xp_t + jnp.dot(h1, whh1, preferred_element_type=jnp.float32)
        h1, c1 = gates(g1, c1)
        g2 = (jnp.dot(h1, wih2, preferred_element_type=jnp.float32)
              + jnp.dot(h2, whh2, preferred_element_type=jnp.float32)
              + b2b)
        h2, c2 = gates(g2, c2)

    # LayerNorm over the final top-layer hidden state.
    mean = jnp.mean(h2, axis=-1, keepdims=True)
    var = jnp.mean((h2 - mean) ** 2, axis=-1, keepdims=True)
    normed = (h2 - mean) * jax.lax.rsqrt(var + eps)
    normed = normed * gamma_ref[...] + beta_ref[...]
    # Dropout: identity in eval mode.
    hid = jnp.dot(normed, wfc1_ref[...], preferred_element_type=jnp.float32)
    hid = jnp.maximum(hid + bfc1_ref[...], 0.0)                       # ReLU
    # Dropout: identity in eval mode.
    logits = jnp.dot(hid, wfc2_ref[...], preferred_element_type=jnp.float32)
    out_ref[...] = (logits + bfc2_ref[...]).astype(out_ref.dtype)


@jax.jit
def sentiment_forward(tokens, params):
    V, E = params["embed"].shape
    tokens = jnp.clip(tokens.astype(jnp.int32), 0, V - 1)   # validated indices
    B, T = tokens.shape
    H = params["w_hh1"].shape[0]
    F1 = params["w_fc1"].shape[1]
    O = params["w_fc2"].shape[1]
    OP = 128    # lane-dense output width (unmasked final store)

    # Pre-gather embedding rows once (B*T rows is trivially cheap) and lay them
    # out time-major so the kernel's per-step slice is rows [t*B, (t+1)*B).
    x = params["embed"][tokens]                              # (B, T, E)
    x = jnp.transpose(x, (1, 0, 2)).reshape(T * B, E)        # (T*B, E)

    # Permute gate columns from PyTorch order [i, f, g, o] to [i, f, o, g] so
    # the kernel needs one sigmoid (3H lanes) + one tanh (H lanes) per cell.
    def reorder(w):
        return jnp.concatenate(
            [w[..., 0:H], w[..., H:2 * H], w[..., 3 * H:4 * H], w[..., 2 * H:3 * H]],
            axis=-1)

    wih1 = reorder(params["w_ih1"]); whh1 = reorder(params["w_hh1"]); b1 = reorder(params["b1"])
    wih2 = reorder(params["w_ih2"]); whh2 = reorder(params["w_hh2"]); b2 = reorder(params["b2"])

    # Zero-pad the classifier head output to 128 lanes.
    w_fc2p = jnp.zeros((F1, OP), jnp.float32).at[:, :O].set(params["w_fc2"])
    b_fc2p = jnp.zeros((1, OP), jnp.float32).at[:, :O].set(params["b_fc2"])

    def const(shape):
        return pl.BlockSpec(shape, lambda i, _s=shape: (0,) * len(_s))

    grid_spec = pltpu.PrefetchScalarGridSpec(
        num_scalar_prefetch=0,
        grid=(1,),                      # single invocation; time loop is in-kernel
        in_specs=[
            const((T * B, E)),                                  # gathered embeddings
            const((E, 4 * H)), const((H, 4 * H)), const((1, 4 * H)),   # layer 1
            const((H, 4 * H)), const((H, 4 * H)), const((1, 4 * H)),   # layer 2
            const((1, H)), const((1, H)),                       # layernorm
            const((H, F1)), const((1, F1)),                     # fc1
            const((F1, OP)), const((1, OP)),                    # fc2 (padded)
        ],
        out_specs=pl.BlockSpec((B, OP), lambda i: (0, 0)),
    )

    kernel = functools.partial(sentiment_kernel, seq_len=T, batch=B,
                               hidden_dim=H, eps=1e-5)
    # TODO(synk): for large batches on v7x, add a leading "parallel" grid axis
    # over batch tiles so both TensorCores run independent recurrences.
    out = pl.pallas_call(
        kernel,
        out_shape=jax.ShapeDtypeStruct((B, OP), jnp.float32),
        grid_spec=grid_spec,
        compiler_params=pltpu.CompilerParams(
            dimension_semantics=("arbitrary",)),
    )(x,
      wih1, whh1, b1, wih2, whh2, b2,
      params["gamma"], params["beta"],
      params["w_fc1"], params["b_fc1"],
      w_fc2p, b_fc2p)
    return out[:, :O]


def reference_forward(tokens, params):
    """Pure-JAX reference of the same forward pass (for validation)."""
    emb = params["embed"][tokens]                 # (B, T, E)
    B = emb.shape[0]
    H = params["w_hh1"].shape[0]

    def cell(x, h, c, w_ih, w_hh, b):
        g = x @ w_ih + h @ w_hh + b
        i = jax.nn.sigmoid(g[:, 0 * H:1 * H])
        f = jax.nn.sigmoid(g[:, 1 * H:2 * H])
        gg = jnp.tanh(g[:, 2 * H:3 * H])
        o = jax.nn.sigmoid(g[:, 3 * H:4 * H])
        c_new = f * c + i * gg
        return o * jnp.tanh(c_new), c_new

    def step(carry, x_t):
        h1, c1, h2, c2 = carry
        h1, c1 = cell(x_t, h1, c1, params["w_ih1"], params["w_hh1"], params["b1"])
        h2, c2 = cell(h1, h2, c2, params["w_ih2"], params["w_hh2"], params["b2"])
        return (h1, c1, h2, c2), None

    z = jnp.zeros((B, H), jnp.float32)
    (h1, c1, h2, c2), _ = jax.lax.scan(step, (z, z, z, z),
                                       jnp.transpose(emb, (1, 0, 2)))
    mean = jnp.mean(h2, axis=-1, keepdims=True)
    var = jnp.mean((h2 - mean) ** 2, axis=-1, keepdims=True)
    normed = (h2 - mean) * jax.lax.rsqrt(var + 1e-5)
    normed = normed * params["gamma"] + params["beta"]
    hid = jnp.maximum(normed @ params["w_fc1"] + params["b_fc1"], 0.0)
    return hid @ params["w_fc2"] + params["b_fc2"]


def init_params(key, vocab_size, embed_dim, hidden_dim, output_dim):
    keys = jax.random.split(key, 16)
    s = 0.1
    H4 = 4 * hidden_dim
    return {
        "embed": s * jax.random.normal(keys[0], (vocab_size, embed_dim), jnp.float32),
        "w_ih1": s * jax.random.normal(keys[1], (embed_dim, H4), jnp.float32),
        "w_hh1": s * jax.random.normal(keys[2], (hidden_dim, H4), jnp.float32),
        "b1":    s * jax.random.normal(keys[3], (1, H4), jnp.float32),
        "w_ih2": s * jax.random.normal(keys[4], (hidden_dim, H4), jnp.float32),
        "w_hh2": s * jax.random.normal(keys[5], (hidden_dim, H4), jnp.float32),
        "b2":    s * jax.random.normal(keys[6], (1, H4), jnp.float32),
        "gamma": jnp.ones((1, hidden_dim), jnp.float32),
        "beta":  jnp.zeros((1, hidden_dim), jnp.float32),
        "w_fc1": s * jax.random.normal(keys[7], (hidden_dim, 16), jnp.float32),
        "b_fc1": s * jax.random.normal(keys[8], (1, 16), jnp.float32),
        "w_fc2": s * jax.random.normal(keys[9], (16, output_dim), jnp.float32),
        "b_fc2": s * jax.random.normal(keys[10], (1, output_dim), jnp.float32),
    }


if __name__ == "__main__":
    B, T = 2, 8
    vocab_size, embed_dim, hidden_dim, output_dim = 50, 32, 32, 2

    key = jax.random.PRNGKey(0)
    k_tok, k_par = jax.random.split(key)
    params = init_params(k_par, vocab_size, embed_dim, hidden_dim, output_dim)
    tokens = jax.random.randint(k_tok, (B, T), 0, vocab_size, jnp.int32)

    logits = sentiment_forward(tokens, params)
    logits = jax.block_until_ready(logits)

    ref = jax.block_until_ready(reference_forward(tokens, params))
    assert logits.shape == (B, output_dim)
    assert jnp.allclose(logits, ref, rtol=1e-2, atol=1e-2), (logits, ref)
    print("KERNEL_OK")
</pallas_src>

<mosaic_0001>
module attributes {stable_mosaic.version = 11 : i64} {
  func.func @sentiment_kernel(%arg0: i32, %arg1: memref<16x32xf32, #tpu.memory_space<vmem>>, %arg2: memref<32x128xf32, #tpu.memory_space<vmem>>, %arg3: memref<32x128xf32, #tpu.memory_space<vmem>>, %arg4: memref<1x128xf32, #tpu.memory_space<vmem>>, %arg5: memref<32x128xf32, #tpu.memory_space<vmem>>, %arg6: memref<32x128xf32, #tpu.memory_space<vmem>>, %arg7: memref<1x128xf32, #tpu.memory_space<vmem>>, %arg8: memref<1x32xf32, #tpu.memory_space<vmem>>, %arg9: memref<1x32xf32, #tpu.memory_space<vmem>>, %arg10: memref<32x16xf32, #tpu.memory_space<vmem>>, %arg11: memref<1x16xf32, #tpu.memory_space<vmem>>, %arg12: memref<16x128xf32, #tpu.memory_space<vmem>>, %arg13: memref<1x128xf32, #tpu.memory_space<vmem>>, %arg14: memref<2x128xf32, #tpu.memory_space<vmem>>) attributes {dimension_semantics = [#tpu.dimension_semantics<arbitrary>], iteration_bounds = array<i64: 1>, scalar_prefetch = 0 : i64, scratch_operands = 0 : i64, tpu.core_type = #tpu.core_type<tc>, window_params = [{pipeline_mode = #tpu.pipeline_mode<synchronous>, transform_indices = @transform_0, window_bounds = array<i64: 16, 32>}, {pipeline_mode = #tpu.pipeline_mode<synchronous>, transform_indices = @transform_1, window_bounds = array<i64: 32, 128>}, {pipeline_mode = #tpu.pipeline_mode<synchronous>, transform_indices = @transform_2, window_bounds = array<i64: 32, 128>}, {pipeline_mode = #tpu.pipeline_mode<synchronous>, transform_indices = @transform_3, window_bounds = array<i64: 1, 128>}, {pipeline_mode = #tpu.pipeline_mode<synchronous>, transform_indices = @transform_4, window_bounds = array<i64: 32, 128>}, {pipeline_mode = #tpu.pipeline_mode<synchronous>, transform_indices = @transform_5, window_bounds = array<i64: 32, 128>}, {pipeline_mode = #tpu.pipeline_mode<synchronous>, transform_indices = @transform_6, window_bounds = array<i64: 1, 128>}, {pipeline_mode = #tpu.pipeline_mode<synchronous>, transform_indices = @transform_7, window_bounds = array<i64: 1, 32>}, {pipeline_mode = #tpu.pipeline_mode<synchronous>, transform_indices = @transform_8, window_bounds = array<i64: 1, 32>}, {pipeline_mode = #tpu.pipeline_mode<synchronous>, transform_indices = @transform_9, window_bounds = array<i64: 32, 16>}, {pipeline_mode = #tpu.pipeline_mode<synchronous>, transform_indices = @transform_10, window_bounds = array<i64: 1, 16>}, {pipeline_mode = #tpu.pipeline_mode<synchronous>, transform_indices = @transform_11, window_bounds = array<i64: 16, 128>}, {pipeline_mode = #tpu.pipeline_mode<synchronous>, transform_indices = @transform_12, window_bounds = array<i64: 1, 128>}, {pipeline_mode = #tpu.pipeline_mode<synchronous>, transform_indices = @transform_13, window_bounds = array<i64: 2, 128>}]} {
    %c0 = arith.constant 0 : index
    %c0_0 = arith.constant 0 : index
    %0 = vector.load %arg3[%c0, %c0_0] : memref<32x128xf32, #tpu.memory_space<vmem>>, vector<32x128xf32>
    %c0_1 = arith.constant 0 : index
    %c0_2 = arith.constant 0 : index
    %1 = vector.load %arg5[%c0_1, %c0_2] : memref<32x128xf32, #tpu.memory_space<vmem>>, vector<32x128xf32>
    %c0_3 = arith.constant 0 : index
    %c0_4 = arith.constant 0 : index
    %2 = vector.load %arg6[%c0_3, %c0_4] : memref<32x128xf32, #tpu.memory_space<vmem>>, vector<32x128xf32>
    %c0_5 = arith.constant 0 : index
    %c0_6 = arith.constant 0 : index
    %3 = vector.load %arg1[%c0_5, %c0_6] : memref<16x32xf32, #tpu.memory_space<vmem>>, vector<16x32xf32>
    %c0_7 = arith.constant 0 : index
    %c0_8 = arith.constant 0 : index
    %4 = vector.load %arg2[%c0_7, %c0_8] : memref<32x128xf32, #tpu.memory_space<vmem>>, vector<32x128xf32>
    %cst = arith.constant dense<0.000000e+00> : vector<16x128xf32>
    %5 = tpu.matmul %3, %4, %cst {dimension_numbers = #tpu.dot_dimension_numbers<[1], [0], [0], [1], [0, 0, 1, 1], [], []>} : vector<16x32xf32>, vector<32x128xf32>, vector<16x128xf32> -> vector<16x128xf32>
    %c0_9 = arith.constant 0 : index
    %c0_10 = arith.constant 0 : index
    %6 = vector.load %arg4[%c0_9, %c0_10] : memref<1x128xf32, #tpu.memory_space<vmem>>, vector<1x128xf32>
    %7 = vector.broadcast %6 : vector<1x128xf32> to vector<16x128xf32>
    %8 = arith.addf %5, %7 : vector<16x128xf32>
    %c0_11 = arith.constant 0 : index
    %c0_12 = arith.constant 0 : index
    %9 = vector.load %arg7[%c0_11, %c0_12] : memref<1x128xf32, #tpu.memory_space<vmem>>, vector<1x128xf32>
    %10 = vector.shape_cast %9 : vector<1x128xf32> to vector<1x128xf32>
    %11 = vector.broadcast %10 : vector<1x128xf32> to vector<2x128xf32>
    %cst_13 = arith.constant 0.000000e+00 : f32
    %12 = vector.broadcast %cst_13 : f32 to vector<2x32xf32>
    %13 = vector.extract_strided_slice %8 {offsets = [0, 0], sizes = [2, 128], strides = [1, 1]} : vector<16x128xf32> to vector<2x128xf32>
    %cst_14 = arith.constant dense<0.000000e+00> : vector<2x128xf32>
    %14 = tpu.matmul %12, %0, %cst_14 {dimension_numbers = #tpu.dot_dimension_numbers<[1], [0], [0], [1], [0, 0, 1, 1], [], []>} : vector<2x32xf32>, vector<32x128xf32>, vector<2x128xf32> -> vector<2x128xf32>
    %15 = arith.addf %13, %14 : vector<2x128xf32>
    %16 = vector.extract_strided_slice %15 {offsets = [0, 0], sizes = [2, 96], strides = [1, 1]} : vector<2x128xf32> to vector<2x96xf32>
    %17 = arith.negf %16 : vector<2x96xf32>
    %18 = math.exp %17 : vector<2x96xf32>
    %cst_15 = arith.constant 1.000000e+00 : f32
    %19 = vector.broadcast %cst_15 : f32 to vector<2x96xf32>
    %20 = arith.addf %19, %18 : vector<2x96xf32>
    %21 = arith.divf %19, %20 : vector<2x96xf32>
    %22 = vector.extract_strided_slice %21 {offsets = [0, 0], sizes = [2, 32], strides = [1, 1]} : vector<2x96xf32> to vector<2x32xf32>
    %23 = vector.extract_strided_slice %21 {offsets = [0, 32], sizes = [2, 32], strides = [1, 1]} : vector<2x96xf32> to vector<2x32xf32>
    %24 = vector.extract_strided_slice %21 {offsets = [0, 64], sizes = [2, 32], strides = [1, 1]} : vector<2x96xf32> to vector<2x32xf32>
    %25 = vector.extract_strided_slice %15 {offsets = [0, 96], sizes = [2, 32], strides = [1, 1]} : vector<2x128xf32> to vector<2x32xf32>
    %26 = math.tanh %25 : vector<2x32xf32>
    %27 = arith.mulf %23, %12 : vector<2x32xf32>
    %28 = arith.mulf %22, %26 : vector<2x32xf32>
    %29 = arith.addf %27, %28 : vector<2x32xf32>
    %30 = math.tanh %29 : vector<2x32xf32>
    %31 = arith.mulf %24, %30 : vector<2x32xf32>
    %cst_16 = arith.constant dense<0.000000e+00> : vector<2x128xf32>
    %32 = tpu.matmul %31, %1, %cst_16 {dimension_numbers = #tpu.dot_dimension_numbers<[1], [0], [0], [1], [0, 0, 1, 1], [], []>} : vector<2x32xf32>, vector<32x128xf32>, vector<2x128xf32> -> vector<2x128xf32>
    %cst_17 = arith.constant dense<0.000000e+00> : vector<2x128xf32>
    %33 = tpu.matmul %12, %2, %cst_17 {dimension_numbers = #tpu.dot_dimension_numbers<[1], [0], [0], [1], [0, 0, 1, 1], [], []>} : vector<2x32xf32>, vector<32x128xf32>, vector<2x128xf32> -> vector<2x128xf32>
    %34 = arith.addf %32, %33 : vector<2x128xf32>
    %35 = arith.addf %34, %11 : vector<2x128xf32>
    %36 = vector.extract_strided_slice %35 {offsets = [0, 0], sizes = [2, 96], strides = [1, 1]} : vector<2x128xf32> to vector<2x96xf32>
    %37 = arith.negf %36 : vector<2x96xf32>
    %38 = math.exp %37 : vector<2x96xf32>
    %cst_18 = arith.constant 1.000000e+00 : f32
    %39 = vector.broadcast %cst_18 : f32 to vector<2x96xf32>
    %40 = arith.addf %39, %38 : vector<2x96xf32>
    %41 = arith.divf %39, %40 : vector<2x96xf32>
    %42 = vector.extract_strided_slice %41 {offsets = [0, 0], sizes = [2, 32], strides = [1, 1]} : vector<2x96xf32> to vector<2x32xf32>
    %43 = vector.extract_strided_slice %41 {offsets = [0, 32], sizes = [2, 32], strides = [1, 1]} : vector<2x96xf32> to vector<2x32xf32>
    %44 = vector.extract_strided_slice %41 {offsets = [0, 64], sizes = [2, 32], strides = [1, 1]} : vector<2x96xf32> to vector<2x32xf32>
    %45 = vector.extract_strided_slice %35 {offsets = [0, 96], sizes = [2, 32], strides = [1, 1]} : vector<2x128xf32> to vector<2x32xf32>
    %46 = math.tanh %45 : vector<2x32xf32>
    %47 = arith.mulf %43, %12 : vector<2x32xf32>
    %48 = arith.mulf %42, %46 : vector<2x32xf32>
    %49 = arith.addf %47, %48 : vector<2x32xf32>
    %50 = math.tanh %49 : vector<2x32xf32>
    %51 = arith.mulf %44, %50 : vector<2x32xf32>
    %52 = vector.extract_strided_slice %8 {offsets = [2, 0], sizes = [2, 128], strides = [1, 1]} : vector<16x128xf32> to vector<2x128xf32>
    %cst_19 = arith.constant dense<0.000000e+00> : vector<2x128xf32>
    %53 = tpu.matmul %31, %0, %cst_19 {dimension_numbers = #tpu.dot_dimension_numbers<[1], [0], [0], [1], [0, 0, 1, 1], [], []>} : vector<2x32xf32>, vector<32x128xf32>, vector<2x128xf32> -> vector<2x128xf32>
    %54 = arith.addf %52, %53 : vector<2x128xf32>
    %55 = vector.extract_strided_slice %54 {offsets = [0, 0], sizes = [2, 96], strides = [1, 1]} : vector<2x128xf32> to vector<2x96xf32>
    %56 = arith.negf %55 : vector<2x96xf32>
    %57 = math.exp %56 : vector<2x96xf32>
    %cst_20 = arith.constant 1.000000e+00 : f32
    %58 = vector.broadcast %cst_20 : f32 to vector<2x96xf32>
    %59 = arith.addf %58, %57 : vector<2x96xf32>
    %60 = arith.divf %58, %59 : vector<2x96xf32>
    %61 = vector.extract_strided_slice %60 {offsets = [0, 0], sizes = [2, 32], strides = [1, 1]} : vector<2x96xf32> to vector<2x32xf32>
    %62 = vector.extract_strided_slice %60 {offsets = [0, 32], sizes = [2, 32], strides = [1, 1]} : vector<2x96xf32> to vector<2x32xf32>
    %63 = vector.extract_strided_slice %60 {offsets = [0, 64], sizes = [2, 32], strides = [1, 1]} : vector<2x96xf32> to vector<2x32xf32>
    %64 = vector.extract_strided_slice %54 {offsets = [0, 96], sizes = [2, 32], strides = [1, 1]} : vector<2x128xf32> to vector<2x32xf32>
    %65 = math.tanh %64 : vector<2x32xf32>
    %66 = arith.mulf %62, %29 : vector<2x32xf32>
    %67 = arith.mulf %61, %65 : vector<2x32xf32>
    %68 = arith.addf %66, %67 : vector<2x32xf32>
    %69 = math.tanh %68 : vector<2x32xf32>
    %70 = arith.mulf %63, %69 : vector<2x32xf32>
    %cst_21 = arith.constant dense<0.000000e+00> : vector<2x128xf32>
    %71 = tpu.matmul %70, %1, %cst_21 {dimension_numbers = #tpu.dot_dimension_numbers<[1], [0], [0], [1], [0, 0, 1, 1], [], []>} : vector<2x32xf32>, vector<32x128xf32>, vector<2x128xf32> -> vector<2x128xf32>
    %cst_22 = arith.constant dense<0.000000e+00> : vector<2x128xf32>
    %72 = tpu.matmul %51, %2, %cst_22 {dimension_numbers = #tpu.dot_dimension_numbers<[1], [0], [0], [1], [0, 0, 1, 1], [], []>} : vector<2x32xf32>, vector<32x128xf32>, vector<2x128xf32> -> vector<2x128xf32>
    %73 = arith.addf %71, %72 : vector<2x128xf32>
    %74 = arith.addf %73, %11 : vector<2x128xf32>
    %75 = vector.extract_strided_slice %74 {offsets = [0, 0], sizes = [2, 96], strides = [1, 1]} : vector<2x128xf32> to vector<2x96xf32>
    %76 = arith.negf %75 : vector<2x96xf32>
    %77 = math.exp %76 : vector<2x96xf32>
    %cst_23 = arith.constant 1.000000e+00 : f32
    %78 = vector.broadcast %cst_23 : f32 to vector<2x96xf32>
    %79 = arith.addf %78, %77 : vector<2x96xf32>
    %80 = arith.divf %78, %79 : vector<2x96xf32>
    %81 = vector.extract_strided_slice %80 {offsets = [0, 0], sizes = [2, 32], strides = [1, 1]} : vector<2x96xf32> to vector<2x32xf32>
    %82 = vector.extract_strided_slice %80 {offsets = [0, 32], sizes = [2, 32], strides = [1, 1]} : vector<2x96xf32> to vector<2x32xf32>
    %83 = vector.extract_strided_slice %80 {offsets = [0, 64], sizes = [2, 32], strides = [1, 1]} : vector<2x96xf32> to vector<2x32xf32>
    %84 = vector.extract_strided_slice %74 {offsets = [0, 96], sizes = [2, 32], strides = [1, 1]} : vector<2x128xf32> to vector<2x32xf32>
    %85 = math.tanh %84 : vector<2x32xf32>
    %86 = arith.mulf %82, %49 : vector<2x32xf32>
    %87 = arith.mulf %81, %85 : vector<2x32xf32>
    %88 = arith.addf %86, %87 : vector<2x32xf32>
    %89 = math.tanh %88 : vector<2x32xf32>
    %90 = arith.mulf %83, %89 : vector<2x32xf32>
    %91 = vector.extract_strided_slice %8 {offsets = [4, 0], sizes = [2, 128], strides = [1, 1]} : vector<16x128xf32> to vector<2x128xf32>
    %cst_24 = arith.constant dense<0.000000e+00> : vector<2x128xf32>
    %92 = tpu.matmul %70, %0, %cst_24 {dimension_numbers = #tpu.dot_dimension_numbers<[1], [0], [0], [1], [0, 0, 1, 1], [], []>} : vector<2x32xf32>, vector<32x128xf32>, vector<2x128xf32> -> vector<2x128xf32>
    %93 = arith.addf %91, %92 : vector<2x128xf32>
    %94 = vector.extract_strided_slice %93 {offsets = [0, 0], sizes = [2, 96], strides = [1, 1]} : vector<2x128xf32> to vector<2x96xf32>
    %95 = arith.negf %94 : vector<2x96xf32>
    %96 = math.exp %95 : vector<2x96xf32>
    %cst_25 = arith.constant 1.000000e+00 : f32
    %97 = vector.broadcast %cst_25 : f32 to vector<2x96xf32>
    %98 = arith.addf %97, %96 : vector<2x96xf32>
    %99 = arith.divf %97, %98 : vector<2x96xf32>
    %100 = vector.extract_strided_slice %99 {offsets = [0, 0], sizes = [2, 32], strides = [1, 1]} : vector<2x96xf32> to vector<2x32xf32>
    %101 = vector.extract_strided_slice %99 {offsets = [0, 32], sizes = [2, 32], strides = [1, 1]} : vector<2x96xf32> to vector<2x32xf32>
    %102 = vector.extract_strided_slice %99 {offsets = [0, 64], sizes = [2, 32], strides = [1, 1]} : vector<2x96xf32> to vector<2x32xf32>
    %103 = vector.extract_strided_slice %93 {offsets = [0, 96], sizes = [2, 32], strides = [1, 1]} : vector<2x128xf32> to vector<2x32xf32>
    %104 = math.tanh %103 : vector<2x32xf32>
    %105 = arith.mulf %101, %68 : vector<2x32xf32>
    %106 = arith.mulf %100, %104 : vector<2x32xf32>
    %107 = arith.addf %105, %106 : vector<2x32xf32>
    %108 = math.tanh %107 : vector<2x32xf32>
    %109 = arith.mulf %102, %108 : vector<2x32xf32>
    %cst_26 = arith.constant dense<0.000000e+00> : vector<2x128xf32>
    %110 = tpu.matmul %109, %1, %cst_26 {dimension_numbers = #tpu.dot_dimension_numbers<[1], [0], [0], [1], [0, 0, 1, 1], [], []>} : vector<2x32xf32>, vector<32x128xf32>, vector<2x128xf32> -> vector<2x128xf32>
    %cst_27 = arith.constant dense<0.000000e+00> : vector<2x128xf32>
    %111 = tpu.matmul %90, %2, %cst_27 {dimension_numbers = #tpu.dot_dimension_numbers<[1], [0], [0], [1], [0, 0, 1, 1], [], []>} : vector<2x32xf32>, vector<32x128xf32>, vector<2x128xf32> -> vector<2x128xf32>
    %112 = arith.addf %110, %111 : vector<2x128xf32>
    %113 = arith.addf %112, %11 : vector<2x128xf32>
    %114 = vector.extract_strided_slice %113 {offsets = [0, 0], sizes = [2, 96], strides = [1, 1]} : vector<2x128xf32> to vector<2x96xf32>
    %115 = arith.negf %114 : vector<2x96xf32>
    %116 = math.exp %115 : vector<2x96xf32>
    %cst_28 = arith.constant 1.000000e+00 : f32
    %117 = vector.broadcast %cst_28 : f32 to vector<2x96xf32>
    %118 = arith.addf %117, %116 : vector<2x96xf32>
    %119 = arith.divf %117, %118 : vector<2x96xf32>
    %120 = vector.extract_strided_slice %119 {offsets = [0, 0], sizes = [2, 32], strides = [1, 1]} : vector<2x96xf32> to vector<2x32xf32>
    %121 = vector.extract_strided_slice %119 {offsets = [0, 32], sizes = [2, 32], strides = [1, 1]} : vector<2x96xf32> to vector<2x32xf32>
    %122 = vector.extract_strided_slice %119 {offsets = [0, 64], sizes = [2, 32], strides = [1, 1]} : vector<2x96xf32> to vector<2x32xf32>
    %123 = vector.extract_strided_slice %113 {offsets = [0, 96], sizes = [2, 32], strides = [1, 1]} : vector<2x128xf32> to vector<2x32xf32>
    %124 = math.tanh %123 : vector<2x32xf32>
    %125 = arith.mulf %121, %88 : vector<2x32xf32>
    %126 = arith.mulf %120, %124 : vector<2x32xf32>
    %127 = arith.addf %125, %126 : vector<2x32xf32>
    %128 = math.tanh %127 : vector<2x32xf32>
    %129 = arith.mulf %122, %128 : vector<2x32xf32>
    %130 = vector.extract_strided_slice %8 {offsets = [6, 0], sizes = [2, 128], strides = [1, 1]} : vector<16x128xf32> to vector<2x128xf32>
    %cst_29 = arith.constant dense<0.000000e+00> : vector<2x128xf32>
    %131 = tpu.matmul %109, %0, %cst_29 {dimension_numbers = #tpu.dot_dimension_numbers<[1], [0], [0], [1], [0, 0, 1, 1], [], []>} : vector<2x32xf32>, vector<32x128xf32>, vector<2x128xf32> -> vector<2x128xf32>
    %132 = arith.addf %130, %131 : vector<2x128xf32>
    %133 = vector.extract_strided_slice %132 {offsets = [0, 0], sizes = [2, 96], strides = [1, 1]} : vector<2x128xf32> to vector<2x96xf32>
    %134 = arith.negf %133 : vector<2x96xf32>
    %135 = math.exp %134 : vector<2x96xf32>
    %cst_30 = arith.constant 1.000000e+00 : f32
    %136 = vector.broadcast %cst_30 : f32 to vector<2x96xf32>
    %137 = arith.addf %136, %135 : vector<2x96xf32>
    %138 = arith.divf %136, %137 : vector<2x96xf32>
    %139 = vector.extract_strided_slice %138 {offsets = [0, 0], sizes = [2, 32], strides = [1, 1]} : vector<2x96xf32> to vector<2x32xf32>
    %140 = vector.extract_strided_slice %138 {offsets = [0, 32], sizes = [2, 32], strides = [1, 1]} : vector<2x96xf32> to vector<2x32xf32>
    %141 = vector.extract_strided_slice %138 {offsets = [0, 64], sizes = [2, 32], strides = [1, 1]} : vector<2x96xf32> to vector<2x32xf32>
    %142 = vector.extract_strided_slice %132 {offsets = [0, 96], sizes = [2, 32], strides = [1, 1]} : vector<2x128xf32> to vector<2x32xf32>
    %143 = math.tanh %142 : vector<2x32xf32>
    %144 = arith.mulf %140, %107 : vector<2x32xf32>
    %145 = arith.mulf %139, %143 : vector<2x32xf32>
    %146 = arith.addf %144, %145 : vector<2x32xf32>
    %147 = math.tanh %146 : vector<2x32xf32>
    %148 = arith.mulf %141, %147 : vector<2x32xf32>
    %cst_31 = arith.constant dense<0.000000e+00> : vector<2x128xf32>
    %149 = tpu.matmul %148, %1, %cst_31 {dimension_numbers = #tpu.dot_dimension_numbers<[1], [0], [0], [1], [0, 0, 1, 1], [], []>} : vector<2x32xf32>, vector<32x128xf32>, vector<2x128xf32> -> vector<2x128xf32>
    %cst_32 = arith.constant dense<0.000000e+00> : vector<2x128xf32>
    %150 = tpu.matmul %129, %2, %cst_32 {dimension_numbers = #tpu.dot_dimension_numbers<[1], [0], [0], [1], [0, 0, 1, 1], [], []>} : vector<2x32xf32>, vector<32x128xf32>, vector<2x128xf32> -> vector<2x128xf32>
    %151 = arith.addf %149, %150 : vector<2x128xf32>
    %152 = arith.addf %151, %11 : vector<2x128xf32>
    %153 = vector.extract_strided_slice %152 {offsets = [0, 0], sizes = [2, 96], strides = [1, 1]} : vector<2x128xf32> to vector<2x96xf32>
    %154 = arith.negf %153 : vector<2x96xf32>
    %155 = math.exp %154 : vector<2x96xf32>
    %cst_33 = arith.constant 1.000000e+00 : f32
    %156 = vector.broadcast %cst_33 : f32 to vector<2x96xf32>
    %157 = arith.addf %156, %155 : vector<2x96xf32>
    %158 = arith.divf %156, %157 : vector<2x96xf32>
    %159 = vector.extract_strided_slice %158 {offsets = [0, 0], sizes = [2, 32], strides = [1, 1]} : vector<2x96xf32> to vector<2x32xf32>
    %160 = vector.extract_strided_slice %158 {offsets = [0, 32], sizes = [2, 32], strides = [1, 1]} : vector<2x96xf32> to vector<2x32xf32>
    %161 = vector.extract_strided_slice %158 {offsets = [0, 64], sizes = [2, 32], strides = [1, 1]} : vector<2x96xf32> to vector<2x32xf32>
    %162 = vector.extract_strided_slice %152 {offsets = [0, 96], sizes = [2, 32], strides = [1, 1]} : vector<2x128xf32> to vector<2x32xf32>
    %163 = math.tanh %162 : vector<2x32xf32>
    %164 = arith.mulf %160, %127 : vector<2x32xf32>
    %165 = arith.mulf %159, %163 : vector<2x32xf32>
    %166 = arith.addf %164, %165 : vector<2x32xf32>
    %167 = math.tanh %166 : vector<2x32xf32>
    %168 = arith.mulf %161, %167 : vector<2x32xf32>
    %169 = vector.extract_strided_slice %8 {offsets = [8, 0], sizes = [2, 128], strides = [1, 1]} : vector<16x128xf32> to vector<2x128xf32>
    %cst_34 = arith.constant dense<0.000000e+00> : vector<2x128xf32>
    %170 = tpu.matmul %148, %0, %cst_34 {dimension_numbers = #tpu.dot_dimension_numbers<[1], [0], [0], [1], [0, 0, 1, 1], [], []>} : vector<2x32xf32>, vector<32x128xf32>, vector<2x128xf32> -> vector<2x128xf32>
    %171 = arith.addf %169, %170 : vector<2x128xf32>
    %172 = vector.extract_strided_slice %171 {offsets = [0, 0], sizes = [2, 96], strides = [1, 1]} : vector<2x128xf32> to vector<2x96xf32>
    %173 = arith.negf %172 : vector<2x96xf32>
    %174 = math.exp %173 : vector<2x96xf32>
    %cst_35 = arith.constant 1.000000e+00 : f32
    %175 = vector.broadcast %cst_35 : f32 to vector<2x96xf32>
    %176 = arith.addf %175, %174 : vector<2x96xf32>
    %177 = arith.divf %175, %176 : vector<2x96xf32>
    %178 = vector.extract_strided_slice %177 {offsets = [0, 0], sizes = [2, 32], strides = [1, 1]} : vector<2x96xf32> to vector<2x32xf32>
    %179 = vector.extract_strided_slice %177 {offsets = [0, 32], sizes = [2, 32], strides = [1, 1]} : vector<2x96xf32> to vector<2x32xf32>
    %180 = vector.extract_strided_slice %177 {offsets = [0, 64], sizes = [2, 32], strides = [1, 1]} : vector<2x96xf32> to vector<2x32xf32>
    %181 = vector.extract_strided_slice %171 {offsets = [0, 96], sizes = [2, 32], strides = [1, 1]} : vector<2x128xf32> to vector<2x32xf32>
    %182 = math.tanh %181 : vector<2x32xf32>
    %183 = arith.mulf %179, %146 : vector<2x32xf32>
    %184 = arith.mulf %178, %182 : vector<2x32xf32>
    %185 = arith.addf %183, %184 : vector<2x32xf32>
    %186 = math.tanh %185 : vector<2x32xf32>
    %187 = arith.mulf %180, %186 : vector<2x32xf32>
    %cst_36 = arith.constant dense<0.000000e+00> : vector<2x128xf32>
    %188 = tpu.matmul %187, %1, %cst_36 {dimension_numbers = #tpu.dot_dimension_numbers<[1], [0], [0], [1], [0, 0, 1, 1], [], []>} : vector<2x32xf32>, vector<32x128xf32>, vector<2x128xf32> -> vector<2x128xf32>
    %cst_37 = arith.constant dense<0.000000e+00> : vector<2x128xf32>
    %189 = tpu.matmul %168, %2, %cst_37 {dimension_numbers = #tpu.dot_dimension_numbers<[1], [0], [0], [1], [0, 0, 1, 1], [], []>} : vector<2x32xf32>, vector<32x128xf32>, vector<2x128xf32> -> vector<2x128xf32>
    %190 = arith.addf %188, %189 : vector<2x128xf32>
    %191 = arith.addf %190, %11 : vector<2x128xf32>
    %192 = vector.extract_strided_slice %191 {offsets = [0, 0], sizes = [2, 96], strides = [1, 1]} : vector<2x128xf32> to vector<2x96xf32>
    %193 = arith.negf %192 : vector<2x96xf32>
    %194 = math.exp %193 : vector<2x96xf32>
    %cst_38 = arith.constant 1.000000e+00 : f32
    %195 = vector.broadcast %cst_38 : f32 to vector<2x96xf32>
    %196 = arith.addf %195, %194 : vector<2x96xf32>
    %197 = arith.divf %195, %196 : vector<2x96xf32>
    %198 = vector.extract_strided_slice %197 {offsets = [0, 0], sizes = [2, 32], strides = [1, 1]} : vector<2x96xf32> to vector<2x32xf32>
    %199 = vector.extract_strided_slice %197 {offsets = [0, 32], sizes = [2, 32], strides = [1, 1]} : vector<2x96xf32> to vector<2x32xf32>
    %200 = vector.extract_strided_slice %197 {offsets = [0, 64], sizes = [2, 32], strides = [1, 1]} : vector<2x96xf32> to vector<2x32xf32>
    %201 = vector.extract_strided_slice %191 {offsets = [0, 96], sizes = [2, 32], strides = [1, 1]} : vector<2x128xf32> to vector<2x32xf32>
    %202 = math.tanh %201 : vector<2x32xf32>
    %203 = arith.mulf %199, %166 : vector<2x32xf32>
    %204 = arith.mulf %198, %202 : vector<2x32xf32>
    %205 = arith.addf %203, %204 : vector<2x32xf32>
    %206 = math.tanh %205 : vector<2x32xf32>
    %207 = arith.mulf %200, %206 : vector<2x32xf32>
    %208 = vector.extract_strided_slice %8 {offsets = [10, 0], sizes = [2, 128], strides = [1, 1]} : vector<16x128xf32> to vector<2x128xf32>
    %cst_39 = arith.constant dense<0.000000e+00> : vector<2x128xf32>
    %209 = tpu.matmul %187, %0, %cst_39 {dimension_numbers = #tpu.dot_dimension_numbers<[1], [0], [0], [1], [0, 0, 1, 1], [], []>} : vector<2x32xf32>, vector<32x128xf32>, vector<2x128xf32> -> vector<2x128xf32>
    %210 = arith.addf %208, %209 : vector<2x128xf32>
    %211 = vector.extract_strided_slice %210 {offsets = [0, 0], sizes = [2, 96], strides = [1, 1]} : vector<2x128xf32> to vector<2x96xf32>
    %212 = arith.negf %211 : vector<2x96xf32>
    %213 = math.exp %212 : vector<2x96xf32>
    %cst_40 = arith.constant 1.000000e+00 : f32
    %214 = vector.broadcast %cst_40 : f32 to vector<2x96xf32>
    %215 = arith.addf %214, %213 : vector<2x96xf32>
    %216 = arith.divf %214, %215 : vector<2x96xf32>
    %217 = vector.extract_strided_slice %216 {offsets = [0, 0], sizes = [2, 32], strides = [1, 1]} : vector<2x96xf32> to vector<2x32xf32>
    %218 = vector.extract_strided_slice %216 {offsets = [0, 32], sizes = [2, 32], strides = [1, 1]} : vector<2x96xf32> to vector<2x32xf32>
    %219 = vector.extract_strided_slice %216 {offsets = [0, 64], sizes = [2, 32], strides = [1, 1]} : vector<2x96xf32> to vector<2x32xf32>
    %220 = vector.extract_strided_slice %210 {offsets = [0, 96], sizes = [2, 32], strides = [1, 1]} : vector<2x128xf32> to vector<2x32xf32>
    %221 = math.tanh %220 : vector<2x32xf32>
    %222 = arith.mulf %218, %185 : vector<2x32xf32>
    %223 = arith.mulf %217, %221 : vector<2x32xf32>
    %224 = arith.addf %222, %223 : vector<2x32xf32>
    %225 = math.tanh %224 : vector<2x32xf32>
    %226 = arith.mulf %219, %225 : vector<2x32xf32>
    %cst_41 = arith.constant dense<0.000000e+00> : vector<2x128xf32>
    %227 = tpu.matmul %226, %1, %cst_41 {dimension_numbers = #tpu.dot_dimension_numbers<[1], [0], [0], [1], [0, 0, 1, 1], [], []>} : vector<2x32xf32>, vector<32x128xf32>, vector<2x128xf32> -> vector<2x128xf32>
    %cst_42 = arith.constant dense<0.000000e+00> : vector<2x128xf32>
    %228 = tpu.matmul %207, %2, %cst_42 {dimension_numbers = #tpu.dot_dimension_numbers<[1], [0], [0], [1], [0, 0, 1, 1], [], []>} : vector<2x32xf32>, vector<32x128xf32>, vector<2x128xf32> -> vector<2x128xf32>
    %229 = arith.addf %227, %228 : vector<2x128xf32>
    %230 = arith.addf %229, %11 : vector<2x128xf32>
    %231 = vector.extract_strided_slice %230 {offsets = [0, 0], sizes = [2, 96], strides = [1, 1]} : vector<2x128xf32> to vector<2x96xf32>
    %232 = arith.negf %231 : vector<2x96xf32>
    %233 = math.exp %232 : vector<2x96xf32>
    %cst_43 = arith.constant 1.000000e+00 : f32
    %234 = vector.broadcast %cst_43 : f32 to vector<2x96xf32>
    %235 = arith.addf %234, %233 : vector<2x96xf32>
    %236 = arith.divf %234, %235 : vector<2x96xf32>
    %237 = vector.extract_strided_slice %236 {offsets = [0, 0], sizes = [2, 32], strides = [1, 1]} : vector<2x96xf32> to vector<2x32xf32>
    %238 = vector.extract_strided_slice %236 {offsets = [0, 32], sizes = [2, 32], strides = [1, 1]} : vector<2x96xf32> to vector<2x32xf32>
    %239 = vector.extract_strided_slice %236 {offsets = [0, 64], sizes = [2, 32], strides = [1, 1]} : vector<2x96xf32> to vector<2x32xf32>
    %240 = vector.extract_strided_slice %230 {offsets = [0, 96], sizes = [2, 32], strides = [1, 1]} : vector<2x128xf32> to vector<2x32xf32>
    %241 = math.tanh %240 : vector<2x32xf32>
    %242 = arith.mulf %238, %205 : vector<2x32xf32>
    %243 = arith.mulf %237, %241 : vector<2x32xf32>
    %244 = arith.addf %242, %243 : vector<2x32xf32>
    %245 = math.tanh %244 : vector<2x32xf32>
    %246 = arith.mulf %239, %245 : vector<2x32xf32>
    %247 = vector.extract_strided_slice %8 {offsets = [12, 0], sizes = [2, 128], strides = [1, 1]} : vector<16x128xf32> to vector<2x128xf32>
    %cst_44 = arith.constant dense<0.000000e+00> : vector<2x128xf32>
    %248 = tpu.matmul %226, %0, %cst_44 {dimension_numbers = #tpu.dot_dimension_numbers<[1], [0], [0], [1], [0, 0, 1, 1], [], []>} : vector<2x32xf32>, vector<32x128xf32>, vector<2x128xf32> -> vector<2x128xf32>
    %249 = arith.addf %247, %248 : vector<2x128xf32>
    %250 = vector.extract_strided_slice %249 {offsets = [0, 0], sizes = [2, 96], strides = [1, 1]} : vector<2x128xf32> to vector<2x96xf32>
    %251 = arith.negf %250 : vector<2x96xf32>
    %252 = math.exp %251 : vector<2x96xf32>
    %cst_45 = arith.constant 1.000000e+00 : f32
    %253 = vector.broadcast %cst_45 : f32 to vector<2x96xf32>
    %254 = arith.addf %253, %252 : vector<2x96xf32>
    %255 = arith.divf %253, %254 : vector<2x96xf32>
    %256 = vector.extract_strided_slice %255 {offsets = [0, 0], sizes = [2, 32], strides = [1, 1]} : vector<2x96xf32> to vector<2x32xf32>
    %257 = vector.extract_strided_slice %255 {offsets = [0, 32], sizes = [2, 32], strides = [1, 1]} : vector<2x96xf32> to vector<2x32xf32>
    %258 = vector.extract_strided_slice %255 {offsets = [0, 64], sizes = [2, 32], strides = [1, 1]} : vector<2x96xf32> to vector<2x32xf32>
    %259 = vector.extract_strided_slice %249 {offsets = [0, 96], sizes = [2, 32], strides = [1, 1]} : vector<2x128xf32> to vector<2x32xf32>
    %260 = math.tanh %259 : vector<2x32xf32>
    %261 = arith.mulf %257, %224 : vector<2x32xf32>
    %262 = arith.mulf %256, %260 : vector<2x32xf32>
    %263 = arith.addf %261, %262 : vector<2x32xf32>
    %264 = math.tanh %263 : vector<2x32xf32>
    %265 = arith.mulf %258, %264 : vector<2x32xf32>
    %cst_46 = arith.constant dense<0.000000e+00> : vector<2x128xf32>
    %266 = tpu.matmul %265, %1, %cst_46 {dimension_numbers = #tpu.dot_dimension_numbers<[1], [0], [0], [1], [0, 0, 1, 1], [], []>} : vector<2x32xf32>, vector<32x128xf32>, vector<2x128xf32> -> vector<2x128xf32>
    %cst_47 = arith.constant dense<0.000000e+00> : vector<2x128xf32>
    %267 = tpu.matmul %246, %2, %cst_47 {dimension_numbers = #tpu.dot_dimension_numbers<[1], [0], [0], [1], [0, 0, 1, 1], [], []>} : vector<2x32xf32>, vector<32x128xf32>, vector<2x128xf32> -> vector<2x128xf32>
    %268 = arith.addf %266, %267 : vector<2x128xf32>
    %269 = arith.addf %268, %11 : vector<2x128xf32>
    %270 = vector.extract_strided_slice %269 {offsets = [0, 0], sizes = [2, 96], strides = [1, 1]} : vector<2x128xf32> to vector<2x96xf32>
    %271 = arith.negf %270 : vector<2x96xf32>
    %272 = math.exp %271 : vector<2x96xf32>
    %cst_48 = arith.constant 1.000000e+00 : f32
    %273 = vector.broadcast %cst_48 : f32 to vector<2x96xf32>
    %274 = arith.addf %273, %272 : vector<2x96xf32>
    %275 = arith.divf %273, %274 : vector<2x96xf32>
    %276 = vector.extract_strided_slice %275 {offsets = [0, 0], sizes = [2, 32], strides = [1, 1]} : vector<2x96xf32> to vector<2x32xf32>
    %277 = vector.extract_strided_slice %275 {offsets = [0, 32], sizes = [2, 32], strides = [1, 1]} : vector<2x96xf32> to vector<2x32xf32>
    %278 = vector.extract_strided_slice %275 {offsets = [0, 64], sizes = [2, 32], strides = [1, 1]} : vector<2x96xf32> to vector<2x32xf32>
    %279 = vector.extract_strided_slice %269 {offsets = [0, 96], sizes = [2, 32], strides = [1, 1]} : vector<2x128xf32> to vector<2x32xf32>
    %280 = math.tanh %279 : vector<2x32xf32>
    %281 = arith.mulf %277, %244 : vector<2x32xf32>
    %282 = arith.mulf %276, %280 : vector<2x32xf32>
    %283 = arith.addf %281, %282 : vector<2x32xf32>
    %284 = math.tanh %283 : vector<2x32xf32>
    %285 = arith.mulf %278, %284 : vector<2x32xf32>
    %286 = vector.extract_strided_slice %8 {offsets = [14, 0], sizes = [2, 128], strides = [1, 1]} : vector<16x128xf32> to vector<2x128xf32>
    %cst_49 = arith.constant dense<0.000000e+00> : vector<2x128xf32>
    %287 = tpu.matmul %265, %0, %cst_49 {dimension_numbers = #tpu.dot_dimension_numbers<[1], [0], [0], [1], [0, 0, 1, 1], [], []>} : vector<2x32xf32>, vector<32x128xf32>, vector<2x128xf32> -> vector<2x128xf32>
    %288 = arith.addf %286, %287 : vector<2x128xf32>
    %289 = vector.extract_strided_slice %288 {offsets = [0, 0], sizes = [2, 96], strides = [1, 1]} : vector<2x128xf32> to vector<2x96xf32>
    %290 = arith.negf %289 : vector<2x96xf32>
    %291 = math.exp %290 : vector<2x96xf32>
    %cst_50 = arith.constant 1.000000e+00 : f32
    %292 = vector.broadcast %cst_50 : f32 to vector<2x96xf32>
    %293 = arith.addf %292, %291 : vector<2x96xf32>
    %294 = arith.divf %292, %293 : vector<2x96xf32>
    %295 = vector.extract_strided_slice %294 {offsets = [0, 0], sizes = [2, 32], strides = [1, 1]} : vector<2x96xf32> to vector<2x32xf32>
    %296 = vector.extract_strided_slice %294 {offsets = [0, 32], sizes = [2, 32], strides = [1, 1]} : vector<2x96xf32> to vector<2x32xf32>
    %297 = vector.extract_strided_slice %294 {offsets = [0, 64], sizes = [2, 32], strides = [1, 1]} : vector<2x96xf32> to vector<2x32xf32>
    %298 = vector.extract_strided_slice %288 {offsets = [0, 96], sizes = [2, 32], strides = [1, 1]} : vector<2x128xf32> to vector<2x32xf32>
    %299 = math.tanh %298 : vector<2x32xf32>
    %300 = arith.mulf %296, %263 : vector<2x32xf32>
    %301 = arith.mulf %295, %299 : vector<2x32xf32>
    %302 = arith.addf %300, %301 : vector<2x32xf32>
    %303 = math.tanh %302 : vector<2x32xf32>
    %304 = arith.mulf %297, %303 : vector<2x32xf32>
    %cst_51 = arith.constant dense<0.000000e+00> : vector<2x128xf32>
    %305 = tpu.matmul %304, %1, %cst_51 {dimension_numbers = #tpu.dot_dimension_numbers<[1], [0], [0], [1], [0, 0, 1, 1], [], []>} : vector<2x32xf32>, vector<32x128xf32>, vector<2x128xf32> -> vector<2x128xf32>
    %cst_52 = arith.constant dense<0.000000e+00> : vector<2x128xf32>
    %306 = tpu.matmul %285, %2, %cst_52 {dimension_numbers = #tpu.dot_dimension_numbers<[1], [0], [0], [1], [0, 0, 1, 1], [], []>} : vector<2x32xf32>, vector<32x128xf32>, vector<2x128xf32> -> vector<2x128xf32>
    %307 = arith.addf %305, %306 : vector<2x128xf32>
    %308 = arith.addf %307, %11 : vector<2x128xf32>
    %309 = vector.extract_strided_slice %308 {offsets = [0, 0], sizes = [2, 96], strides = [1, 1]} : vector<2x128xf32> to vector<2x96xf32>
    %310 = arith.negf %309 : vector<2x96xf32>
    %311 = math.exp %310 : vector<2x96xf32>
    %cst_53 = arith.constant 1.000000e+00 : f32
    %312 = vector.broadcast %cst_53 : f32 to vector<2x96xf32>
    %313 = arith.addf %312, %311 : vector<2x96xf32>
    %314 = arith.divf %312, %313 : vector<2x96xf32>
    %315 = vector.extract_strided_slice %314 {offsets = [0, 0], sizes = [2, 32], strides = [1, 1]} : vector<2x96xf32> to vector<2x32xf32>
    %316 = vector.extract_strided_slice %314 {offsets = [0, 32], sizes = [2, 32], strides = [1, 1]} : vector<2x96xf32> to vector<2x32xf32>
    %317 = vector.extract_strided_slice %314 {offsets = [0, 64], sizes = [2, 32], strides = [1, 1]} : vector<2x96xf32> to vector<2x32xf32>
    %318 = vector.extract_strided_slice %308 {offsets = [0, 96], sizes = [2, 32], strides = [1, 1]} : vector<2x128xf32> to vector<2x32xf32>
    %319 = math.tanh %318 : vector<2x32xf32>
    %320 = arith.mulf %316, %283 : vector<2x32xf32>
    %321 = arith.mulf %315, %319 : vector<2x32xf32>
    %322 = arith.addf %320, %321 : vector<2x32xf32>
    %323 = math.tanh %322 : vector<2x32xf32>
    %324 = arith.mulf %317, %323 : vector<2x32xf32>
    %cst_54 = arith.constant dense<0.000000e+00> : vector<2xf32>
    %325 = vector.multi_reduction <add>, %324, %cst_54 [1] : vector<2x32xf32> to vector<2xf32>
    %326 = vector.shape_cast %325 : vector<2xf32> to vector<2x1xf32>
    %cst_55 = arith.constant 3.200000e+01 : f32
    %327 = vector.broadcast %cst_55 : f32 to vector<2x1xf32>
    %328 = arith.divf %326, %327 : vector<2x1xf32>
    %329 = vector.broadcast %328 : vector<2x1xf32> to vector<2x32xf32>
    %330 = arith.subf %324, %329 : vector<2x32xf32>
    %331 = arith.mulf %330, %330 : vector<2x32xf32>
    %cst_56 = arith.constant dense<0.000000e+00> : vector<2xf32>
    %332 = vector.multi_reduction <add>, %331, %cst_56 [1] : vector<2x32xf32> to vector<2xf32>
    %333 = vector.shape_cast %332 : vector<2xf32> to vector<2x1xf32>
    %cst_57 = arith.constant 3.200000e+01 : f32
    %334 = vector.broadcast %cst_57 : f32 to vector<2x1xf32>
    %335 = arith.divf %333, %334 : vector<2x1xf32>
    %336 = vector.broadcast %328 : vector<2x1xf32> to vector<2x32xf32>
    %337 = arith.subf %324, %336 : vector<2x32xf32>
    %cst_58 = arith.constant 9.99999974E-6 : f32
    %338 = vector.broadcast %cst_58 : f32 to vector<2x1xf32>
    %339 = arith.addf %335, %338 : vector<2x1xf32>
    %340 = math.rsqrt %339 : vector<2x1xf32>
    %341 = vector.broadcast %340 : vector<2x1xf32> to vector<2x32xf32>
    %342 = arith.mulf %337, %341 : vector<2x32xf32>
    %c0_59 = arith.constant 0 : index
    %c0_60 = arith.constant 0 : index
    %343 = vector.load %arg8[%c0_59, %c0_60] : memref<1x32xf32, #tpu.memory_space<vmem>>, vector<1x32xf32>
    %344 = vector.broadcast %343 : vector<1x32xf32> to vector<2x32xf32>
    %345 = arith.mulf %342, %344 : vector<2x32xf32>
    %c0_61 = arith.constant 0 : index
    %c0_62 = arith.constant 0 : index
    %346 = vector.load %arg9[%c0_61, %c0_62] : memref<1x32xf32, #tpu.memory_space<vmem>>, vector<1x32xf32>
    %347 = vector.broadcast %346 : vector<1x32xf32> to vector<2x32xf32>
    %348 = arith.addf %345, %347 : vector<2x32xf32>
    %c0_63 = arith.constant 0 : index
    %c0_64 = arith.constant 0 : index
    %349 = vector.load %arg10[%c0_63, %c0_64] : memref<32x16xf32, #tpu.memory_space<vmem>>, vector<32x16xf32>
    %cst_65 = arith.constant dense<0.000000e+00> : vector<2x16xf32>
    %350 = tpu.matmul %348, %349, %cst_65 {dimension_numbers = #tpu.dot_dimension_numbers<[1], [0], [0], [1], [0, 0, 1, 1], [], []>} : vector<2x32xf32>, vector<32x16xf32>, vector<2x16xf32> -> vector<2x16xf32>
    %c0_66 = arith.constant 0 : index
    %c0_67 = arith.constant 0 : index
    %351 = vector.load %arg11[%c0_66, %c0_67] : memref<1x16xf32, #tpu.memory_space<vmem>>, vector<1x16xf32>
    %352 = vector.broadcast %351 : vector<1x16xf32> to vector<2x16xf32>
    %353 = arith.addf %350, %352 : vector<2x16xf32>
    %cst_68 = arith.constant 0.000000e+00 : f32
    %354 = vector.broadcast %cst_68 : f32 to vector<2x16xf32>
    %355 = arith.maximumf %353, %354 : vector<2x16xf32>
    %c0_69 = arith.constant 0 : index
    %c0_70 = arith.constant 0 : index
    %356 = vector.load %arg12[%c0_69, %c0_70] : memref<16x128xf32, #tpu.memory_space<vmem>>, vector<16x128xf32>
    %cst_71 = arith.constant dense<0.000000e+00> : vector<2x128xf32>
    %357 = tpu.matmul %355, %356, %cst_71 {dimension_numbers = #tpu.dot_dimension_numbers<[1], [0], [0], [1], [0, 0, 1, 1], [], []>} : vector<2x16xf32>, vector<16x128xf32>, vector<2x128xf32> -> vector<2x128xf32>
    %c0_72 = arith.constant 0 : index
    %c0_73 = arith.constant 0 : index
    %358 = vector.load %arg13[%c0_72, %c0_73] : memref<1x128xf32, #tpu.memory_space<vmem>>, vector<1x128xf32>
    %359 = vector.broadcast %358 : vector<1x128xf32> to vector<2x128xf32>
    %360 = arith.addf %357, %359 : vector<2x128xf32>
    %c0_74 = arith.constant 0 : index
    %c0_75 = arith.constant 0 : index
    %361 = vector.load %arg14[%c0_74, %c0_75] : memref<2x128xf32, #tpu.memory_space<vmem>>, vector<2x128xf32>
    tpu.vector_store %arg14[%c0_74, %c0_75], %360 {strides = array<i32>} : memref<2x128xf32, #tpu.memory_space<vmem>>, vector<2x128xf32>,
    return
  }
  func.func @transform_0(%arg0: i32) -> (i32, i32) {
    %c0_i32 = arith.constant 0 : i32
    %c0_i32_0 = arith.constant 0 : i32
    %c0_i32_1 = arith.constant 0 : i32
    return %c0_i32, %c0_i32_0 : i32, i32
  }
  func.func @transform_1(%arg0: i32) -> (i32, i32) {
    %c0_i32 = arith.constant 0 : i32
    %c0_i32_0 = arith.constant 0 : i32
    %c0_i32_1 = arith.constant 0 : i32
    return %c0_i32, %c0_i32_0 : i32, i32
  }
  func.func @transform_2(%arg0: i32) -> (i32, i32) {
    %c0_i32 = arith.constant 0 : i32
    %c0_i32_0 = arith.constant 0 : i32
    %c0_i32_1 = arith.constant 0 : i32
    return %c0_i32, %c0_i32_0 : i32, i32
  }
  func.func @transform_3(%arg0: i32) -> (i32, i32) {
    %c0_i32 = arith.constant 0 : i32
    %c0_i32_0 = arith.constant 0 : i32
    %c0_i32_1 = arith.constant 0 : i32
    return %c0_i32, %c0_i32_0 : i32, i32
  }
  func.func @transform_4(%arg0: i32) -> (i32, i32) {
    %c0_i32 = arith.constant 0 : i32
    %c0_i32_0 = arith.constant 0 : i32
    %c0_i32_1 = arith.constant 0 : i32
    return %c0_i32, %c0_i32_0 : i32, i32
  }
  func.func @transform_5(%arg0: i32) -> (i32, i32) {
    %c0_i32 = arith.constant 0 : i32
    %c0_i32_0 = arith.constant 0 : i32
    %c0_i32_1 = arith.constant 0 : i32
    return %c0_i32, %c0_i32_0 : i32, i32
  }
  func.func @transform_6(%arg0: i32) -> (i32, i32) {
    %c0_i32 = arith.constant 0 : i32
    %c0_i32_0 = arith.constant 0 : i32
    %c0_i32_1 = arith.constant 0 : i32
    return %c0_i32, %c0_i32_0 : i32, i32
  }
  func.func @transform_7(%arg0: i32) -> (i32, i32) {
    %c0_i32 = arith.constant 0 : i32
    %c0_i32_0 = arith.constant 0 : i32
    %c0_i32_1 = arith.constant 0 : i32
    return %c0_i32, %c0_i32_0 : i32, i32
  }
  func.func @transform_8(%arg0: i32) -> (i32, i32) {
    %c0_i32 = arith.constant 0 : i32
    %c0_i32_0 = arith.constant 0 : i32
    %c0_i32_1 = arith.constant 0 : i32
    return %c0_i32, %c0_i32_0 : i32, i32
  }
  func.func @transform_9(%arg0: i32) -> (i32, i32) {
    %c0_i32 = arith.constant 0 : i32
    %c0_i32_0 = arith.constant 0 : i32
    %c0_i32_1 = arith.constant 0 : i32
    return %c0_i32, %c0_i32_0 : i32, i32
  }
  func.func @transform_10(%arg0: i32) -> (i32, i32) {
    %c0_i32 = arith.constant 0 : i32
    %c0_i32_0 = arith.constant 0 : i32
    %c0_i32_1 = arith.constant 0 : i32
    return %c0_i32, %c0_i32_0 : i32, i32
  }
  func.func @transform_11(%arg0: i32) -> (i32, i32) {
    %c0_i32 = arith.constant 0 : i32
    %c0_i32_0 = arith.constant 0 : i32
    %c0_i32_1 = arith.constant 0 : i32
    return %c0_i32, %c0_i32_0 : i32, i32
  }
  func.func @transform_12(%arg0: i32) -> (i32, i32) {
    %c0_i32 = arith.constant 0 : i32
    %c0_i32_0 = arith.constant 0 : i32
    %c0_i32_1 = arith.constant 0 : i32
    return %c0_i32, %c0_i32_0 : i32, i32
  }
  func.func @transform_13(%arg0: i32) -> (i32, i32) {
    %c0_i32 = arith.constant 0 : i32
    %c0_i32_0 = arith.constant 0 : i32
    %c0_i32_1 = arith.constant 0 : i32
    return %c0_i32, %c0_i32_0 : i32, i32
  }
}

</mosaic_0001>

<llo_original>
// kernel: sentiment_forward.1
$region0: #{sentiment_forward.1}
  #allocation0 [shape = 'u32[]', space=smem, size = 0x4, offset = 0x4, fixed_abs, tag = 'smem constant byte address 0x4 - core index']
  #allocation1 [shape = 'u32[144,128]{1,0:T(1,128)}', space=vmem, size = 0x12000, scoped, tag = 'internal scratch']
  %s0 = inlined_call_operand.vmem [shape: f32[16,32], index: 0, kind: input, shape index: {}]
  %s1 = inlined_call_operand.vmem [shape: f32[32,128], index: 1, kind: input, shape index: {}]
  %s2 = inlined_call_operand.vmem [shape: f32[32,128], index: 2, kind: input, shape index: {}]
  %s3 = inlined_call_operand.vmem [shape: f32[1,128], index: 3, kind: input, shape index: {}]
  %s4 = inlined_call_operand.vmem [shape: f32[32,128], index: 4, kind: input, shape index: {}]
  %s5 = inlined_call_operand.vmem [shape: f32[32,128], index: 5, kind: input, shape index: {}]
  %s6 = inlined_call_operand.vmem [shape: f32[1,128], index: 6, kind: input, shape index: {}]
  %s7 = inlined_call_operand.vmem [shape: f32[1,32], index: 7, kind: input, shape index: {}]
  %s8 = inlined_call_operand.vmem [shape: f32[1,32], index: 8, kind: input, shape index: {}]
  %s9 = inlined_call_operand.vmem [shape: f32[32,16], index: 9, kind: input, shape index: {}]
  %s10 = inlined_call_operand.vmem [shape: f32[1,16], index: 10, kind: input, shape index: {}]
  %s11 = inlined_call_operand.vmem [shape: f32[16,128], index: 11, kind: input, shape index: {}]
  %s12 = inlined_call_operand.vmem [shape: f32[1,128], index: 12, kind: input, shape index: {}]
  %s13 = inlined_call_operand.hbm [shape: f32[2,128], index: 13, kind: output, shape index: {}]
  %s14 = sld [smem:[#allocation0]]
  $region62: #{sentiment_forward.1} parent=0
    _
  %s16 = ssub.s32 1, %s14
  %s17 = scalar_select 0, %s16, %s14
  $region1: #{sentiment_forward.1} parent=0
    #allocation2 [shape = 'u8[1024]{0}', space=vmem, size = 0x400, scoped, tag = 'output window, operand 0, single buffered']
    #allocation3 [shape = 's32[1]{0}', space=sflag, size = 0x4, scoped, tag = 'scoped memory for sentiment_forward.1']
    %18 = vsyncpa [#allocation3], 0
    // Predicated region
    $region2: #{sentiment_forward.1} parent=1 // pred_check
      _
    $region3: #{sentiment_forward.1} parent=1 // pred_check_branch
      %20 = sbr.rel (0) target = $region5
    $region4: #{sentiment_forward.1} parent=1 // pred_region
      _
    $region5: #{sentiment_forward.1} parent=1 // pred_fallthru
      _
    // Predicated region
    $region6: #{sentiment_forward.1} parent=1 // pred_check
      _
    $region7: #{sentiment_forward.1} parent=1 // pred_check_branch
      %22 = sbr.rel (0) target = $region9
    $region8: #{sentiment_forward.1} parent=1 // pred_region
      _
    $region9: #{sentiment_forward.1} parent=1 // pred_fallthru
      _
    // Predicated region
    $region10: #{sentiment_forward.1} parent=1 // pred_check
      _
    $region11: #{sentiment_forward.1} parent=1 // pred_check_branch
      %24 = sbr.rel (0) target = $region13
    $region12: #{sentiment_forward.1} parent=1 // pred_region
      _
    $region13: #{sentiment_forward.1} parent=1 // pred_fallthru
      _
    // Predicated region
    $region14: #{sentiment_forward.1} parent=1 // pred_check
      _
    $region15: #{sentiment_forward.1} parent=1 // pred_check_branch
      %26 = sbr.rel (0) target = $region17
    $region16: #{sentiment_forward.1} parent=1 // pred_region
      _
    $region17: #{sentiment_forward.1} parent=1 // pred_fallthru
      _
    // Predicated region
    $region18: #{sentiment_forward.1} parent=1 // pred_check
      _
    $region19: #{sentiment_forward.1} parent=1 // pred_check_branch
      %28 = sbr.rel (0) target = $region21
    $region20: #{sentiment_forward.1} parent=1 // pred_region
      _
    $region21: #{sentiment_forward.1} parent=1 // pred_fallthru
      _
    // Predicated region
    $region22: #{sentiment_forward.1} parent=1 // pred_check
      _
    $region23: #{sentiment_forward.1} parent=1 // pred_check_branch
      %30 = sbr.rel (0) target = $region25
    $region24: #{sentiment_forward.1} parent=1 // pred_region
      _
    $region25: #{sentiment_forward.1} parent=1 // pred_fallthru
      _
    // Predicated region
    $region26: #{sentiment_forward.1} parent=1 // pred_check
      _
    $region27: #{sentiment_forward.1} parent=1 // pred_check_branch
      %32 = sbr.rel (0) target = $region29
    $region28: #{sentiment_forward.1} parent=1 // pred_region
      _
    $region29: #{sentiment_forward.1} parent=1 // pred_fallthru
      _
    // Predicated region
    $region30: #{sentiment_forward.1} parent=1 // pred_check
      _
    $region31: #{sentiment_forward.1} parent=1 // pred_check_branch
      %34 = sbr.rel (0) target = $region33
    $region32: #{sentiment_forward.1} parent=1 // pred_region
      _
    $region33: #{sentiment_forward.1} parent=1 // pred_fallthru
      _
    // Predicated region
    $region34: #{sentiment_forward.1} parent=1 // pred_check
      _
    $region35: #{sentiment_forward.1} parent=1 // pred_check_branch
      %36 = sbr.rel (0) target = $region37
    $region36: #{sentiment_forward.1} parent=1 // pred_region
      _
    $region37: #{sentiment_forward.1} parent=1 // pred_fallthru
      _
    // Predicated region
    $region38: #{sentiment_forward.1} parent=1 // pred_check
      _
    $region39: #{sentiment_forward.1} parent=1 // pred_check_branch
      %38 = sbr.rel (0) target = $region41
    $region40: #{sentiment_forward.1} parent=1 // pred_region
      _
    $region41: #{sentiment_forward.1} parent=1 // pred_fallthru
      _
    // Predicated region
    $region42: #{sentiment_forward.1} parent=1 // pred_check
      _
    $region43: #{sentiment_forward.1} parent=1 // pred_check_branch
      %40 = sbr.rel (0) target = $region45
    $region44: #{sentiment_forward.1} parent=1 // pred_region
      _
    $region45: #{sentiment_forward.1} parent=1 // pred_fallthru
      _
    // Predicated region
    $region46: #{sentiment_forward.1} parent=1 // pred_check
      _
    $region47: #{sentiment_forward.1} parent=1 // pred_check_branch
      %42 = sbr.rel (0) target = $region49
    $region48: #{sentiment_forward.1} parent=1 // pred_region
      _
    $region49: #{sentiment_forward.1} parent=1 // pred_fallthru
      _
    // Predicated region
    $region50: #{sentiment_forward.1} parent=1 // pred_check
      _
    $region51: #{sentiment_forward.1} parent=1 // pred_check_branch
      %44 = sbr.rel (0) target = $region53
    $region52: #{sentiment_forward.1} parent=1 // pred_region
      _
    $region53: #{sentiment_forward.1} parent=1 // pred_fallthru
      _
    %v45 = vld [vmem:[%s2] sm:$0xff]
    %v46 = vld [vmem:[%s2 + $0x8] sm:$0xff]
    %v47 = vld [vmem:[%s2 + $0x10] sm:$0xff]
    %v48 = vld [vmem:[%s2 + $0x18] sm:$0xff]
    %v49 = vld [vmem:[%s4] sm:$0xff]
    %v50 = vld [vmem:[%s4 + $0x8] sm:$0xff]
    %v51 = vld [vmem:[%s4 + $0x10] sm:$0xff]
    %v52 = vld [vmem:[%s4 + $0x18] sm:$0xff]
    %v53 = vld [vmem:[%s5] sm:$0xff]
    %v54 = vld [vmem:[%s5 + $0x8] sm:$0xff]
    %v55 = vld [vmem:[%s5 + $0x10] sm:$0xff]
    %v56 = vld [vmem:[%s5 + $0x18] sm:$0xff]
    %v57 = vld [vmem:[%s0] sm:$0xff]
    %v58 = vld [vmem:[%s0 + $0x8] sm:$0xff]
    %v59 = vld [vmem:[%s1] sm:$0xff]
    %v60 = vld [vmem:[%s1 + $0x8] sm:$0xff]
    %v61 = vld [vmem:[%s1 + $0x10] sm:$0xff]
    %v62 = vld [vmem:[%s1 + $0x18] sm:$0xff]
    %v63 = vld [vmem:[%s3] sm:$0x1]
    %v65 = vlaneseq
    %v66 = vshrl.u32 %v65, 7
    %v67 = vsub.s32 0, %v66
    %v68 = vrot.slane %v63, %v67
    %vm70 = vcmask 261120
    %v72 = vsel %vm70, %v57, 0
    %v75 = vsel %vm70, %v58, 0
    %77 = vmatprep.subr.mxu0 0.0
    %78 = vmatpush1.msra.mxu0 %v59
    %79 = vmatprep.subr.mxu0 0.0
    %80 = vmatpush1.msra.mxu0 %v60
    %81 = vmatprep.subr.mxu0 0.0
    %82 = vmatpush1.msra.mxu0 %v61
    %83 = vmatprep.subr.mxu0 0.0
    %84 = vmatpush1.msra.mxu0 %v62
    %85 = vmatprep.subr.mxu0 0.0
    %86 = vmatpush1.msra.mxu0 0.0
    %87 = vmatprep.subr.mxu0 0.0
    %88 = vmatpush1.msra.mxu0 0.0
    %89 = vmatprep.subr.mxu0 0.0
    %90 = vmatpush1.msra.mxu0 0.0
    %91 = vmatprep.subr.mxu0 0.0
    %92 = vmatpush1.msra.mxu0 0.0
    %93 = vmatprep.subr.mxu0 0.0
    %94 = vmatpush1.msra.mxu0 0.0
    %95 = vmatprep.subr.mxu0 0.0
    %96 = vmatpush1.msra.mxu0 0.0
    %97 = vmatprep.subr.mxu0 0.0
    %98 = vmatpush1.msra.mxu0 0.0
    %99 = vmatprep.subr.mxu0 0.0
    %100 = vmatpush1.msra.mxu0 0.0
    %101 = vmatprep.subr.mxu0 0.0
    %102 = vmatpush1.msra.mxu0 0.0
    %103 = vmatprep.subr.mxu0 0.0
    %104 = vmatpush1.msra.mxu0 0.0
    %105 = vmatprep.subr.mxu0 0.0
    %106 = vmatpush1.msra.mxu0 0.0
    %107 = vmatprep.subr.mxu0 0.0
    %108 = vmatpush1.msra.mxu0 0.0
    %109 = vmatprep.subr.mxu0 0.0
    %110 = vmatpush1.msra.mxu0 0.0
    %111 = vmatprep.subr.mxu0 0.0
    %112 = vmatpush1.msra.mxu0 0.0
    %113 = vmatprep.subr.mxu0 0.0
    %114 = vmatpush1.msra.mxu0 0.0
    %115 = vmatprep.subr.mxu0 0.0
    %116 = vmatpush1.msra.mxu0 0.0
    %117 = vmatprep.subr.mxu0 0.0
    %118 = vmatpush1.msra.mxu0 0.0
    %119 = vmatprep.subr.mxu0 0.0
    %120 = vmatpush1.msra.mxu0 0.0
    %121 = vmatprep.subr.mxu0 0.0
    %122 = vmatpush1.msra.mxu0 0.0
    %123 = vmatprep.subr.mxu0 0.0
    %124 = vmatpush1.msra.mxu0 0.0
    %125 = vmatprep.subr.mxu0 0.0
    %126 = vmatpush1.msra.mxu0 0.0
    %127 = vmatprep.subr.mxu0 0.0
    %128 = vmatpush1.msra.mxu0 0.0
    %129 = vmatprep.subr.mxu0 0.0
    %130 = vmatpush1.msra.mxu0 0.0
    %131 = vmatprep.subr.mxu0 0.0
    %132 = vmatpush1.msra.mxu0 0.0
    %133 = vmatprep.subr.mxu0 0.0
    %134 = vmatpush1.msra.mxu0 0.0
    %135 = vmatprep.subr.mxu0 0.0
    %136 = vmatpush1.msra.mxu0 0.0
    %137 = vmatprep.subr.mxu0 0.0
    %138 = vmatpush1.msra.mxu0 0.0
    %139 = vmatprep.subr.mxu0 0.0
    %140 = vmatpush1.msra.mxu0 0.0
    %141 = vmatprep.mubr.f32.mxu0 0.0
    %142 = vmatmul.mubr.f32.gmra.mrb[0].mxu0 %v72
    %v143 = vpop.f32.mrb[0].mxu0
    %v144 = vadd.f32 %v68, %v143
    %v145 = vpop.f32.mrb[0].mxu0
    %146 = vmatprep.mubr.f32.mxu0 0.0
    %147 = vmatmul.mubr.f32.gmra.mrb[0].mxu0 %v75
    %v148 = vpop.f32.mrb[0].mxu0
    %v149 = vadd.f32 %v68, %v148
    %v150 = vpop.f32.mrb[0].mxu0
    %151 = vdwg.mxu0
    %v152 = vld [vmem:[%s6] sm:$0x1]
    %v154 = vlaneseq
    %v155 = vshrl.u32 %v154, 7
    %v156 = vsub.s32 0, %v155
    %v157 = vrot.slane %v152, %v156
    %v160 = vsel %vm70, 0.0, 0
    %162 = vmatprep.subr.mxu0 0.0
    %163 = vmatpush1.msra.mxu0 %v45
    %164 = vmatprep.subr.mxu0 0.0
    %165 = vmatpush1.msra.mxu0 %v46
    %166 = vmatprep.subr.mxu0 0.0
    %167 = vmatpush1.msra.mxu0 %v47
    %168 = vmatprep.subr.mxu0 0.0
    %169 = vmatpush1.msra.mxu0 %v48
    %170 = vmatprep.subr.mxu0 0.0
    %171 = vmatpush1.msra.mxu0 0.0
    %172 = vmatprep.subr.mxu0 0.0
    %173 = vmatpush1.msra.mxu0 0.0
    %174 = vmatprep.subr.mxu0 0.0
    %175 = vmatpush1.msra.mxu0 0.0
    %176 = vmatprep.subr.mxu0 0.0
    %177 = vmatpush1.msra.mxu0 0.0
    %178 = vmatprep.subr.mxu0 0.0
    %179 = vmatpush1.msra.mxu0 0.0
    %180 = vmatprep.subr.mxu0 0.0
    %181 = vmatpush1.msra.mxu0 0.0
    %182 = vmatprep.subr.mxu0 0.0
    %183 = vmatpush1.msra.mxu0 0.0
    %184 = vmatprep.subr.mxu0 0.0
    %185 = vmatpush1.msra.mxu0 0.0
    %186 = vmatprep.subr.mxu0 0.0
    %187 = vmatpush1.msra.mxu0 0.0
    %188 = vmatprep.subr.mxu0 0.0
    %189 = vmatpush1.msra.mxu0 0.0
    %190 = vmatprep.subr.mxu0 0.0
    %191 = vmatpush1.msra.mxu0 0.0
    %192 = vmatprep.subr.mxu0 0.0
    %193 = vmatpush1.msra.mxu0 0.0
    %194 = vmatprep.subr.mxu0 0.0
    %195 = vmatpush1.msra.mxu0 0.0
    %196 = vmatprep.subr.mxu0 0.0
    %197 = vmatpush1.msra.mxu0 0.0
    %198 = vmatprep.subr.mxu0 0.0
    %199 = vmatpush1.msra.mxu0 0.0
    %200 = vmatprep.subr.mxu0 0.0
    %201 = vmatpush1.msra.mxu0 0.0
    %202 = vmatprep.subr.mxu0 0.0
    %203 = vmatpush1.msra.mxu0 0.0
    %204 = vmatprep.subr.mxu0 0.0
    %205 = vmatpush1.msra.mxu0 0.0
    %206 = vmatprep.subr.mxu0 0.0
    %207 = vmatpush1.msra.mxu0 0.0
    %208 = vmatprep.subr.mxu0 0.0
    %209 = vmatpush1.msra.mxu0 0.0
    %210 = vmatprep.subr.mxu0 0.0
    %211 = vmatpush1.msra.mxu0 0.0
    %212 = vmatprep.subr.mxu0 0.0
    %213 = vmatpush1.msra.mxu0 0.0
    %214 = vmatprep.subr.mxu0 0.0
    %215 = vmatpush1.msra.mxu0 0.0
    %216 = vmatprep.subr.mxu0 0.0
    %217 = vmatpush1.msra.mxu0 0.0
    %218 = vmatprep.subr.mxu0 0.0
    %219 = vmatpush1.msra.mxu0 0.0
    %220 = vmatprep.subr.mxu0 0.0
    %221 = vmatpush1.msra.mxu0 0.0
    %222 = vmatprep.subr.mxu0 0.0
    %223 = vmatpush1.msra.mxu0 0.0
    %224 = vmatprep.subr.mxu0 0.0
    %225 = vmatpush1.msra.mxu0 0.0
    %226 = vmatprep.mubr.f32.mxu0 0.0
    %227 = vmatmul.mubr.f32.gmra.mrb[0].mxu0 %v160
    %v228 = vpop.f32.mrb[0].mxu0
    %v229 = vadd.f32 0.0, %v228
    %v230 = vpop.f32.mrb[0].mxu0
    %231 = vdwg.mxu0
    %v232 = vadd.f32 %v144, %v229
    %v233 = vxor.u32 %v232, 2147483648
    %v234 = vmul.f32 %v233, 1.442695
    %v235 = vpow.pop %v234
    %v236 = vadd.f32 %v235, 1.0
    %v237 = vrcp.pop %v236
    %v238 = vmul.f32 1.0, %v237
    %v239 = vtanh.pop %v232
    %v240 = vmul.f32 %v238, 0.0
    %242 = vrot.lane.b32.xlu0 %v239, 32
    %v243 = vpop.permute.xlu0 %242
    %v245 = vmul.f32 %v238, %v243
    %247 = vrot.lane.b32.xlu0 %v245, 32
    %v248 = vpop.permute.xlu0 %247
    %v250 = vadd.f32 %v240, %v248
    %v251 = vtanh.pop %v250
    %253 = vrot.lane.b32.xlu0 %v251, 32
    %v254 = vpop.permute.xlu0 %253
    %v256 = vmul.f32 %v238, %v254
    %257 = vmatprep.subr.mxu0 0.0
    %258 = vmatpush1.msra.mxu0 %v53
    %259 = vmatprep.subr.mxu0 0.0
    %260 = vmatpush1.msra.mxu0 %v54
    %261 = vmatprep.subr.mxu0 0.0
    %262 = vmatpush1.msra.mxu0 %v55
    %263 = vmatprep.subr.mxu0 0.0
    %264 = vmatpush1.msra.mxu0 %v56
    %265 = vmatprep.subr.mxu0 0.0
    %266 = vmatpush1.msra.mxu0 0.0
    %267 = vmatprep.subr.mxu0 0.0
    %268 = vmatpush1.msra.mxu0 0.0
    %269 = vmatprep.subr.mxu0 0.0
    %270 = vmatpush1.msra.mxu0 0.0
    %271 = vmatprep.subr.mxu0 0.0
    %272 = vmatpush1.msra.mxu0 0.0
    %273 = vmatprep.subr.mxu0 0.0
    %274 = vmatpush1.msra.mxu0 0.0
    %275 = vmatprep.subr.mxu0 0.0
    %276 = vmatpush1.msra.mxu0 0.0
    %277 = vmatprep.subr.mxu0 0.0
    %278 = vmatpush1.msra.mxu0 0.0
    %279 = vmatprep.subr.mxu0 0.0
    %280 = vmatpush1.msra.mxu0 0.0
    %281 = vmatprep.subr.mxu0 0.0
    %282 = vmatpush1.msra.mxu0 0.0
    %283 = vmatprep.subr.mxu0 0.0
    %284 = vmatpush1.msra.mxu0 0.0
    %285 = vmatprep.subr.mxu0 0.0
    %286 = vmatpush1.msra.mxu0 0.0
    %287 = vmatprep.subr.mxu0 0.0
    %288 = vmatpush1.msra.mxu0 0.0
    %289 = vmatprep.subr.mxu0 0.0
    %290 = vmatpush1.msra.mxu0 0.0
    %291 = vmatprep.subr.mxu0 0.0
    %292 = vmatpush1.msra.mxu0 0.0
    %293 = vmatprep.subr.mxu0 0.0
    %294 = vmatpush1.msra.mxu0 0.0
    %295 = vmatprep.subr.mxu0 0.0
    %296 = vmatpush1.msra.mxu0 0.0
    %297 = vmatprep.subr.mxu0 0.0
    %298 = vmatpush1.msra.mxu0 0.0
    %299 = vmatprep.subr.mxu0 0.0
    %300 = vmatpush1.msra.mxu0 0.0
    %301 = vmatprep.subr.mxu0 0.0
    %302 = vmatpush1.msra.mxu0 0.0
    %303 = vmatprep.subr.mxu0 0.0
    %304 = vmatpush1.msra.mxu0 0.0
    %305 = vmatprep.subr.mxu0 0.0
    %306 = vmatpush1.msra.mxu0 0.0
    %307 = vmatprep.subr.mxu0 0.0
    %308 = vmatpush1.msra.mxu0 0.0
    %309 = vmatprep.subr.mxu0 0.0
    %310 = vmatpush1.msra.mxu0 0.0
    %311 = vmatprep.subr.mxu0 0.0
    %312 = vmatpush1.msra.mxu0 0.0
    %313 = vmatprep.subr.mxu0 0.0
    %314 = vmatpush1.msra.mxu0 0.0
    %315 = vmatprep.subr.mxu0 0.0
    %316 = vmatpush1.msra.mxu0 0.0
    %317 = vmatprep.subr.mxu0 0.0
    %318 = vmatpush1.msra.mxu0 0.0
    %319 = vmatprep.subr.mxu0 0.0
    %320 = vmatpush1.msra.mxu0 0.0
    %321 = vmatprep.mubr.f32.mxu0 0.0
    %322 = vmatmul.mubr.f32.gmra.mrb[0].mxu0 %v160
    %v323 = vpop.f32.mrb[0].mxu0
    %v324 = vadd.f32 0.0, %v323
    %v325 = vpop.f32.mrb[0].mxu0
    %326 = vdwg.mxu0
    %328 = vrot.lane.b32.xlu0 %v256, 64
    %v329 = vpop.permute.xlu0 %328
    %v330 = vsel %vm70, %v329, 0
    %332 = vmatprep.subr.mxu0 0.0
    %333 = vmatpush1.msra.mxu0 %v49
    %334 = vmatprep.subr.mxu0 0.0
    %335 = vmatpush1.msra.mxu0 %v50
    %336 = vmatprep.subr.mxu0 0.0
    %337 = vmatpush1.msra.mxu0 %v51
    %338 = vmatprep.subr.mxu0 0.0
    %339 = vmatpush1.msra.mxu0 %v52
    %340 = vmatprep.subr.mxu0 0.0
    %341 = vmatpush1.msra.mxu0 0.0
    %342 = vmatprep.subr.mxu0 0.0
    %343 = vmatpush1.msra.mxu0 0.0
    %344 = vmatprep.subr.mxu0 0.0
    %345 = vmatpush1.msra.mxu0 0.0
    %346 = vmatprep.subr.mxu0 0.0
    %347 = vmatpush1.msra.mxu0 0.0
    %348 = vmatprep.subr.mxu0 0.0
    %349 = vmatpush1.msra.mxu0 0.0
    %350 = vmatprep.subr.mxu0 0.0
    %351 = vmatpush1.msra.mxu0 0.0
    %352 = vmatprep.subr.mxu0 0.0
    %353 = vmatpush1.msra.mxu0 0.0
    %354 = vmatprep.subr.mxu0 0.0
    %355 = vmatpush1.msra.mxu0 0.0
    %356 = vmatprep.subr.mxu0 0.0
    %357 = vmatpush1.msra.mxu0 0.0
    %358 = vmatprep.subr.mxu0 0.0
    %359 = vmatpush1.msra.mxu0 0.0
    %360 = vmatprep.subr.mxu0 0.0
    %361 = vmatpush1.msra.mxu0 0.0
    %362 = vmatprep.subr.mxu0 0.0
    %363 = vmatpush1.msra.mxu0 0.0
    %364 = vmatprep.subr.mxu0 0.0
    %365 = vmatpush1.msra.mxu0 0.0
    %366 = vmatprep.subr.mxu0 0.0
    %367 = vmatpush1.msra.mxu0 0.0
    %368 = vmatprep.subr.mxu0 0.0
    %369 = vmatpush1.msra.mxu0 0.0
    %370 = vmatprep.subr.mxu0 0.0
    %371 = vmatpush1.msra.mxu0 0.0
    %372 = vmatprep.subr.mxu0 0.0
    %373 = vmatpush1.msra.mxu0 0.0
    %374 = vmatprep.subr.mxu0 0.0
    %375 = vmatpush1.msra.mxu0 0.0
    %376 = vmatprep.subr.mxu0 0.0
    %377 = vmatpush1.msra.mxu0 0.0
    %378 = vmatprep.subr.mxu0 0.0
    %379 = vmatpush1.msra.mxu0 0.0
    %380 = vmatprep.subr.mxu0 0.0
    %381 = vmatpush1.msra.mxu0 0.0
    %382 = vmatprep.subr.mxu0 0.0
    %383 = vmatpush1.msra.mxu0 0.0
    %384 = vmatprep.subr.mxu0 0.0
    %385 = vmatpush1.msra.mxu0 0.0
    %386 = vmatprep.subr.mxu0 0.0
    %387 = vmatpush1.msra.mxu0 0.0
    %388 = vmatprep.subr.mxu0 0.0
    %389 = vmatpush1.msra.mxu0 0.0
    %390 = vmatprep.subr.mxu0 0.0
    %391 = vmatpush1.msra.mxu0 0.0
    %392 = vmatprep.subr.mxu0 0.0
    %393 = vmatpush1.msra.mxu0 0.0
    %394 = vmatprep.subr.mxu0 0.0
    %395 = vmatpush1.msra.mxu0 0.0
    %396 = vmatprep.mubr.f32.mxu0 0.0
    %397 = vmatmul.mubr.f32.gmra.mrb[0].mxu0 %v330
    %v398 = vpop.f32.mrb[0].mxu0
    %v399 = vadd.f32 %v324, %v398
    %v400 = vpop.f32.mrb[0].mxu0
    %401 = vdwg.mxu0
    %v402 = vadd.f32 %v399, %v157
    %v403 = vxor.u32 %v402, 2147483648
    %v404 = vmul.f32 %v403, 1.442695
    %v405 = vpow.pop %v404
    %v406 = vadd.f32 %v405, 1.0
    %v407 = vrcp.pop %v406
    %v408 = vmul.f32 1.0, %v407
    %v409 = vtanh.pop %v402
    %v410 = vmul.f32 %v408, 0.0
    %412 = vrot.lane.b32.xlu0 %v409, 32
    %v413 = vpop.permute.xlu0 %412
    %v415 = vmul.f32 %v408, %v413
    %417 = vrot.lane.b32.xlu0 %v415, 32
    %v418 = vpop.permute.xlu0 %417
    %v420 = vadd.f32 %v410, %v418
    %v421 = vtanh.pop %v420
    %423 = vrot.lane.b32.xlu0 %v421, 32
    %v424 = vpop.permute.xlu0 %423
    %v426 = vmul.f32 %v408, %v424
    %427 = vmatprep.subr.mxu0 0.0
    %428 = vmatpush1.msra.mxu0 %v45
    %429 = vmatprep.subr.mxu0 0.0
    %430 = vmatpush1.msra.mxu0 %v46
    %431 = vmatprep.subr.mxu0 0.0
    %432 = vmatpush1.msra.mxu0 %v47
    %433 = vmatprep.subr.mxu0 0.0
    %434 = vmatpush1.msra.mxu0 %v48
    %435 = vmatprep.subr.mxu0 0.0
    %436 = vmatpush1.msra.mxu0 0.0
    %437 = vmatprep.subr.mxu0 0.0
    %438 = vmatpush1.msra.mxu0 0.0
    %439 = vmatprep.subr.mxu0 0.0
    %440 = vmatpush1.msra.mxu0 0.0
    %441 = vmatprep.subr.mxu0 0.0
    %442 = vmatpush1.msra.mxu0 0.0
    %443 = vmatprep.subr.mxu0 0.0
    %444 = vmatpush1.msra.mxu0 0.0
    %445 = vmatprep.subr.mxu0 0.0
    %446 = vmatpush1.msra.mxu0 0.0
    %447 = vmatprep.subr.mxu0 0.0
    %448 = vmatpush1.msra.mxu0 0.0
    %449 = vmatprep.subr.mxu0 0.0
    %450 = vmatpush1.msra.mxu0 0.0
    %451 = vmatprep.subr.mxu0 0.0
    %452 = vmatpush1.msra.mxu0 0.0
    %453 = vmatprep.subr.mxu0 0.0
    %454 = vmatpush1.msra.mxu0 0.0
    %455 = vmatprep.subr.mxu0 0.0
    %456 = vmatpush1.msra.mxu0 0.0
    %457 = vmatprep.subr.mxu0 0.0
    %458 = vmatpush1.msra.mxu0 0.0
    %459 = vmatprep.subr.mxu0 0.0
    %460 = vmatpush1.msra.mxu0 0.0
    %461 = vmatprep.subr.mxu0 0.0
    %462 = vmatpush1.msra.mxu0 0.0
    %463 = vmatprep.subr.mxu0 0.0
    %464 = vmatpush1.msra.mxu0 0.0
    %465 = vmatprep.subr.mxu0 0.0
    %466 = vmatpush1.msra.mxu0 0.0
    %467 = vmatprep.subr.mxu0 0.0
    %468 = vmatpush1.msra.mxu0 0.0
    %469 = vmatprep.subr.mxu0 0.0
    %470 = vmatpush1.msra.mxu0 0.0
    %471 = vmatprep.subr.mxu0 0.0
    %472 = vmatpush1.msra.mxu0 0.0
    %473 = vmatprep.subr.mxu0 0.0
    %474 = vmatpush1.msra.mxu0 0.0
    %475 = vmatprep.subr.mxu0 0.0
    %476 = vmatpush1.msra.mxu0 0.0
    %477 = vmatprep.subr.mxu0 0.0
    %478 = vmatpush1.msra.mxu0 0.0
    %479 = vmatprep.subr.mxu0 0.0
    %480 = vmatpush1.msra.mxu0 0.0
    %481 = vmatprep.subr.mxu0 0.0
    %482 = vmatpush1.msra.mxu0 0.0
    %483 = vmatprep.subr.mxu0 0.0
    %484 = vmatpush1.msra.mxu0 0.0
    %485 = vmatprep.subr.mxu0 0.0
    %486 = vmatpush1.msra.mxu0 0.0
    %487 = vmatprep.subr.mxu0 0.0
    %488 = vmatpush1.msra.mxu0 0.0
    %489 = vmatprep.subr.mxu0 0.0
    %490 = vmatpush1.msra.mxu0 0.0
    %491 = vmatprep.mubr.f32.mxu0 0.0
    %492 = vmatmul.mubr.f32.gmra.mrb[0].mxu0 %v330
    %v493 = vpop.f32.mrb[0].mxu0
    %v494 = vadd.f32 0.0, %v493
    %v495 = vpop.f32.mrb[0].mxu0
    %496 = vdwg.mxu0
    %v498 = vrot.slane %v494, 6
    %v500 = vadd.f32 %v144, %v498
    %v501 = vxor.u32 %v500, 2147483648
    %v502 = vmul.f32 %v501, 1.442695
    %v503 = vpow.pop %v502
    %v504 = vadd.f32 %v503, 1.0
    %v505 = vrcp.pop %v504
    %v506 = vmul.f32 1.0, %v505
    %v507 = vtanh.pop %v500
    %v509 = vrot.slane %v250, 6
    %v511 = vmul.f32 %v506, %v509
    %513 = vrot.lane.b32.xlu0 %v507, 32
    %v514 = vpop.permute.xlu0 %513
    %v516 = vmul.f32 %v506, %v514
    %518 = vrot.lane.b32.xlu0 %v516, 32
    %v519 = vpop.permute.xlu0 %518
    %v521 = vadd.f32 %v511, %v519
    %v522 = vtanh.pop %v521
    %524 = vrot.lane.b32.xlu0 %v522, 32
    %v525 = vpop.permute.xlu0 %524
    %v527 = vmul.f32 %v506, %v525
    %529 = vrot.lane.b32.xlu0 %v426, 64
    %v530 = vpop.permute.xlu0 %529
    %v531 = vsel %vm70, %v530, 0
    %533 = vmatprep.subr.mxu0 0.0
    %534 = vmatpush1.msra.mxu0 %v53
    %535 = vmatprep.subr.mxu0 0.0
    %536 = vmatpush1.msra.mxu0 %v54
    %537 = vmatprep.subr.mxu0 0.0
    %538 = vmatpush1.msra.mxu0 %v55
    %539 = vmatprep.subr.mxu0 0.0
    %540 = vmatpush1.msra.mxu0 %v56
    %541 = vmatprep.subr.mxu0 0.0
    %542 = vmatpush1.msra.mxu0 0.0
    %543 = vmatprep.subr.mxu0 0.0
    %544 = vmatpush1.msra.mxu0 0.0
    %545 = vmatprep.subr.mxu0 0.0
    %546 = vmatpush1.msra.mxu0 0.0
    %547 = vmatprep.subr.mxu0 0.0
    %548 = vmatpush1.msra.mxu0 0.0
    %549 = vmatprep.subr.mxu0 0.0
    %550 = vmatpush1.msra.mxu0 0.0
    %551 = vmatprep.subr.mxu0 0.0
    %552 = vmatpush1.msra.mxu0 0.0
    %553 = vmatprep.subr.mxu0 0.0
    %554 = vmatpush1.msra.mxu0 0.0
    %555 = vmatprep.subr.mxu0 0.0
    %556 = vmatpush1.msra.mxu0 0.0
    %557 = vmatprep.subr.mxu0 0.0
    %558 = vmatpush1.msra.mxu0 0.0
    %559 = vmatprep.subr.mxu0 0.0
    %560 = vmatpush1.msra.mxu0 0.0
    %561 = vmatprep.subr.mxu0 0.0
    %562 = vmatpush1.msra.mxu0 0.0
    %563 = vmatprep.subr.mxu0 0.0
    %564 = vmatpush1.msra.mxu0 0.0
    %565 = vmatprep.subr.mxu0 0.0
    %566 = vmatpush1.msra.mxu0 0.0
    %567 = vmatprep.subr.mxu0 0.0
    %568 = vmatpush1.msra.mxu0 0.0
    %569 = vmatprep.subr.mxu0 0.0
    %570 = vmatpush1.msra.mxu0 0.0
    %571 = vmatprep.subr.mxu0 0.0
    %572 = vmatpush1.msra.mxu0 0.0
    %573 = vmatprep.subr.mxu0 0.0
    %574 = vmatpush1.msra.mxu0 0.0
    %575 = vmatprep.subr.mxu0 0.0
    %576 = vmatpush1.msra.mxu0 0.0
    %577 = vmatprep.subr.mxu0 0.0
    %578 = vmatpush1.msra.mxu0 0.0
    %579 = vmatprep.subr.mxu0 0.0
    %580 = vmatpush1.msra.mxu0 0.0
    %581 = vmatprep.subr.mxu0 0.0
    %582 = vmatpush1.msra.mxu0 0.0
    %583 = vmatprep.subr.mxu0 0.0
    %584 = vmatpush1.msra.mxu0 0.0
    %585 = vmatprep.subr.mxu0 0.0
    %586 = vmatpush1.msra.mxu0 0.0
    %587 = vmatprep.subr.mxu0 0.0
    %588 = vmatpush1.msra.mxu0 0.0
    %589 = vmatprep.subr.mxu0 0.0
    %590 = vmatpush1.msra.mxu0 0.0
    %591 = vmatprep.subr.mxu0 0.0
    %592 = vmatpush1.msra.mxu0 0.0
    %593 = vmatprep.subr.mxu0 0.0
    %594 = vmatpush1.msra.mxu0 0.0
    %595 = vmatprep.subr.mxu0 0.0
    %596 = vmatpush1.msra.mxu0 0.0
    %597 = vmatprep.mubr.f32.mxu0 0.0
    %598 = vmatmul.mubr.f32.gmra.mrb[0].mxu0 %v531
    %v599 = vpop.f32.mrb[0].mxu0
    %v600 = vadd.f32 0.0, %v599
    %v601 = vpop.f32.mrb[0].mxu0
    %602 = vdwg.mxu0
    %v604 = vrot.slane %v527, 2
    %605 = vrot.lane.b32.xlu0 %v604, 64
    %v606 = vpop.permute.xlu0 %605
    %v607 = vsel %vm70, %v606, 0
    %609 = vmatprep.subr.mxu0 0.0
    %610 = vmatpush1.msra.mxu0 %v49
    %611 = vmatprep.subr.mxu0 0.0
    %612 = vmatpush1.msra.mxu0 %v50
    %613 = vmatprep.subr.mxu0 0.0
    %614 = vmatpush1.msra.mxu0 %v51
    %615 = vmatprep.subr.mxu0 0.0
    %616 = vmatpush1.msra.mxu0 %v52
    %617 = vmatprep.subr.mxu0 0.0
    %618 = vmatpush1.msra.mxu0 0.0
    %619 = vmatprep.subr.mxu0 0.0
    %620 = vmatpush1.msra.mxu0 0.0
    %621 = vmatprep.subr.mxu0 0.0
    %622 = vmatpush1.msra.mxu0 0.0
    %623 = vmatprep.subr.mxu0 0.0
    %624 = vmatpush1.msra.mxu0 0.0
    %625 = vmatprep.subr.mxu0 0.0
    %626 = vmatpush1.msra.mxu0 0.0
    %627 = vmatprep.subr.mxu0 0.0
    %628 = vmatpush1.msra.mxu0 0.0
    %629 = vmatprep.subr.mxu0 0.0
    %630 = vmatpush1.msra.mxu0 0.0
    %631 = vmatprep.subr.mxu0 0.0
    %632 = vmatpush1.msra.mxu0 0.0
    %633 = vmatprep.subr.mxu0 0.0
    %634 = vmatpush1.msra.mxu0 0.0
    %635 = vmatprep.subr.mxu0 0.0
    %636 = vmatpush1.msra.mxu0 0.0
    %637 = vmatprep.subr.mxu0 0.0
    %638 = vmatpush1.msra.mxu0 0.0
    %639 = vmatprep.subr.mxu0 0.0
    %640 = vmatpush1.msra.mxu0 0.0
    %641 = vmatprep.subr.mxu0 0.0
    %642 = vmatpush1.msra.mxu0 0.0
    %643 = vmatprep.subr.mxu0 0.0
    %644 = vmatpush1.msra.mxu0 0.0
    %645 = vmatprep.subr.mxu0 0.0
    %646 = vmatpush1.msra.mxu0 0.0
    %647 = vmatprep.subr.mxu0 0.0
    %648 = vmatpush1.msra.mxu0 0.0
    %649 = vmatprep.subr.mxu0 0.0
    %650 = vmatpush1.msra.mxu0 0.0
    %651 = vmatprep.subr.mxu0 0.0
    %652 = vmatpush1.msra.mxu0 0.0
    %653 = vmatprep.subr.mxu0 0.0
    %654 = vmatpush1.msra.mxu0 0.0
    %655 = vmatprep.subr.mxu0 0.0
    %656 = vmatpush1.msra.mxu0 0.0
    %657 = vmatprep.subr.mxu0 0.0
    %658 = vmatpush1.msra.mxu0 0.0
    %659 = vmatprep.subr.mxu0 0.0
    %660 = vmatpush1.msra.mxu0 0.0
    %661 = vmatprep.subr.mxu0 0.0
    %662 = vmatpush1.msra.mxu0 0.0
    %663 = vmatprep.subr.mxu0 0.0
    %664 = vmatpush1.msra.mxu0 0.0
    %665 = vmatprep.subr.mxu0 0.0
    %666 = vmatpush1.msra.mxu0 0.0
    %667 = vmatprep.subr.mxu0 0.0
    %668 = vmatpush1.msra.mxu0 0.0
    %669 = vmatprep.subr.mxu0 0.0
    %670 = vmatpush1.msra.mxu0 0.0
    %671 = vmatprep.subr.mxu0 0.0
    %672 = vmatpush1.msra.mxu0 0.0
    %673 = vmatprep.mubr.f32.mxu0 0.0
    %674 = vmatmul.mubr.f32.gmra.mrb[0].mxu0 %v607
    %v675 = vpop.f32.mrb[0].mxu0
    %v676 = vadd.f32 %v600, %v675
    %v677 = vpop.f32.mrb[0].mxu0
    %678 = vdwg.mxu0
    %v679 = vadd.f32 %v676, %v157
    %v680 = vxor.u32 %v679, 2147483648
    %v681 = vmul.f32 %v680, 1.442695
    %v682 = vpow.pop %v681
    %v683 = vadd.f32 %v682, 1.0
    %v684 = vrcp.pop %v683
    %v685 = vmul.f32 1.0, %v684
    %v686 = vtanh.pop %v679
    %v687 = vmul.f32 %v685, %v420
    %689 = vrot.lane.b32.xlu0 %v686, 32
    %v690 = vpop.permute.xlu0 %689
    %v692 = vmul.f32 %v685, %v690
    %694 = vrot.lane.b32.xlu0 %v692, 32
    %v695 = vpop.permute.xlu0 %694
    %v697 = vadd.f32 %v687, %v695
    %v698 = vtanh.pop %v697
    %700 = vrot.lane.b32.xlu0 %v698, 32
    %v701 = vpop.permute.xlu0 %700
    %v703 = vmul.f32 %v685, %v701
    %704 = vmatprep.subr.mxu0 0.0
    %705 = vmatpush1.msra.mxu0 %v45
    %706 = vmatprep.subr.mxu0 0.0
    %707 = vmatpush1.msra.mxu0 %v46
    %708 = vmatprep.subr.mxu0 0.0
    %709 = vmatpush1.msra.mxu0 %v47
    %710 = vmatprep.subr.mxu0 0.0
    %711 = vmatpush1.msra.mxu0 %v48
    %712 = vmatprep.subr.mxu0 0.0
    %713 = vmatpush1.msra.mxu0 0.0
    %714 = vmatprep.subr.mxu0 0.0
    %715 = vmatpush1.msra.mxu0 0.0
    %716 = vmatprep.subr.mxu0 0.0
    %717 = vmatpush1.msra.mxu0 0.0
    %718 = vmatprep.subr.mxu0 0.0
    %719 = vmatpush1.msra.mxu0 0.0
    %720 = vmatprep.subr.mxu0 0.0
    %721 = vmatpush1.msra.mxu0 0.0
    %722 = vmatprep.subr.mxu0 0.0
    %723 = vmatpush1.msra.mxu0 0.0
    %724 = vmatprep.subr.mxu0 0.0
    %725 = vmatpush1.msra.mxu0 0.0
    %726 = vmatprep.subr.mxu0 0.0
    %727 = vmatpush1.msra.mxu0 0.0
    %728 = vmatprep.subr.mxu0 0.0
    %729 = vmatpush1.msra.mxu0 0.0
    %730 = vmatprep.subr.mxu0 0.0
    %731 = vmatpush1.msra.mxu0 0.0
    %732 = vmatprep.subr.mxu0 0.0
    %733 = vmatpush1.msra.mxu0 0.0
    %734 = vmatprep.subr.mxu0 0.0
    %735 = vmatpush1.msra.mxu0 0.0
    %736 = vmatprep.subr.mxu0 0.0
    %737 = vmatpush1.msra.mxu0 0.0
    %738 = vmatprep.subr.mxu0 0.0
    %739 = vmatpush1.msra.mxu0 0.0
    %740 = vmatprep.subr.mxu0 0.0
    %741 = vmatpush1.msra.mxu0 0.0
    %742 = vmatprep.subr.mxu0 0.0
    %743 = vmatpush1.msra.mxu0 0.0
    %744 = vmatprep.subr.mxu0 0.0
    %745 = vmatpush1.msra.mxu0 0.0
    %746 = vmatprep.subr.mxu0 0.0
    %747 = vmatpush1.msra.mxu0 0.0
    %748 = vmatprep.subr.mxu0 0.0
    %749 = vmatpush1.msra.mxu0 0.0
    %750 = vmatprep.subr.mxu0 0.0
    %751 = vmatpush1.msra.mxu0 0.0
    %752 = vmatprep.subr.mxu0 0.0
    %753 = vmatpush1.msra.mxu0 0.0
    %754 = vmatprep.subr.mxu0 0.0
    %755 = vmatpush1.msra.mxu0 0.0
    %756 = vmatprep.subr.mxu0 0.0
    %757 = vmatpush1.msra.mxu0 0.0
    %758 = vmatprep.subr.mxu0 0.0
    %759 = vmatpush1.msra.mxu0 0.0
    %760 = vmatprep.subr.mxu0 0.0
    %761 = vmatpush1.msra.mxu0 0.0
    %762 = vmatprep.subr.mxu0 0.0
    %763 = vmatpush1.msra.mxu0 0.0
    %764 = vmatprep.subr.mxu0 0.0
    %765 = vmatpush1.msra.mxu0 0.0
    %766 = vmatprep.subr.mxu0 0.0
    %767 = vmatpush1.msra.mxu0 0.0
    %768 = vmatprep.mubr.f32.mxu0 0.0
    %769 = vmatmul.mubr.f32.gmra.mrb[0].mxu0 %v607
    %v770 = vpop.f32.mrb[0].mxu0
    %v771 = vadd.f32 0.0, %v770
    %v772 = vpop.f32.mrb[0].mxu0
    %773 = vdwg.mxu0
    %v775 = vrot.slane %v771, 4
    %v777 = vadd.f32 %v144, %v775
    %v778 = vxor.u32 %v777, 2147483648
    %v779 = vmul.f32 %v778, 1.442695
    %v780 = vpow.pop %v779
    %v781 = vadd.f32 %v780, 1.0
    %v782 = vrcp.pop %v781
    %v783 = vmul.f32 1.0, %v782
    %v784 = vtanh.pop %v777
    %v786 = vrot.slane %v521, 6
    %v788 = vmul.f32 %v783, %v786
    %790 = vrot.lane.b32.xlu0 %v784, 32
    %v791 = vpop.permute.xlu0 %790
    %v793 = vmul.f32 %v783, %v791
    %795 = vrot.lane.b32.xlu0 %v793, 32
    %v796 = vpop.permute.xlu0 %795
    %v798 = vadd.f32 %v788, %v796
    %v799 = vtanh.pop %v798
    %801 = vrot.lane.b32.xlu0 %v799, 32
    %v802 = vpop.permute.xlu0 %801
    %v804 = vmul.f32 %v783, %v802
    %806 = vrot.lane.b32.xlu0 %v703, 64
    %v807 = vpop.permute.xlu0 %806
    %v808 = vsel %vm70, %v807, 0
    %810 = vmatprep.subr.mxu0 0.0
    %811 = vmatpush1.msra.mxu0 %v53
    %812 = vmatprep.subr.mxu0 0.0
    %813 = vmatpush1.msra.mxu0 %v54
    %814 = vmatprep.subr.mxu0 0.0
    %815 = vmatpush1.msra.mxu0 %v55
    %816 = vmatprep.subr.mxu0 0.0
    %817 = vmatpush1.msra.mxu0 %v56
    %818 = vmatprep.subr.mxu0 0.0
    %819 = vmatpush1.msra.mxu0 0.0
    %820 = vmatprep.subr.mxu0 0.0
    %821 = vmatpush1.msra.mxu0 0.0
    %822 = vmatprep.subr.mxu0 0.0
    %823 = vmatpush1.msra.mxu0 0.0
    %824 = vmatprep.subr.mxu0 0.0
    %825 = vmatpush1.msra.mxu0 0.0
    %826 = vmatprep.subr.mxu0 0.0
    %827 = vmatpush1.msra.mxu0 0.0
    %828 = vmatprep.subr.mxu0 0.0
    %829 = vmatpush1.msra.mxu0 0.0
    %830 = vmatprep.subr.mxu0 0.0
    %831 = vmatpush1.msra.mxu0 0.0
    %832 = vmatprep.subr.mxu0 0.0
    %833 = vmatpush1.msra.mxu0 0.0
    %834 = vmatprep.subr.mxu0 0.0
    %835 = vmatpush1.msra.mxu0 0.0
    %836 = vmatprep.subr.mxu0 0.0
    %837 = vmatpush1.msra.mxu0 0.0
    %838 = vmatprep.subr.mxu0 0.0
    %839 = vmatpush1.msra.mxu0 0.0
    %840 = vmatprep.subr.mxu0 0.0
    %841 = vmatpush1.msra.mxu0 0.0
    %842 = vmatprep.subr.mxu0 0.0
    %843 = vmatpush1.msra.mxu0 0.0
    %844 = vmatprep.subr.mxu0 0.0
    %845 = vmatpush1.msra.mxu0 0.0
    %846 = vmatprep.subr.mxu0 0.0
    %847 = vmatpush1.msra.mxu0 0.0
    %848 = vmatprep.subr.mxu0 0.0
    %849 = vmatpush1.msra.mxu0 0.0
    %850 = vmatprep.subr.mxu0 0.0
    %851 = vmatpush1.msra.mxu0 0.0
    %852 = vmatprep.subr.mxu0 0.0
    %853 = vmatpush1.msra.mxu0 0.0
    %854 = vmatprep.subr.mxu0 0.0
    %855 = vmatpush1.msra.mxu0 0.0
    %856 = vmatprep.subr.mxu0 0.0
    %857 = vmatpush1.msra.mxu0 0.0
    %858 = vmatprep.subr.mxu0 0.0
    %859 = vmatpush1.msra.mxu0 0.0
    %860 = vmatprep.subr.mxu0 0.0
    %861 = vmatpush1.msra.mxu0 0.0
    %862 = vmatprep.subr.mxu0 0.0
    %863 = vmatpush1.msra.mxu0 0.0
    %864 = vmatprep.subr.mxu0 0.0
    %865 = vmatpush1.msra.mxu0 0.0
    %866 = vmatprep.subr.mxu0 0.0
    %867 = vmatpush1.msra.mxu0 0.0
    %868 = vmatprep.subr.mxu0 0.0
    %869 = vmatpush1.msra.mxu0 0.0
    %870 = vmatprep.subr.mxu0 0.0
    %871 = vmatpush1.msra.mxu0 0.0
    %872 = vmatprep.subr.mxu0 0.0
    %873 = vmatpush1.msra.mxu0 0.0
    %874 = vmatprep.mubr.f32.mxu0 0.0
    %875 = vmatmul.mubr.f32.gmra.mrb[0].mxu0 %v808
    %v876 = vpop.f32.mrb[0].mxu0
    %v877 = vadd.f32 0.0, %v876
    %v878 = vpop.f32.mrb[0].mxu0
    %879 = vdwg.mxu0
    %v881 = vrot.slane %v804, 4
    %882 = vrot.lane.b32.xlu0 %v881, 64
    %v883 = vpop.permute.xlu0 %882
    %v884 = vsel %vm70, %v883, 0
    %886 = vmatprep.subr.mxu0 0.0
    %887 = vmatpush1.msra.mxu0 %v49
    %888 = vmatprep.subr.mxu0 0.0
    %889 = vmatpush1.msra.mxu0 %v50
    %890 = vmatprep.subr.mxu0 0.0
    %891 = vmatpush1.msra.mxu0 %v51
    %892 = vmatprep.subr.mxu0 0.0
    %893 = vmatpush1.msra.mxu0 %v52
    %894 = vmatprep.subr.mxu0 0.0
    %895 = vmatpush1.msra.mxu0 0.0
    %896 = vmatprep.subr.mxu0 0.0
    %897 = vmatpush1.msra.mxu0 0.0
    %898 = vmatprep.subr.mxu0 0.0
    %899 = vmatpush1.msra.mxu0 0.0
    %900 = vmatprep.subr.mxu0 0.0
    %901 = vmatpush1.msra.mxu0 0.0
    %902 = vmatprep.subr.mxu0 0.0
    %903 = vmatpush1.msra.mxu0 0.0
    %904 = vmatprep.subr.mxu0 0.0
    %905 = vmatpush1.msra.mxu0 0.0
    %906 = vmatprep.subr.mxu0 0.0
    %907 = vmatpush1.msra.mxu0 0.0
    %908 = vmatprep.subr.mxu0 0.0
    %909 = vmatpush1.msra.mxu0 0.0
    %910 = vmatprep.subr.mxu0 0.0
    %911 = vmatpush1.msra.mxu0 0.0
    %912 = vmatprep.subr.mxu0 0.0
    %913 = vmatpush1.msra.mxu0 0.0
    %914 = vmatprep.subr.mxu0 0.0
    %915 = vmatpush1.msra.mxu0 0.0
    %916 = vmatprep.subr.mxu0 0.0
    %917 = vmatpush1.msra.mxu0 0.0
    %918 = vmatprep.subr.mxu0 0.0
    %919 = vmatpush1.msra.mxu0 0.0
    %920 = vmatprep.subr.mxu0 0.0
    %921 = vmatpush1.msra.mxu0 0.0
    %922 = vmatprep.subr.mxu0 0.0
    %923 = vmatpush1.msra.mxu0 0.0
    %924 = vmatprep.subr.mxu0 0.0
    %925 = vmatpush1.msra.mxu0 0.0
    %926 = vmatprep.subr.mxu0 0.0
    %927 = vmatpush1.msra.mxu0 0.0
    %928 = vmatprep.subr.mxu0 0.0
    %929 = vmatpush1.msra.mxu0 0.0
    %930 = vmatprep.subr.mxu0 0.0
    %931 = vmatpush1.msra.mxu0 0.0
    %932 = vmatprep.subr.mxu0 0.0
    %933 = vmatpush1.msra.mxu0 0.0
    %934 = vmatprep.subr.mxu0 0.0
    %935 = vmatpush1.msra.mxu0 0.0
    %936 = vmatprep.subr.mxu0 0.0
    %937 = vmatpush1.msra.mxu0 0.0
    %938 = vmatprep.subr.mxu0 0.0
    %939 = vmatpush1.msra.mxu0 0.0
    %940 = vmatprep.subr.mxu0 0.0
    %941 = vmatpush1.msra.mxu0 0.0
    %942 = vmatprep.subr.mxu0 0.0
    %943 = vmatpush1.msra.mxu0 0.0
    %944 = vmatprep.subr.mxu0 0.0
    %945 = vmatpush1.msra.mxu0 0.0
    %946 = vmatprep.subr.mxu0 0.0
    %947 = vmatpush1.msra.mxu0 0.0
    %948 = vmatprep.subr.mxu0 0.0
    %949 = vmatpush1.msra.mxu0 0.0
    %950 = vmatprep.mubr.f32.mxu0 0.0
    %951 = vmatmul.mubr.f32.gmra.mrb[0].mxu0 %v884
    %v952 = vpop.f32.mrb[0].mxu0
    %v953 = vadd.f32 %v877, %v952
    %v954 = vpop.f32.mrb[0].mxu0
    %955 = vdwg.mxu0
    %v956 = vadd.f32 %v953, %v157
    %v957 = vxor.u32 %v956, 2147483648
    %v958 = vmul.f32 %v957, 1.442695
    %v959 = vpow.pop %v958
    %v960 = vadd.f32 %v959, 1.0
    %v961 = vrcp.pop %v960
    %v962 = vmul.f32 1.0, %v961
    %v963 = vtanh.pop %v956
    %v964 = vmul.f32 %v962, %v697
    %966 = vrot.lane.b32.xlu0 %v963, 32
    %v967 = vpop.permute.xlu0 %966
    %v969 = vmul.f32 %v962, %v967
    %971 = vrot.lane.b32.xlu0 %v969, 32
    %v972 = vpop.permute.xlu0 %971
    %v974 = vadd.f32 %v964, %v972
    %v975 = vtanh.pop %v974
    %977 = vrot.lane.b32.xlu0 %v975, 32
    %v978 = vpop.permute.xlu0 %977
    %v980 = vmul.f32 %v962, %v978
    %981 = vmatprep.subr.mxu0 0.0
    %982 = vmatpush1.msra.mxu0 %v45
    %983 = vmatprep.subr.mxu0 0.0
    %984 = vmatpush1.msra.mxu0 %v46
    %985 = vmatprep.subr.mxu0 0.0
    %986 = vmatpush1.msra.mxu0 %v47
    %987 = vmatprep.subr.mxu0 0.0
    %988 = vmatpush1.msra.mxu0 %v48
    %989 = vmatprep.subr.mxu0 0.0
    %990 = vmatpush1.msra.mxu0 0.0
    %991 = vmatprep.subr.mxu0 0.0
    %992 = vmatpush1.msra.mxu0 0.0
    %993 = vmatprep.subr.mxu0 0.0
    %994 = vmatpush1.msra.mxu0 0.0
    %995 = vmatprep.subr.mxu0 0.0
    %996 = vmatpush1.msra.mxu0 0.0
    %997 = vmatprep.subr.mxu0 0.0
    %998 = vmatpush1.msra.mxu0 0.0
    %999 = vmatprep.subr.mxu0 0.0
    %1000 = vmatpush1.msra.mxu0 0.0
    %1001 = vmatprep.subr.mxu0 0.0
    %1002 = vmatpush1.msra.mxu0 0.0
    %1003 = vmatprep.subr.mxu0 0.0
    %1004 = vmatpush1.msra.mxu0 0.0
    %1005 = vmatprep.subr.mxu0 0.0
    %1006 = vmatpush1.msra.mxu0 0.0
    %1007 = vmatprep.subr.mxu0 0.0
    %1008 = vmatpush1.msra.mxu0 0.0
    %1009 = vmatprep.subr.mxu0 0.0
    %1010 = vmatpush1.msra.mxu0 0.0
    %1011 = vmatprep.subr.mxu0 0.0
    %1012 = vmatpush1.msra.mxu0 0.0
    %1013 = vmatprep.subr.mxu0 0.0
    %1014 = vmatpush1.msra.mxu0 0.0
    %1015 = vmatprep.subr.mxu0 0.0
    %1016 = vmatpush1.msra.mxu0 0.0
    %1017 = vmatprep.subr.mxu0 0.0
    %1018 = vmatpush1.msra.mxu0 0.0
    %1019 = vmatprep.subr.mxu0 0.0
    %1020 = vmatpush1.msra.mxu0 0.0
    %1021 = vmatprep.subr.mxu0 0.0
    %1022 = vmatpush1.msra.mxu0 0.0
    %1023 = vmatprep.subr.mxu0 0.0
    %1024 = vmatpush1.msra.mxu0 0.0
    %1025 = vmatprep.subr.mxu0 0.0
    %1026 = vmatpush1.msra.mxu0 0.0
    %1027 = vmatprep.subr.mxu0 0.0
    %1028 = vmatpush1.msra.mxu0 0.0
    %1029 = vmatprep.subr.mxu0 0.0
    %1030 = vmatpush1.msra.mxu0 0.0
    %1031 = vmatprep.subr.mxu0 0.0
    %1032 = vmatpush1.msra.mxu0 0.0
    %1033 = vmatprep.subr.mxu0 0.0
    %1034 = vmatpush1.msra.mxu0 0.0
    %1035 = vmatprep.subr.mxu0 0.0
    %1036 = vmatpush1.msra.mxu0 0.0
    %1037 = vmatprep.subr.mxu0 0.0
    %1038 = vmatpush1.msra.mxu0 0.0
    %1039 = vmatprep.subr.mxu0 0.0
    %1040 = vmatpush1.msra.mxu0 0.0
    %1041 = vmatprep.subr.mxu0 0.0
    %1042 = vmatpush1.msra.mxu0 0.0
    %1043 = vmatprep.subr.mxu0 0.0
    %1044 = vmatpush1.msra.mxu0 0.0
    %1045 = vmatprep.mubr.f32.mxu0 0.0
    %1046 = vmatmul.mubr.f32.gmra.mrb[0].mxu0 %v884
    %v1047 = vpop.f32.mrb[0].mxu0
    %v1048 = vadd.f32 0.0, %v1047
    %v1049 = vpop.f32.mrb[0].mxu0
    %1050 = vdwg.mxu0
    %v1052 = vrot.slane %v1048, 2
    %v1054 = vadd.f32 %v144, %v1052
    %v1055 = vxor.u32 %v1054, 2147483648
    %v1056 = vmul.f32 %v1055, 1.442695
    %v1057 = vpow.pop %v1056
    %v1058 = vadd.f32 %v1057, 1.0
    %v1059 = vrcp.pop %v1058
    %v1060 = vmul.f32 1.0, %v1059
    %v1061 = vtanh.pop %v1054
    %v1063 = vrot.slane %v798, 6
    %v1065 = vmul.f32 %v1060, %v1063
    %1067 = vrot.lane.b32.xlu0 %v1061, 32
    %v1068 = vpop.permute.xlu0 %1067
    %v1070 = vmul.f32 %v1060, %v1068
    %1072 = vrot.lane.b32.xlu0 %v1070, 32
    %v1073 = vpop.permute.xlu0 %1072
    %v1075 = vadd.f32 %v1065, %v1073
    %v1076 = vtanh.pop %v1075
    %1078 = vrot.lane.b32.xlu0 %v1076, 32
    %v1079 = vpop.permute.xlu0 %1078
    %v1081 = vmul.f32 %v1060, %v1079
    %1083 = vrot.lane.b32.xlu0 %v980, 64
    %v1084 = vpop.permute.xlu0 %1083
    %v1085 = vsel %vm70, %v1084, 0
    %1087 = vmatprep.subr.mxu0 0.0
    %1088 = vmatpush1.msra.mxu0 %v53
    %1089 = vmatprep.subr.mxu0 0.0
    %1090 = vmatpush1.msra.mxu0 %v54
    %1091 = vmatprep.subr.mxu0 0.0
    %1092 = vmatpush1.msra.mxu0 %v55
    %1093 = vmatprep.subr.mxu0 0.0
    %1094 = vmatpush1.msra.mxu0 %v56
    %1095 = vmatprep.subr.mxu0 0.0
    %1096 = vmatpush1.msra.mxu0 0.0
    %1097 = vmatprep.subr.mxu0 0.0
    %1098 = vmatpush1.msra.mxu0 0.0
    %1099 = vmatprep.subr.mxu0 0.0
    %1100 = vmatpush1.msra.mxu0 0.0
    %1101 = vmatprep.subr.mxu0 0.0
    %1102 = vmatpush1.msra.mxu0 0.0
    %1103 = vmatprep.subr.mxu0 0.0
    %1104 = vmatpush1.msra.mxu0 0.0
    %1105 = vmatprep.subr.mxu0 0.0
    %1106 = vmatpush1.msra.mxu0 0.0
    %1107 = vmatprep.subr.mxu0 0.0
    %1108 = vmatpush1.msra.mxu0 0.0
    %1109 = vmatprep.subr.mxu0 0.0
    %1110 = vmatpush1.msra.mxu0 0.0
    %1111 = vmatprep.subr.mxu0 0.0
    %1112 = vmatpush1.msra.mxu0 0.0
    %1113 = vmatprep.subr.mxu0 0.0
    %1114 = vmatpush1.msra.mxu0 0.0
    %1115 = vmatprep.subr.mxu0 0.0
    %1116 = vmatpush1.msra.mxu0 0.0
    %1117 = vmatprep.subr.mxu0 0.0
    %1118 = vmatpush1.msra.mxu0 0.0
    %1119 = vmatprep.subr.mxu0 0.0
    %1120 = vmatpush1.msra.mxu0 0.0
    %1121 = vmatprep.subr.mxu0 0.0
    %1122 = vmatpush1.msra.mxu0 0.0
    %1123 = vmatprep.subr.mxu0 0.0
    %1124 = vmatpush1.msra.mxu0 0.0
    %1125 = vmatprep.subr.mxu0 0.0
    %1126 = vmatpush1.msra.mxu0 0.0
    %1127 = vmatprep.subr.mxu0 0.0
    %1128 = vmatpush1.msra.mxu0 0.0
    %1129 = vmatprep.subr.mxu0 0.0
    %1130 = vmatpush1.msra.mxu0 0.0
    %1131 = vmatprep.subr.mxu0 0.0
    %1132 = vmatpush1.msra.mxu0 0.0
    %1133 = vmatprep.subr.mxu0 0.0
    %1134 = vmatpush1.msra.mxu0 0.0
    %1135 = vmatprep.subr.mxu0 0.0
    %1136 = vmatpush1.msra.mxu0 0.0
    %1137 = vmatprep.subr.mxu0 0.0
    %1138 = vmatpush1.msra.mxu0 0.0
    %1139 = vmatprep.subr.mxu0 0.0
    %1140 = vmatpush1.msra.mxu0 0.0
    %1141 = vmatprep.subr.mxu0 0.0
    %1142 = vmatpush1.msra.mxu0 0.0
    %1143 = vmatprep.subr.mxu0 0.0
    %1144 = vmatpush1.msra.mxu0 0.0
    %1145 = vmatprep.subr.mxu0 0.0
    %1146 = vmatpush1.msra.mxu0 0.0
    %1147 = vmatprep.subr.mxu0 0.0
    %1148 = vmatpush1.msra.mxu0 0.0
    %1149 = vmatprep.subr.mxu0 0.0
    %1150 = vmatpush1.msra.mxu0 0.0
    %1151 = vmatprep.mubr.f32.mxu0 0.0
    %1152 = vmatmul.mubr.f32.gmra.mrb[0].mxu0 %v1085
    %v1153 = vpop.f32.mrb[0].mxu0
    %v1154 = vadd.f32 0.0, %v1153
    %v1155 = vpop.f32.mrb[0].mxu0
    %1156 = vdwg.mxu0
    %v1158 = vrot.slane %v1081, 6
    %1159 = vrot.lane.b32.xlu0 %v1158, 64
    %v1160 = vpop.permute.xlu0 %1159
    %v1161 = vsel %vm70, %v1160, 0
    %1163 = vmatprep.subr.mxu0 0.0
    %1164 = vmatpush1.msra.mxu0 %v49
    %1165 = vmatprep.subr.mxu0 0.0
    %1166 = vmatpush1.msra.mxu0 %v50
    %1167 = vmatprep.subr.mxu0 0.0
    %1168 = vmatpush1.msra.mxu0 %v51
    %1169 = vmatprep.subr.mxu0 0.0
    %1170 = vmatpush1.msra.mxu0 %v52
    %1171 = vmatprep.subr.mxu0 0.0
    %1172 = vmatpush1.msra.mxu0 0.0
    %1173 = vmatprep.subr.mxu0 0.0
    %1174 = vmatpush1.msra.mxu0 0.0
    %1175 = vmatprep.subr.mxu0 0.0
    %1176 = vmatpush1.msra.mxu0 0.0
    %1177 = vmatprep.subr.mxu0 0.0
    %1178 = vmatpush1.msra.mxu0 0.0
    %1179 = vmatprep.subr.mxu0 0.0
    %1180 = vmatpush1.msra.mxu0 0.0
    %1181 = vmatprep.subr.mxu0 0.0
    %1182 = vmatpush1.msra.mxu0 0.0
    %1183 = vmatprep.subr.mxu0 0.0
    %1184 = vmatpush1.msra.mxu0 0.0
    %1185 = vmatprep.subr.mxu0 0.0
    %1186 = vmatpush1.msra.mxu0 0.0
    %1187 = vmatprep.subr.mxu0 0.0
    %1188 = vmatpush1.msra.mxu0 0.0
    %1189 = vmatprep.subr.mxu0 0.0
    %1190 = vmatpush1.msra.mxu0 0.0
    %1191 = vmatprep.subr.mxu0 0.0
    %1192 = vmatpush1.msra.mxu0 0.0
    %1193 = vmatprep.subr.mxu0 0.0
    %1194 = vmatpush1.msra.mxu0 0.0
    %1195 = vmatprep.subr.mxu0 0.0
    %1196 = vmatpush1.msra.mxu0 0.0
    %1197 = vmatprep.subr.mxu0 0.0
    %1198 = vmatpush1.msra.mxu0 0.0
    %1199 = vmatprep.subr.mxu0 0.0
    %1200 = vmatpush1.msra.mxu0 0.0
    %1201 = vmatprep.subr.mxu0 0.0
    %1202 = vmatpush1.msra.mxu0 0.0
    %1203 = vmatprep.subr.mxu0 0.0
    %1204 = vmatpush1.msra.mxu0 0.0
    %1205 = vmatprep.subr.mxu0 0.0
    %1206 = vmatpush1.msra.mxu0 0.0
    %1207 = vmatprep.subr.mxu0 0.0
    %1208 = vmatpush1.msra.mxu0 0.0
    %1209 = vmatprep.subr.mxu0 0.0
    %1210 = vmatpush1.msra.mxu0 0.0
    %1211 = vmatprep.subr.mxu0 0.0
    %1212 = vmatpush1.msra.mxu0 0.0
    %1213 = vmatprep.subr.mxu0 0.0
    %1214 = vmatpush1.msra.mxu0 0.0
    %1215 = vmatprep.subr.mxu0 0.0
    %1216 = vmatpush1.msra.mxu0 0.0
    %1217 = vmatprep.subr.mxu0 0.0
    %1218 = vmatpush1.msra.mxu0 0.0
    %1219 = vmatprep.subr.mxu0 0.0
    %1220 = vmatpush1.msra.mxu0 0.0
    %1221 = vmatprep.subr.mxu0 0.0
    %1222 = vmatpush1.msra.mxu0 0.0
    %1223 = vmatprep.subr.mxu0 0.0
    %1224 = vmatpush1.msra.mxu0 0.0
    %1225 = vmatprep.subr.mxu0 0.0
    %1226 = vmatpush1.msra.mxu0 0.0
    %1227 = vmatprep.mubr.f32.mxu0 0.0
    %1228 = vmatmul.mubr.f32.gmra.mrb[0].mxu0 %v1161
    %v1229 = vpop.f32.mrb[0].mxu0
    %v1230 = vadd.f32 %v1154, %v1229
    %v1231 = vpop.f32.mrb[0].mxu0
    %1232 = vdwg.mxu0
    %v1233 = vadd.f32 %v1230, %v157
    %v1234 = vxor.u32 %v1233, 2147483648
    %v1235 = vmul.f32 %v1234, 1.442695
    %v1236 = vpow.pop %v1235
    %v1237 = vadd.f32 %v1236, 1.0
    %v1238 = vrcp.pop %v1237
    %v1239 = vmul.f32 1.0, %v1238
    %v1240 = vtanh.pop %v1233
    %v1241 = vmul.f32 %v1239, %v974
    %1243 = vrot.lane.b32.xlu0 %v1240, 32
    %v1244 = vpop.permute.xlu0 %1243
    %v1246 = vmul.f32 %v1239, %v1244
    %1248 = vrot.lane.b32.xlu0 %v1246, 32
    %v1249 = vpop.permute.xlu0 %1248
    %v1251 = vadd.f32 %v1241, %v1249
    %v1252 = vtanh.pop %v1251
    %1254 = vrot.lane.b32.xlu0 %v1252, 32
    %v1255 = vpop.permute.xlu0 %1254
    %v1257 = vmul.f32 %v1239, %v1255
    %1258 = vmatprep.subr.mxu0 0.0
    %1259 = vmatpush1.msra.mxu0 %v45
    %1260 = vmatprep.subr.mxu0 0.0
    %1261 = vmatpush1.msra.mxu0 %v46
    %1262 = vmatprep.subr.mxu0 0.0
    %1263 = vmatpush1.msra.mxu0 %v47
    %1264 = vmatprep.subr.mxu0 0.0
    %1265 = vmatpush1.msra.mxu0 %v48
    %1266 = vmatprep.subr.mxu0 0.0
    %1267 = vmatpush1.msra.mxu0 0.0
    %1268 = vmatprep.subr.mxu0 0.0
    %1269 = vmatpush1.msra.mxu0 0.0
    %1270 = vmatprep.subr.mxu0 0.0
    %1271 = vmatpush1.msra.mxu0 0.0
    %1272 = vmatprep.subr.mxu0 0.0
    %1273 = vmatpush1.msra.mxu0 0.0
    %1274 = vmatprep.subr.mxu0 0.0
    %1275 = vmatpush1.msra.mxu0 0.0
    %1276 = vmatprep.subr.mxu0 0.0
    %1277 = vmatpush1.msra.mxu0 0.0
    %1278 = vmatprep.subr.mxu0 0.0
    %1279 = vmatpush1.msra.mxu0 0.0
    %1280 = vmatprep.subr.mxu0 0.0
    %1281 = vmatpush1.msra.mxu0 0.0
    %1282 = vmatprep.subr.mxu0 0.0
    %1283 = vmatpush1.msra.mxu0 0.0
    %1284 = vmatprep.subr.mxu0 0.0
    %1285 = vmatpush1.msra.mxu0 0.0
    %1286 = vmatprep.subr.mxu0 0.0
    %1287 = vmatpush1.msra.mxu0 0.0
    %1288 = vmatprep.subr.mxu0 0.0
    %1289 = vmatpush1.msra.mxu0 0.0
    %1290 = vmatprep.subr.mxu0 0.0
    %1291 = vmatpush1.msra.mxu0 0.0
    %1292 = vmatprep.subr.mxu0 0.0
    %1293 = vmatpush1.msra.mxu0 0.0
    %1294 = vmatprep.subr.mxu0 0.0
    %1295 = vmatpush1.msra.mxu0 0.0
    %1296 = vmatprep.subr.mxu0 0.0
    %1297 = vmatpush1.msra.mxu0 0.0
    %1298 = vmatprep.subr.mxu0 0.0
    %1299 = vmatpush1.msra.mxu0 0.0
    %1300 = vmatprep.subr.mxu0 0.0
    %1301 = vmatpush1.msra.mxu0 0.0
    %1302 = vmatprep.subr.mxu0 0.0
    %1303 = vmatpush1.msra.mxu0 0.0
    %1304 = vmatprep.subr.mxu0 0.0
    %1305 = vmatpush1.msra.mxu0 0.0
    %1306 = vmatprep.subr.mxu0 0.0
    %1307 = vmatpush1.msra.mxu0 0.0
    %1308 = vmatprep.subr.mxu0 0.0
    %1309 = vmatpush1.msra.mxu0 0.0
    %1310 = vmatprep.subr.mxu0 0.0
    %1311 = vmatpush1.msra.mxu0 0.0
    %1312 = vmatprep.subr.mxu0 0.0
    %1313 = vmatpush1.msra.mxu0 0.0
    %1314 = vmatprep.subr.mxu0 0.0
    %1315 = vmatpush1.msra.mxu0 0.0
    %1316 = vmatprep.subr.mxu0 0.0
    %1317 = vmatpush1.msra.mxu0 0.0
    %1318 = vmatprep.subr.mxu0 0.0
    %1319 = vmatpush1.msra.mxu0 0.0
    %1320 = vmatprep.subr.mxu0 0.0
    %1321 = vmatpush1.msra.mxu0 0.0
    %1322 = vmatprep.mubr.f32.mxu0 0.0
    %1323 = vmatmul.mubr.f32.gmra.mrb[0].mxu0 %v1161
    %v1324 = vpop.f32.mrb[0].mxu0
    %v1325 = vadd.f32 0.0, %v1324
    %v1326 = vpop.f32.mrb[0].mxu0
    %1327 = vdwg.mxu0
    %v1328 = vadd.f32 %v149, %v1325
    %v1329 = vxor.u32 %v1328, 2147483648
    %v1330 = vmul.f32 %v1329, 1.442695
    %v1331 = vpow.pop %v1330
    %v1332 = vadd.f32 %v1331, 1.0
    %v1333 = vrcp.pop %v1332
    %v1334 = vmul.f32 1.0, %v1333
    %v1335 = vtanh.pop %v1328
    %v1337 = vrot.slane %v1075, 6
    %v1339 = vmul.f32 %v1334, %v1337
    %1341 = vrot.lane.b32.xlu0 %v1335, 32
    %v1342 = vpop.permute.xlu0 %1341
    %v1344 = vmul.f32 %v1334, %v1342
    %1346 = vrot.lane.b32.xlu0 %v1344, 32
    %v1347 = vpop.permute.xlu0 %1346
    %v1349 = vadd.f32 %v1339, %v1347
    %v1350 = vtanh.pop %v1349
    %1352 = vrot.lane.b32.xlu0 %v1350, 32
    %v1353 = vpop.permute.xlu0 %1352
    %v1355 = vmul.f32 %v1334, %v1353
    %1357 = vrot.lane.b32.xlu0 %v1257, 64
    %v1358 = vpop.permute.xlu0 %1357
    %v1359 = vsel %vm70, %v1358, 0
    %1361 = vmatprep.subr.mxu0 0.0
    %1362 = vmatpush1.msra.mxu0 %v53
    %1363 = vmatprep.subr.mxu0 0.0
    %1364 = vmatpush1.msra.mxu0 %v54
    %1365 = vmatprep.subr.mxu0 0.0
    %1366 = vmatpush1.msra.mxu0 %v55
    %1367 = vmatprep.subr.mxu0 0.0
    %1368 = vmatpush1.msra.mxu0 %v56
    %1369 = vmatprep.subr.mxu0 0.0
    %1370 = vmatpush1.msra.mxu0 0.0
    %1371 = vmatprep.subr.mxu0 0.0
    %1372 = vmatpush1.msra.mxu0 0.0
    %1373 = vmatprep.subr.mxu0 0.0
    %1374 = vmatpush1.msra.mxu0 0.0
    %1375 = vmatprep.subr.mxu0 0.0
    %1376 = vmatpush1.msra.mxu0 0.0
    %1377 = vmatprep.subr.mxu0 0.0
    %1378 = vmatpush1.msra.mxu0 0.0
    %1379 = vmatprep.subr.mxu0 0.0
    %1380 = vmatpush1.msra.mxu0 0.0
    %1381 = vmatprep.subr.mxu0 0.0
    %1382 = vmatpush1.msra.mxu0 0.0
    %1383 = vmatprep.subr.mxu0 0.0
    %1384 = vmatpush1.msra.mxu0 0.0
    %1385 = vmatprep.subr.mxu0 0.0
    %1386 = vmatpush1.msra.mxu0 0.0
    %1387 = vmatprep.subr.mxu0 0.0
    %1388 = vmatpush1.msra.mxu0 0.0
    %1389 = vmatprep.subr.mxu0 0.0
    %1390 = vmatpush1.msra.mxu0 0.0
    %1391 = vmatprep.subr.mxu0 0.0
    %1392 = vmatpush1.msra.mxu0 0.0
    %1393 = vmatprep.subr.mxu0 0.0
    %1394 = vmatpush1.msra.mxu0 0.0
    %1395 = vmatprep.subr.mxu0 0.0
    %1396 = vmatpush1.msra.mxu0 0.0
    %1397 = vmatprep.subr.mxu0 0.0
    %1398 = vmatpush1.msra.mxu0 0.0
    %1399 = vmatprep.subr.mxu0 0.0
    %1400 = vmatpush1.msra.mxu0 0.0
    %1401 = vmatprep.subr.mxu0 0.0
    %1402 = vmatpush1.msra.mxu0 0.0
    %1403 = vmatprep.subr.mxu0 0.0
    %1404 = vmatpush1.msra.mxu0 0.0
    %1405 = vmatprep.subr.mxu0 0.0
    %1406 = vmatpush1.msra.mxu0 0.0
    %1407 = vmatprep.subr.mxu0 0.0
    %1408 = vmatpush1.msra.mxu0 0.0
    %1409 = vmatprep.subr.mxu0 0.0
    %1410 = vmatpush1.msra.mxu0 0.0
    %1411 = vmatprep.subr.mxu0 0.0
    %1412 = vmatpush1.msra.mxu0 0.0
    %1413 = vmatprep.subr.mxu0 0.0
    %1414 = vmatpush1.msra.mxu0 0.0
    %1415 = vmatprep.subr.mxu0 0.0
    %1416 = vmatpush1.msra.mxu0 0.0
    %1417 = vmatprep.subr.mxu0 0.0
    %1418 = vmatpush1.msra.mxu0 0.0
    %1419 = vmatprep.subr.mxu0 0.0
    %1420 = vmatpush1.msra.mxu0 0.0
    %1421 = vmatprep.subr.mxu0 0.0
    %1422 = vmatpush1.msra.mxu0 0.0
    %1423 = vmatprep.subr.mxu0 0.0
    %1424 = vmatpush1.msra.mxu0 0.0
    %1425 = vmatprep.mubr.f32.mxu0 0.0
    %1426 = vmatmul.mubr.f32.gmra.mrb[0].mxu0 %v1359
    %v1427 = vpop.f32.mrb[0].mxu0
    %v1428 = vadd.f32 0.0, %v1427
    %v1429 = vpop.f32.mrb[0].mxu0
    %1430 = vdwg.mxu0
    %1432 = vrot.lane.b32.xlu0 %v1355, 64
    %v1433 = vpop.permute.xlu0 %1432
    %v1434 = vsel %vm70, %v1433, 0
    %1436 = vmatprep.subr.mxu0 0.0
    %1437 = vmatpush1.msra.mxu0 %v49
    %1438 = vmatprep.subr.mxu0 0.0
    %1439 = vmatpush1.msra.mxu0 %v50
    %1440 = vmatprep.subr.mxu0 0.0
    %1441 = vmatpush1.msra.mxu0 %v51
    %1442 = vmatprep.subr.mxu0 0.0
    %1443 = vmatpush1.msra.mxu0 %v52
    %1444 = vmatprep.subr.mxu0 0.0
    %1445 = vmatpush1.msra.mxu0 0.0
    %1446 = vmatprep.subr.mxu0 0.0
    %1447 = vmatpush1.msra.mxu0 0.0
    %1448 = vmatprep.subr.mxu0 0.0
    %1449 = vmatpush1.msra.mxu0 0.0
    %1450 = vmatprep.subr.mxu0 0.0
    %1451 = vmatpush1.msra.mxu0 0.0
    %1452 = vmatprep.subr.mxu0 0.0
    %1453 = vmatpush1.msra.mxu0 0.0
    %1454 = vmatprep.subr.mxu0 0.0
    %1455 = vmatpush1.msra.mxu0 0.0
    %1456 = vmatprep.subr.mxu0 0.0
    %1457 = vmatpush1.msra.mxu0 0.0
    %1458 = vmatprep.subr.mxu0 0.0
    %1459 = vmatpush1.msra.mxu0 0.0
    %1460 = vmatprep.subr.mxu0 0.0
    %1461 = vmatpush1.msra.mxu0 0.0
    %1462 = vmatprep.subr.mxu0 0.0
    %1463 = vmatpush1.msra.mxu0 0.0
    %1464 = vmatprep.subr.mxu0 0.0
    %1465 = vmatpush1.msra.mxu0 0.0
    %1466 = vmatprep.subr.mxu0 0.0
    %1467 = vmatpush1.msra.mxu0 0.0
    %1468 = vmatprep.subr.mxu0 0.0
    %1469 = vmatpush1.msra.mxu0 0.0
    %1470 = vmatprep.subr.mxu0 0.0
    %1471 = vmatpush1.msra.mxu0 0.0
    %1472 = vmatprep.subr.mxu0 0.0
    %1473 = vmatpush1.msra.mxu0 0.0
    %1474 = vmatprep.subr.mxu0 0.0
    %1475 = vmatpush1.msra.mxu0 0.0
    %1476 = vmatprep.subr.mxu0 0.0
    %1477 = vmatpush1.msra.mxu0 0.0
    %1478 = vmatprep.subr.mxu0 0.0
    %1479 = vmatpush1.msra.mxu0 0.0
    %1480 = vmatprep.subr.mxu0 0.0
    %1481 = vmatpush1.msra.mxu0 0.0
    %1482 = vmatprep.subr.mxu0 0.0
    %1483 = vmatpush1.msra.mxu0 0.0
    %1484 = vmatprep.subr.mxu0 0.0
    %1485 = vmatpush1.msra.mxu0 0.0
    %1486 = vmatprep.subr.mxu0 0.0
    %1487 = vmatpush1.msra.mxu0 0.0
    %1488 = vmatprep.subr.mxu0 0.0
    %1489 = vmatpush1.msra.mxu0 0.0
    %1490 = vmatprep.subr.mxu0 0.0
    %1491 = vmatpush1.msra.mxu0 0.0
    %1492 = vmatprep.subr.mxu0 0.0
    %1493 = vmatpush1.msra.mxu0 0.0
    %1494 = vmatprep.subr.mxu0 0.0
    %1495 = vmatpush1.msra.mxu0 0.0
    %1496 = vmatprep.subr.mxu0 0.0
    %1497 = vmatpush1.msra.mxu0 0.0
    %1498 = vmatprep.subr.mxu0 0.0
    %1499 = vmatpush1.msra.mxu0 0.0
    %1500 = vmatprep.mubr.f32.mxu0 0.0
    %1501 = vmatmul.mubr.f32.gmra.mrb[0].mxu0 %v1434
    %v1502 = vpop.f32.mrb[0].mxu0
    %v1503 = vadd.f32 %v1428, %v1502
    %v1504 = vpop.f32.mrb[0].mxu0
    %1505 = vdwg.mxu0
    %v1506 = vadd.f32 %v1503, %v157
    %v1507 = vxor.u32 %v1506, 2147483648
    %v1508 = vmul.f32 %v1507, 1.442695
    %v1509 = vpow.pop %v1508
    %v1510 = vadd.f32 %v1509, 1.0
    %v1511 = vrcp.pop %v1510
    %v1512 = vmul.f32 1.0, %v1511
    %v1513 = vtanh.pop %v1506
    %v1514 = vmul.f32 %v1512, %v1251
    %1516 = vrot.lane.b32.xlu0 %v1513, 32
    %v1517 = vpop.permute.xlu0 %1516
    %v1519 = vmul.f32 %v1512, %v1517
    %1521 = vrot.lane.b32.xlu0 %v1519, 32
    %v1522 = vpop.permute.xlu0 %1521
    %v1524 = vadd.f32 %v1514, %v1522
    %v1525 = vtanh.pop %v1524
    %1527 = vrot.lane.b32.xlu0 %v1525, 32
    %v1528 = vpop.permute.xlu0 %1527
    %v1530 = vmul.f32 %v1512, %v1528
    %1531 = vmatprep.subr.mxu0 0.0
    %1532 = vmatpush1.msra.mxu0 %v45
    %1533 = vmatprep.subr.mxu0 0.0
    %1534 = vmatpush1.msra.mxu0 %v46
    %1535 = vmatprep.subr.mxu0 0.0
    %1536 = vmatpush1.msra.mxu0 %v47
    %1537 = vmatprep.subr.mxu0 0.0
    %1538 = vmatpush1.msra.mxu0 %v48
    %1539 = vmatprep.subr.mxu0 0.0
    %1540 = vmatpush1.msra.mxu0 0.0
    %1541 = vmatprep.subr.mxu0 0.0
    %1542 = vmatpush1.msra.mxu0 0.0
    %1543 = vmatprep.subr.mxu0 0.0
    %1544 = vmatpush1.msra.mxu0 0.0
    %1545 = vmatprep.subr.mxu0 0.0
    %1546 = vmatpush1.msra.mxu0 0.0
    %1547 = vmatprep.subr.mxu0 0.0
    %1548 = vmatpush1.msra.mxu0 0.0
    %1549 = vmatprep.subr.mxu0 0.0
    %1550 = vmatpush1.msra.mxu0 0.0
    %1551 = vmatprep.subr.mxu0 0.0
    %1552 = vmatpush1.msra.mxu0 0.0
    %1553 = vmatprep.subr.mxu0 0.0
    %1554 = vmatpush1.msra.mxu0 0.0
    %1555 = vmatprep.subr.mxu0 0.0
    %1556 = vmatpush1.msra.mxu0 0.0
    %1557 = vmatprep.subr.mxu0 0.0
    %1558 = vmatpush1.msra.mxu0 0.0
    %1559 = vmatprep.subr.mxu0 0.0
    %1560 = vmatpush1.msra.mxu0 0.0
    %1561 = vmatprep.subr.mxu0 0.0
    %1562 = vmatpush1.msra.mxu0 0.0
    %1563 = vmatprep.subr.mxu0 0.0
    %1564 = vmatpush1.msra.mxu0 0.0
    %1565 = vmatprep.subr.mxu0 0.0
    %1566 = vmatpush1.msra.mxu0 0.0
    %1567 = vmatprep.subr.mxu0 0.0
    %1568 = vmatpush1.msra.mxu0 0.0
    %1569 = vmatprep.subr.mxu0 0.0
    %1570 = vmatpush1.msra.mxu0 0.0
    %1571 = vmatprep.subr.mxu0 0.0
    %1572 = vmatpush1.msra.mxu0 0.0
    %1573 = vmatprep.subr.mxu0 0.0
    %1574 = vmatpush1.msra.mxu0 0.0
    %1575 = vmatprep.subr.mxu0 0.0
    %1576 = vmatpush1.msra.mxu0 0.0
    %1577 = vmatprep.subr.mxu0 0.0
    %1578 = vmatpush1.msra.mxu0 0.0
    %1579 = vmatprep.subr.mxu0 0.0
    %1580 = vmatpush1.msra.mxu0 0.0
    %1581 = vmatprep.subr.mxu0 0.0
    %1582 = vmatpush1.msra.mxu0 0.0
    %1583 = vmatprep.subr.mxu0 0.0
    %1584 = vmatpush1.msra.mxu0 0.0
    %1585 = vmatprep.subr.mxu0 0.0
    %1586 = vmatpush1.msra.mxu0 0.0
    %1587 = vmatprep.subr.mxu0 0.0
    %1588 = vmatpush1.msra.mxu0 0.0
    %1589 = vmatprep.subr.mxu0 0.0
    %1590 = vmatpush1.msra.mxu0 0.0
    %1591 = vmatprep.subr.mxu0 0.0
    %1592 = vmatpush1.msra.mxu0 0.0
    %1593 = vmatprep.subr.mxu0 0.0
    %1594 = vmatpush1.msra.mxu0 0.0
    %1595 = vmatprep.mubr.f32.mxu0 0.0
    %1596 = vmatmul.mubr.f32.gmra.mrb[0].mxu0 %v1434
    %v1597 = vpop.f32.mrb[0].mxu0
    %v1598 = vadd.f32 0.0, %v1597
    %v1599 = vpop.f32.mrb[0].mxu0
    %1600 = vdwg.mxu0
    %v1602 = vrot.slane %v1598, 6
    %v1604 = vadd.f32 %v149, %v1602
    %v1605 = vxor.u32 %v1604, 2147483648
    %v1606 = vmul.f32 %v1605, 1.442695
    %v1607 = vpow.pop %v1606
    %v1608 = vadd.f32 %v1607, 1.0
    %v1609 = vrcp.pop %v1608
    %v1610 = vmul.f32 1.0, %v1609
    %v1611 = vtanh.pop %v1604
    %v1613 = vrot.slane %v1349, 6
    %v1615 = vmul.f32 %v1610, %v1613
    %1617 = vrot.lane.b32.xlu0 %v1611, 32
    %v1618 = vpop.permute.xlu0 %1617
    %v1620 = vmul.f32 %v1610, %v1618
    %1622 = vrot.lane.b32.xlu0 %v1620, 32
    %v1623 = vpop.permute.xlu0 %1622
    %v1625 = vadd.f32 %v1615, %v1623
    %v1626 = vtanh.pop %v1625
    %1628 = vrot.lane.b32.xlu0 %v1626, 32
    %v1629 = vpop.permute.xlu0 %1628
    %v1631 = vmul.f32 %v1610, %v1629
    %1633 = vrot.lane.b32.xlu0 %v1530, 64
    %v1634 = vpop.permute.xlu0 %1633
    %v1635 = vsel %vm70, %v1634, 0
    %1637 = vmatprep.subr.mxu0 0.0
    %1638 = vmatpush1.msra.mxu0 %v53
    %1639 = vmatprep.subr.mxu0 0.0
    %1640 = vmatpush1.msra.mxu0 %v54
    %1641 = vmatprep.subr.mxu0 0.0
    %1642 = vmatpush1.msra.mxu0 %v55
    %1643 = vmatprep.subr.mxu0 0.0
    %1644 = vmatpush1.msra.mxu0 %v56
    %1645 = vmatprep.subr.mxu0 0.0
    %1646 = vmatpush1.msra.mxu0 0.0
    %1647 = vmatprep.subr.mxu0 0.0
    %1648 = vmatpush1.msra.mxu0 0.0
    %1649 = vmatprep.subr.mxu0 0.0
    %1650 = vmatpush1.msra.mxu0 0.0
    %1651 = vmatprep.subr.mxu0 0.0
    %1652 = vmatpush1.msra.mxu0 0.0
    %1653 = vmatprep.subr.mxu0 0.0
    %1654 = vmatpush1.msra.mxu0 0.0
    %1655 = vmatprep.subr.mxu0 0.0
    %1656 = vmatpush1.msra.mxu0 0.0
    %1657 = vmatprep.subr.mxu0 0.0
    %1658 = vmatpush1.msra.mxu0 0.0
    %1659 = vmatprep.subr.mxu0 0.0
    %1660 = vmatpush1.msra.mxu0 0.0
    %1661 = vmatprep.subr.mxu0 0.0
    %1662 = vmatpush1.msra.mxu0 0.0
    %1663 = vmatprep.subr.mxu0 0.0
    %1664 = vmatpush1.msra.mxu0 0.0
    %1665 = vmatprep.subr.mxu0 0.0
    %1666 = vmatpush1.msra.mxu0 0.0
    %1667 = vmatprep.subr.mxu0 0.0
    %1668 = vmatpush1.msra.mxu0 0.0
    %1669 = vmatprep.subr.mxu0 0.0
    %1670 = vmatpush1.msra.mxu0 0.0
    %1671 = vmatprep.subr.mxu0 0.0
    %1672 = vmatpush1.msra.mxu0 0.0
    %1673 = vmatprep.subr.mxu0 0.0
    %1674 = vmatpush1.msra.mxu0 0.0
    %1675 = vmatprep.subr.mxu0 0.0
    %1676 = vmatpush1.msra.mxu0 0.0
    %1677 = vmatprep.subr.mxu0 0.0
    %1678 = vmatpush1.msra.mxu0 0.0
    %1679 = vmatprep.subr.mxu0 0.0
    %1680 = vmatpush1.msra.mxu0 0.0
    %1681 = vmatprep.subr.mxu0 0.0
    %1682 = vmatpush1.msra.mxu0 0.0
    %1683 = vmatprep.subr.mxu0 0.0
    %1684 = vmatpush1.msra.mxu0 0.0
    %1685 = vmatprep.subr.mxu0 0.0
    %1686 = vmatpush1.msra.mxu0 0.0
    %1687 = vmatprep.subr.mxu0 0.0
    %1688 = vmatpush1.msra.mxu0 0.0
    %1689 = vmatprep.subr.mxu0 0.0
    %1690 = vmatpush1.msra.mxu0 0.0
    %1691 = vmatprep.subr.mxu0 0.0
    %1692 = vmatpush1.msra.mxu0 0.0
    %1693 = vmatprep.subr.mxu0 0.0
    %1694 = vmatpush1.msra.mxu0 0.0
    %1695 = vmatprep.subr.mxu0 0.0
    %1696 = vmatpush1.msra.mxu0 0.0
    %1697 = vmatprep.subr.mxu0 0.0
    %1698 = vmatpush1.msra.mxu0 0.0
    %1699 = vmatprep.subr.mxu0 0.0
    %1700 = vmatpush1.msra.mxu0 0.0
    %1701 = vmatprep.mubr.f32.mxu0 0.0
    %1702 = vmatmul.mubr.f32.gmra.mrb[0].mxu0 %v1635
    %v1703 = vpop.f32.mrb[0].mxu0
    %v1704 = vadd.f32 0.0, %v1703
    %v1705 = vpop.f32.mrb[0].mxu0
    %1706 = vdwg.mxu0
    %v1708 = vrot.slane %v1631, 2
    %1709 = vrot.lane.b32.xlu0 %v1708, 64
    %v1710 = vpop.permute.xlu0 %1709
    %v1711 = vsel %vm70, %v1710, 0
    %1713 = vmatprep.subr.mxu0 0.0
    %1714 = vmatpush1.msra.mxu0 %v49
    %1715 = vmatprep.subr.mxu0 0.0
    %1716 = vmatpush1.msra.mxu0 %v50
    %1717 = vmatprep.subr.mxu0 0.0
    %1718 = vmatpush1.msra.mxu0 %v51
    %1719 = vmatprep.subr.mxu0 0.0
    %1720 = vmatpush1.msra.mxu0 %v52
    %1721 = vmatprep.subr.mxu0 0.0
    %1722 = vmatpush1.msra.mxu0 0.0
    %1723 = vmatprep.subr.mxu0 0.0
    %1724 = vmatpush1.msra.mxu0 0.0
    %1725 = vmatprep.subr.mxu0 0.0
    %1726 = vmatpush1.msra.mxu0 0.0
    %1727 = vmatprep.subr.mxu0 0.0
    %1728 = vmatpush1.msra.mxu0 0.0
    %1729 = vmatprep.subr.mxu0 0.0
    %1730 = vmatpush1.msra.mxu0 0.0
    %1731 = vmatprep.subr.mxu0 0.0
    %1732 = vmatpush1.msra.mxu0 0.0
    %1733 = vmatprep.subr.mxu0 0.0
    %1734 = vmatpush1.msra.mxu0 0.0
    %1735 = vmatprep.subr.mxu0 0.0
    %1736 = vmatpush1.msra.mxu0 0.0
    %1737 = vmatprep.subr.mxu0 0.0
    %1738 = vmatpush1.msra.mxu0 0.0
    %1739 = vmatprep.subr.mxu0 0.0
    %1740 = vmatpush1.msra.mxu0 0.0
    %1741 = vmatprep.subr.mxu0 0.0
    %1742 = vmatpush1.msra.mxu0 0.0
    %1743 = vmatprep.subr.mxu0 0.0
    %1744 = vmatpush1.msra.mxu0 0.0
    %1745 = vmatprep.subr.mxu0 0.0
    %1746 = vmatpush1.msra.mxu0 0.0
    %1747 = vmatprep.subr.mxu0 0.0
    %1748 = vmatpush1.msra.mxu0 0.0
    %1749 = vmatprep.subr.mxu0 0.0
    %1750 = vmatpush1.msra.mxu0 0.0
    %1751 = vmatprep.subr.mxu0 0.0
    %1752 = vmatpush1.msra.mxu0 0.0
    %1753 = vmatprep.subr.mxu0 0.0
    %1754 = vmatpush1.msra.mxu0 0.0
    %1755 = vmatprep.subr.mxu0 0.0
    %1756 = vmatpush1.msra.mxu0 0.0
    %1757 = vmatprep.subr.mxu0 0.0
    %1758 = vmatpush1.msra.mxu0 0.0
    %1759 = vmatprep.subr.mxu0 0.0
    %1760 = vmatpush1.msra.mxu0 0.0
    %1761 = vmatprep.subr.mxu0 0.0
    %1762 = vmatpush1.msra.mxu0 0.0
    %1763 = vmatprep.subr.mxu0 0.0
    %1764 = vmatpush1.msra.mxu0 0.0
    %1765 = vmatprep.subr.mxu0 0.0
    %1766 = vmatpush1.msra.mxu0 0.0
    %1767 = vmatprep.subr.mxu0 0.0
    %1768 = vmatpush1.msra.mxu0 0.0
    %1769 = vmatprep.subr.mxu0 0.0
    %1770 = vmatpush1.msra.mxu0 0.0
    %1771 = vmatprep.subr.mxu0 0.0
    %1772 = vmatpush1.msra.mxu0 0.0
    %1773 = vmatprep.subr.mxu0 0.0
    %1774 = vmatpush1.msra.mxu0 0.0
    %1775 = vmatprep.subr.mxu0 0.0
    %1776 = vmatpush1.msra.mxu0 0.0
    %1777 = vmatprep.mubr.f32.mxu0 0.0
    %1778 = vmatmul.mubr.f32.gmra.mrb[0].mxu0 %v1711
    %v1779 = vpop.f32.mrb[0].mxu0
    %v1780 = vadd.f32 %v1704, %v1779
    %v1781 = vpop.f32.mrb[0].mxu0
    %1782 = vdwg.mxu0
    %v1783 = vadd.f32 %v1780, %v157
    %v1784 = vxor.u32 %v1783, 2147483648
    %v1785 = vmul.f32 %v1784, 1.442695
    %v1786 = vpow.pop %v1785
    %v1787 = vadd.f32 %v1786, 1.0
    %v1788 = vrcp.pop %v1787
    %v1789 = vmul.f32 1.0, %v1788
    %v1790 = vtanh.pop %v1783
    %v1791 = vmul.f32 %v1789, %v1524
    %1793 = vrot.lane.b32.xlu0 %v1790, 32
    %v1794 = vpop.permute.xlu0 %1793
    %v1796 = vmul.f32 %v1789, %v1794
    %1798 = vrot.lane.b32.xlu0 %v1796, 32
    %v1799 = vpop.permute.xlu0 %1798
    %v1801 = vadd.f32 %v1791, %v1799
    %v1802 = vtanh.pop %v1801
    %1804 = vrot.lane.b32.xlu0 %v1802, 32
    %v1805 = vpop.permute.xlu0 %1804
    %v1807 = vmul.f32 %v1789, %v1805
    %1808 = vmatprep.subr.mxu0 0.0
    %1809 = vmatpush1.msra.mxu0 %v45
    %1810 = vmatprep.subr.mxu0 0.0
    %1811 = vmatpush1.msra.mxu0 %v46
    %1812 = vmatprep.subr.mxu0 0.0
    %1813 = vmatpush1.msra.mxu0 %v47
    %1814 = vmatprep.subr.mxu0 0.0
    %1815 = vmatpush1.msra.mxu0 %v48
    %1816 = vmatprep.subr.mxu0 0.0
    %1817 = vmatpush1.msra.mxu0 0.0
    %1818 = vmatprep.subr.mxu0 0.0
    %1819 = vmatpush1.msra.mxu0 0.0
    %1820 = vmatprep.subr.mxu0 0.0
    %1821 = vmatpush1.msra.mxu0 0.0
    %1822 = vmatprep.subr.mxu0 0.0
    %1823 = vmatpush1.msra.mxu0 0.0
    %1824 = vmatprep.subr.mxu0 0.0
    %1825 = vmatpush1.msra.mxu0 0.0
    %1826 = vmatprep.subr.mxu0 0.0
    %1827 = vmatpush1.msra.mxu0 0.0
    %1828 = vmatprep.subr.mxu0 0.0
    %1829 = vmatpush1.msra.mxu0 0.0
    %1830 = vmatprep.subr.mxu0 0.0
    %1831 = vmatpush1.msra.mxu0 0.0
    %1832 = vmatprep.subr.mxu0 0.0
    %1833 = vmatpush1.msra.mxu0 0.0
    %1834 = vmatprep.subr.mxu0 0.0
    %1835 = vmatpush1.msra.mxu0 0.0
    %1836 = vmatprep.subr.mxu0 0.0
    %1837 = vmatpush1.msra.mxu0 0.0
    %1838 = vmatprep.subr.mxu0 0.0
    %1839 = vmatpush1.msra.mxu0 0.0
    %1840 = vmatprep.subr.mxu0 0.0
    %1841 = vmatpush1.msra.mxu0 0.0
    %1842 = vmatprep.subr.mxu0 0.0
    %1843 = vmatpush1.msra.mxu0 0.0
    %1844 = vmatprep.subr.mxu0 0.0
    %1845 = vmatpush1.msra.mxu0 0.0
    %1846 = vmatprep.subr.mxu0 0.0
    %1847 = vmatpush1.msra.mxu0 0.0
    %1848 = vmatprep.subr.mxu0 0.0
    %1849 = vmatpush1.msra.mxu0 0.0
    %1850 = vmatprep.subr.mxu0 0.0
    %1851 = vmatpush1.msra.mxu0 0.0
    %1852 = vmatprep.subr.mxu0 0.0
    %1853 = vmatpush1.msra.mxu0 0.0
    %1854 = vmatprep.subr.mxu0 0.0
    %1855 = vmatpush1.msra.mxu0 0.0
    %1856 = vmatprep.subr.mxu0 0.0
    %1857 = vmatpush1.msra.mxu0 0.0
    %1858 = vmatprep.subr.mxu0 0.0
    %1859 = vmatpush1.msra.mxu0 0.0
    %1860 = vmatprep.subr.mxu0 0.0
    %1861 = vmatpush1.msra.mxu0 0.0
    %1862 = vmatprep.subr.mxu0 0.0
    %1863 = vmatpush1.msra.mxu0 0.0
    %1864 = vmatprep.subr.mxu0 0.0
    %1865 = vmatpush1.msra.mxu0 0.0
    %1866 = vmatprep.subr.mxu0 0.0
    %1867 = vmatpush1.msra.mxu0 0.0
    %1868 = vmatprep.subr.mxu0 0.0
    %1869 = vmatpush1.msra.mxu0 0.0
    %1870 = vmatprep.subr.mxu0 0.0
    %1871 = vmatpush1.msra.mxu0 0.0
    %1872 = vmatprep.mubr.f32.mxu0 0.0
    %1873 = vmatmul.mubr.f32.gmra.mrb[0].mxu0 %v1711
    %v1874 = vpop.f32.mrb[0].mxu0
    %v1875 = vadd.f32 0.0, %v1874
    %v1876 = vpop.f32.mrb[0].mxu0
    %1877 = vdwg.mxu0
    %v1879 = vrot.slane %v1875, 4
    %v1881 = vadd.f32 %v149, %v1879
    %v1882 = vxor.u32 %v1881, 2147483648
    %v1883 = vmul.f32 %v1882, 1.442695
    %v1884 = vpow.pop %v1883
    %v1885 = vadd.f32 %v1884, 1.0
    %v1886 = vrcp.pop %v1885
    %v1887 = vmul.f32 1.0, %v1886
    %v1888 = vtanh.pop %v1881
    %v1890 = vrot.slane %v1625, 6
    %v1892 = vmul.f32 %v1887, %v1890
    %1894 = vrot.lane.b32.xlu0 %v1888, 32
    %v1895 = vpop.permute.xlu0 %1894
    %v1897 = vmul.f32 %v1887, %v1895
    %1899 = vrot.lane.b32.xlu0 %v1897, 32
    %v1900 = vpop.permute.xlu0 %1899
    %v1902 = vadd.f32 %v1892, %v1900
    %v1903 = vtanh.pop %v1902
    %1905 = vrot.lane.b32.xlu0 %v1903, 32
    %v1906 = vpop.permute.xlu0 %1905
    %v1908 = vmul.f32 %v1887, %v1906
    %1910 = vrot.lane.b32.xlu0 %v1807, 64
    %v1911 = vpop.permute.xlu0 %1910
    %v1912 = vsel %vm70, %v1911, 0
    %1914 = vmatprep.subr.mxu0 0.0
    %1915 = vmatpush1.msra.mxu0 %v53
    %1916 = vmatprep.subr.mxu0 0.0
    %1917 = vmatpush1.msra.mxu0 %v54
    %1918 = vmatprep.subr.mxu0 0.0
    %1919 = vmatpush1.msra.mxu0 %v55
    %1920 = vmatprep.subr.mxu0 0.0
    %1921 = vmatpush1.msra.mxu0 %v56
    %1922 = vmatprep.subr.mxu0 0.0
    %1923 = vmatpush1.msra.mxu0 0.0
    %1924 = vmatprep.subr.mxu0 0.0
    %1925 = vmatpush1.msra.mxu0 0.0
    %1926 = vmatprep.subr.mxu0 0.0
    %1927 = vmatpush1.msra.mxu0 0.0
    %1928 = vmatprep.subr.mxu0 0.0
    %1929 = vmatpush1.msra.mxu0 0.0
    %1930 = vmatprep.subr.mxu0 0.0
    %1931 = vmatpush1.msra.mxu0 0.0
    %1932 = vmatprep.subr.mxu0 0.0
    %1933 = vmatpush1.msra.mxu0 0.0
    %1934 = vmatprep.subr.mxu0 0.0
    %1935 = vmatpush1.msra.mxu0 0.0
    %1936 = vmatprep.subr.mxu0 0.0
    %1937 = vmatpush1.msra.mxu0 0.0
    %1938 = vmatprep.subr.mxu0 0.0
    %1939 = vmatpush1.msra.mxu0 0.0
    %1940 = vmatprep.subr.mxu0 0.0
    %1941 = vmatpush1.msra.mxu0 0.0
    %1942 = vmatprep.subr.mxu0 0.0
    %1943 = vmatpush1.msra.mxu0 0.0
    %1944 = vmatprep.subr.mxu0 0.0
    %1945 = vmatpush1.msra.mxu0 0.0
    %1946 = vmatprep.subr.mxu0 0.0
    %1947 = vmatpush1.msra.mxu0 0.0
    %1948 = vmatprep.subr.mxu0 0.0
    %1949 = vmatpush1.msra.mxu0 0.0
    %1950 = vmatprep.subr.mxu0 0.0
    %1951 = vmatpush1.msra.mxu0 0.0
    %1952 = vmatprep.subr.mxu0 0.0
    %1953 = vmatpush1.msra.mxu0 0.0
    %1954 = vmatprep.subr.mxu0 0.0
    %1955 = vmatpush1.msra.mxu0 0.0
    %1956 = vmatprep.subr.mxu0 0.0
    %1957 = vmatpush1.msra.mxu0 0.0
    %1958 = vmatprep.subr.mxu0 0.0
    %1959 = vmatpush1.msra.mxu0 0.0
    %1960 = vmatprep.subr.mxu0 0.0
    %1961 = vmatpush1.msra.mxu0 0.0
    %1962 = vmatprep.subr.mxu0 0.0
    %1963 = vmatpush1.msra.mxu0 0.0
    %1964 = vmatprep.subr.mxu0 0.0
    %1965 = vmatpush1.msra.mxu0 0.0
    %1966 = vmatprep.subr.mxu0 0.0
    %1967 = vmatpush1.msra.mxu0 0.0
    %1968 = vmatprep.subr.mxu0 0.0
    %1969 = vmatpush1.msra.mxu0 0.0
    %1970 = vmatprep.subr.mxu0 0.0
    %1971 = vmatpush1.msra.mxu0 0.0
    %1972 = vmatprep.subr.mxu0 0.0
    %1973 = vmatpush1.msra.mxu0 0.0
    %1974 = vmatprep.subr.mxu0 0.0
    %1975 = vmatpush1.msra.mxu0 0.0
    %1976 = vmatprep.subr.mxu0 0.0
    %1977 = vmatpush1.msra.mxu0 0.0
    %1978 = vmatprep.mubr.f32.mxu0 0.0
    %1979 = vmatmul.mubr.f32.gmra.mrb[0].mxu0 %v1912
    %v1980 = vpop.f32.mrb[0].mxu0
    %v1981 = vadd.f32 0.0, %v1980
    %v1982 = vpop.f32.mrb[0].mxu0
    %1983 = vdwg.mxu0
    %v1985 = vrot.slane %v1908, 4
    %1986 = vrot.lane.b32.xlu0 %v1985, 64
    %v1987 = vpop.permute.xlu0 %1986
    %v1988 = vsel %vm70, %v1987, 0
    %1990 = vmatprep.subr.mxu0 0.0
    %1991 = vmatpush1.msra.mxu0 %v49
    %1992 = vmatprep.subr.mxu0 0.0
    %1993 = vmatpush1.msra.mxu0 %v50
    %1994 = vmatprep.subr.mxu0 0.0
    %1995 = vmatpush1.msra.mxu0 %v51
    %1996 = vmatprep.subr.mxu0 0.0
    %1997 = vmatpush1.msra.mxu0 %v52
    %1998 = vmatprep.subr.mxu0 0.0
    %1999 = vmatpush1.msra.mxu0 0.0
    %2000 = vmatprep.subr.mxu0 0.0
    %2001 = vmatpush1.msra.mxu0 0.0
    %2002 = vmatprep.subr.mxu0 0.0
    %2003 = vmatpush1.msra.mxu0 0.0
    %2004 = vmatprep.subr.mxu0 0.0
    %2005 = vmatpush1.msra.mxu0 0.0
    %2006 = vmatprep.subr.mxu0 0.0
    %2007 = vmatpush1.msra.mxu0 0.0
    %2008 = vmatprep.subr.mxu0 0.0
    %2009 = vmatpush1.msra.mxu0 0.0
    %2010 = vmatprep.subr.mxu0 0.0
    %2011 = vmatpush1.msra.mxu0 0.0
    %2012 = vmatprep.subr.mxu0 0.0
    %2013 = vmatpush1.msra.mxu0 0.0
    %2014 = vmatprep.subr.mxu0 0.0
    %2015 = vmatpush1.msra.mxu0 0.0
    %2016 = vmatprep.subr.mxu0 0.0
    %2017 = vmatpush1.msra.mxu0 0.0
    %2018 = vmatprep.subr.mxu0 0.0
    %2019 = vmatpush1.msra.mxu0 0.0
    %2020 = vmatprep.subr.mxu0 0.0
    %2021 = vmatpush1.msra.mxu0 0.0
    %2022 = vmatprep.subr.mxu0 0.0
    %2023 = vmatpush1.msra.mxu0 0.0
    %2024 = vmatprep.subr.mxu0 0.0
    %2025 = vmatpush1.msra.mxu0 0.0
    %2026 = vmatprep.subr.mxu0 0.0
    %2027 = vmatpush1.msra.mxu0 0.0
    %2028 = vmatprep.subr.mxu0 0.0
    %2029 = vmatpush1.msra.mxu0 0.0
    %2030 = vmatprep.subr.mxu0 0.0
    %2031 = vmatpush1.msra.mxu0 0.0
    %2032 = vmatprep.subr.mxu0 0.0
    %2033 = vmatpush1.msra.mxu0 0.0
    %2034 = vmatprep.subr.mxu0 0.0
    %2035 = vmatpush1.msra.mxu0 0.0
    %2036 = vmatprep.subr.mxu0 0.0
    %2037 = vmatpush1.msra.mxu0 0.0
    %2038 = vmatprep.subr.mxu0 0.0
    %2039 = vmatpush1.msra.mxu0 0.0
    %2040 = vmatprep.subr.mxu0 0.0
    %2041 = vmatpush1.msra.mxu0 0.0
    %2042 = vmatprep.subr.mxu0 0.0
    %2043 = vmatpush1.msra.mxu0 0.0
    %2044 = vmatprep.subr.mxu0 0.0
    %2045 = vmatpush1.msra.mxu0 0.0
    %2046 = vmatprep.subr.mxu0 0.0
    %2047 = vmatpush1.msra.mxu0 0.0
    %2048 = vmatprep.subr.mxu0 0.0
    %2049 = vmatpush1.msra.mxu0 0.0
    %2050 = vmatprep.subr.mxu0 0.0
    %2051 = vmatpush1.msra.mxu0 0.0
    %2052 = vmatprep.subr.mxu0 0.0
    %2053 = vmatpush1.msra.mxu0 0.0
    %2054 = vmatprep.mubr.f32.mxu0 0.0
    %2055 = vmatmul.mubr.f32.gmra.mrb[0].mxu0 %v1988
    %v2056 = vpop.f32.mrb[0].mxu0
    %v2057 = vadd.f32 %v1981, %v2056
    %v2058 = vpop.f32.mrb[0].mxu0
    %2059 = vdwg.mxu0
    %v2060 = vadd.f32 %v2057, %v157
    %v2061 = vxor.u32 %v2060, 2147483648
    %v2062 = vmul.f32 %v2061, 1.442695
    %v2063 = vpow.pop %v2062
    %v2064 = vadd.f32 %v2063, 1.0
    %v2065 = vrcp.pop %v2064
    %v2066 = vmul.f32 1.0, %v2065
    %v2067 = vtanh.pop %v2060
    %v2068 = vmul.f32 %v2066, %v1801
    %2070 = vrot.lane.b32.xlu0 %v2067, 32
    %v2071 = vpop.permute.xlu0 %2070
    %v2073 = vmul.f32 %v2066, %v2071
    %2075 = vrot.lane.b32.xlu0 %v2073, 32
    %v2076 = vpop.permute.xlu0 %2075
    %v2078 = vadd.f32 %v2068, %v2076
    %v2079 = vtanh.pop %v2078
    %2081 = vrot.lane.b32.xlu0 %v2079, 32
    %v2082 = vpop.permute.xlu0 %2081
    %v2084 = vmul.f32 %v2066, %v2082
    %2085 = vmatprep.subr.mxu0 0.0
    %2086 = vmatpush1.msra.mxu0 %v45
    %2087 = vmatprep.subr.mxu0 0.0
    %2088 = vmatpush1.msra.mxu0 %v46
    %2089 = vmatprep.subr.mxu0 0.0
    %2090 = vmatpush1.msra.mxu0 %v47
    %2091 = vmatprep.subr.mxu0 0.0
    %2092 = vmatpush1.msra.mxu0 %v48
    %2093 = vmatprep.subr.mxu0 0.0
    %2094 = vmatpush1.msra.mxu0 0.0
    %2095 = vmatprep.subr.mxu0 0.0
    %2096 = vmatpush1.msra.mxu0 0.0
    %2097 = vmatprep.subr.mxu0 0.0
    %2098 = vmatpush1.msra.mxu0 0.0
    %2099 = vmatprep.subr.mxu0 0.0
    %2100 = vmatpush1.msra.mxu0 0.0
    %2101 = vmatprep.subr.mxu0 0.0
    %2102 = vmatpush1.msra.mxu0 0.0
    %2103 = vmatprep.subr.mxu0 0.0
    %2104 = vmatpush1.msra.mxu0 0.0
    %2105 = vmatprep.subr.mxu0 0.0
    %2106 = vmatpush1.msra.mxu0 0.0
    %2107 = vmatprep.subr.mxu0 0.0
    %2108 = vmatpush1.msra.mxu0 0.0
    %2109 = vmatprep.subr.mxu0 0.0
    %2110 = vmatpush1.msra.mxu0 0.0
    %2111 = vmatprep.subr.mxu0 0.0
    %2112 = vmatpush1.msra.mxu0 0.0
    %2113 = vmatprep.subr.mxu0 0.0
    %2114 = vmatpush1.msra.mxu0 0.0
    %2115 = vmatprep.subr.mxu0 0.0
    %2116 = vmatpush1.msra.mxu0 0.0
    %2117 = vmatprep.subr.mxu0 0.0
    %2118 = vmatpush1.msra.mxu0 0.0
    %2119 = vmatprep.subr.mxu0 0.0
    %2120 = vmatpush1.msra.mxu0 0.0
    %2121 = vmatprep.subr.mxu0 0.0
    %2122 = vmatpush1.msra.mxu0 0.0
    %2123 = vmatprep.subr.mxu0 0.0
    %2124 = vmatpush1.msra.mxu0 0.0
    %2125 = vmatprep.subr.mxu0 0.0
    %2126 = vmatpush1.msra.mxu0 0.0
    %2127 = vmatprep.subr.mxu0 0.0
    %2128 = vmatpush1.msra.mxu0 0.0
    %2129 = vmatprep.subr.mxu0 0.0
    %2130 = vmatpush1.msra.mxu0 0.0
    %2131 = vmatprep.subr.mxu0 0.0
    %2132 = vmatpush1.msra.mxu0 0.0
    %2133 = vmatprep.subr.mxu0 0.0
    %2134 = vmatpush1.msra.mxu0 0.0
    %2135 = vmatprep.subr.mxu0 0.0
    %2136 = vmatpush1.msra.mxu0 0.0
    %2137 = vmatprep.subr.mxu0 0.0
    %2138 = vmatpush1.msra.mxu0 0.0
    %2139 = vmatprep.subr.mxu0 0.0
    %2140 = vmatpush1.msra.mxu0 0.0
    %2141 = vmatprep.subr.mxu0 0.0
    %2142 = vmatpush1.msra.mxu0 0.0
    %2143 = vmatprep.subr.mxu0 0.0
    %2144 = vmatpush1.msra.mxu0 0.0
    %2145 = vmatprep.subr.mxu0 0.0
    %2146 = vmatpush1.msra.mxu0 0.0
    %2147 = vmatprep.subr.mxu0 0.0
    %2148 = vmatpush1.msra.mxu0 0.0
    %2149 = vmatprep.mubr.f32.mxu0 0.0
    %2150 = vmatmul.mubr.f32.gmra.mrb[0].mxu0 %v1988
    %v2151 = vpop.f32.mrb[0].mxu0
    %v2152 = vadd.f32 0.0, %v2151
    %v2153 = vpop.f32.mrb[0].mxu0
    %2154 = vdwg.mxu0
    %v2156 = vrot.slane %v2152, 2
    %v2158 = vadd.f32 %v149, %v2156
    %v2159 = vxor.u32 %v2158, 2147483648
    %v2160 = vmul.f32 %v2159, 1.442695
    %v2161 = vpow.pop %v2160
    %v2162 = vadd.f32 %v2161, 1.0
    %v2163 = vrcp.pop %v2162
    %v2164 = vmul.f32 1.0, %v2163
    %v2165 = vtanh.pop %v2158
    %v2167 = vrot.slane %v1902, 6
    %v2169 = vmul.f32 %v2164, %v2167
    %2171 = vrot.lane.b32.xlu0 %v2165, 32
    %v2172 = vpop.permute.xlu0 %2171
    %v2174 = vmul.f32 %v2164, %v2172
    %2176 = vrot.lane.b32.xlu0 %v2174, 32
    %v2177 = vpop.permute.xlu0 %2176
    %v2179 = vadd.f32 %v2169, %v2177
    %v2180 = vtanh.pop %v2179
    %2182 = vrot.lane.b32.xlu0 %v2180, 32
    %v2183 = vpop.permute.xlu0 %2182
    %v2185 = vmul.f32 %v2164, %v2183
    %2187 = vrot.lane.b32.xlu0 %v2084, 64
    %v2188 = vpop.permute.xlu0 %2187
    %v2189 = vsel %vm70, %v2188, 0
    %2191 = vmatprep.subr.mxu0 0.0
    %2192 = vmatpush1.msra.mxu0 %v53
    %2193 = vmatprep.subr.mxu0 0.0
    %2194 = vmatpush1.msra.mxu0 %v54
    %2195 = vmatprep.subr.mxu0 0.0
    %2196 = vmatpush1.msra.mxu0 %v55
    %2197 = vmatprep.subr.mxu0 0.0
    %2198 = vmatpush1.msra.mxu0 %v56
    %2199 = vmatprep.subr.mxu0 0.0
    %2200 = vmatpush1.msra.mxu0 0.0
    %2201 = vmatprep.subr.mxu0 0.0
    %2202 = vmatpush1.msra.mxu0 0.0
    %2203 = vmatprep.subr.mxu0 0.0
    %2204 = vmatpush1.msra.mxu0 0.0
    %2205 = vmatprep.subr.mxu0 0.0
    %2206 = vmatpush1.msra.mxu0 0.0
    %2207 = vmatprep.subr.mxu0 0.0
    %2208 = vmatpush1.msra.mxu0 0.0
    %2209 = vmatprep.subr.mxu0 0.0
    %2210 = vmatpush1.msra.mxu0 0.0
    %2211 = vmatprep.subr.mxu0 0.0
    %2212 = vmatpush1.msra.mxu0 0.0
    %2213 = vmatprep.subr.mxu0 0.0
    %2214 = vmatpush1.msra.mxu0 0.0
    %2215 = vmatprep.subr.mxu0 0.0
    %2216 = vmatpush1.msra.mxu0 0.0
    %2217 = vmatprep.subr.mxu0 0.0
    %2218 = vmatpush1.msra.mxu0 0.0
    %2219 = vmatprep.subr.mxu0 0.0
    %2220 = vmatpush1.msra.mxu0 0.0
    %2221 = vmatprep.subr.mxu0 0.0
    %2222 = vmatpush1.msra.mxu0 0.0
    %2223 = vmatprep.subr.mxu0 0.0
    %2224 = vmatpush1.msra.mxu0 0.0
    %2225 = vmatprep.subr.mxu0 0.0
    %2226 = vmatpush1.msra.mxu0 0.0
    %2227 = vmatprep.subr.mxu0 0.0
    %2228 = vmatpush1.msra.mxu0 0.0
    %2229 = vmatprep.subr.mxu0 0.0
    %2230 = vmatpush1.msra.mxu0 0.0
    %2231 = vmatprep.subr.mxu0 0.0
    %2232 = vmatpush1.msra.mxu0 0.0
    %2233 = vmatprep.subr.mxu0 0.0
    %2234 = vmatpush1.msra.mxu0 0.0
    %2235 = vmatprep.subr.mxu0 0.0
    %2236 = vmatpush1.msra.mxu0 0.0
    %2237 = vmatprep.subr.mxu0 0.0
    %2238 = vmatpush1.msra.mxu0 0.0
    %2239 = vmatprep.subr.mxu0 0.0
    %2240 = vmatpush1.msra.mxu0 0.0
    %2241 = vmatprep.subr.mxu0 0.0
    %2242 = vmatpush1.msra.mxu0 0.0
    %2243 = vmatprep.subr.mxu0 0.0
    %2244 = vmatpush1.msra.mxu0 0.0
    %2245 = vmatprep.subr.mxu0 0.0
    %2246 = vmatpush1.msra.mxu0 0.0
    %2247 = vmatprep.subr.mxu0 0.0
    %2248 = vmatpush1.msra.mxu0 0.0
    %2249 = vmatprep.subr.mxu0 0.0
    %2250 = vmatpush1.msra.mxu0 0.0
    %2251 = vmatprep.subr.mxu0 0.0
    %2252 = vmatpush1.msra.mxu0 0.0
    %2253 = vmatprep.subr.mxu0 0.0
    %2254 = vmatpush1.msra.mxu0 0.0
    %2255 = vmatprep.mubr.f32.mxu0 0.0
    %2256 = vmatmul.mubr.f32.gmra.mrb[0].mxu0 %v2189
    %v2257 = vpop.f32.mrb[0].mxu0
    %v2258 = vadd.f32 0.0, %v2257
    %v2259 = vpop.f32.mrb[0].mxu0
    %2260 = vdwg.mxu0
    %v2262 = vrot.slane %v2185, 6
    %2263 = vrot.lane.b32.xlu0 %v2262, 64
    %v2264 = vpop.permute.xlu0 %2263
    %v2265 = vsel %vm70, %v2264, 0
    %2267 = vmatprep.subr.mxu0 0.0
    %2268 = vmatpush1.msra.mxu0 %v49
    %2269 = vmatprep.subr.mxu0 0.0
    %2270 = vmatpush1.msra.mxu0 %v50
    %2271 = vmatprep.subr.mxu0 0.0
    %2272 = vmatpush1.msra.mxu0 %v51
    %2273 = vmatprep.subr.mxu0 0.0
    %2274 = vmatpush1.msra.mxu0 %v52
    %2275 = vmatprep.subr.mxu0 0.0
    %2276 = vmatpush1.msra.mxu0 0.0
    %2277 = vmatprep.subr.mxu0 0.0
    %2278 = vmatpush1.msra.mxu0 0.0
    %2279 = vmatprep.subr.mxu0 0.0
    %2280 = vmatpush1.msra.mxu0 0.0
    %2281 = vmatprep.subr.mxu0 0.0
    %2282 = vmatpush1.msra.mxu0 0.0
    %2283 = vmatprep.subr.mxu0 0.0
    %2284 = vmatpush1.msra.mxu0 0.0
    %2285 = vmatprep.subr.mxu0 0.0
    %2286 = vmatpush1.msra.mxu0 0.0
    %2287 = vmatprep.subr.mxu0 0.0
    %2288 = vmatpush1.msra.mxu0 0.0
    %2289 = vmatprep.subr.mxu0 0.0
    %2290 = vmatpush1.msra.mxu0 0.0
    %2291 = vmatprep.subr.mxu0 0.0
    %2292 = vmatpush1.msra.mxu0 0.0
    %2293 = vmatprep.subr.mxu0 0.0
    %2294 = vmatpush1.msra.mxu0 0.0
    %2295 = vmatprep.subr.mxu0 0.0
    %2296 = vmatpush1.msra.mxu0 0.0
    %2297 = vmatprep.subr.mxu0 0.0
    %2298 = vmatpush1.msra.mxu0 0.0
    %2299 = vmatprep.subr.mxu0 0.0
    %2300 = vmatpush1.msra.mxu0 0.0
    %2301 = vmatprep.subr.mxu0 0.0
    %2302 = vmatpush1.msra.mxu0 0.0
    %2303 = vmatprep.subr.mxu0 0.0
    %2304 = vmatpush1.msra.mxu0 0.0
    %2305 = vmatprep.subr.mxu0 0.0
    %2306 = vmatpush1.msra.mxu0 0.0
    %2307 = vmatprep.subr.mxu0 0.0
    %2308 = vmatpush1.msra.mxu0 0.0
    %2309 = vmatprep.subr.mxu0 0.0
    %2310 = vmatpush1.msra.mxu0 0.0
    %2311 = vmatprep.subr.mxu0 0.0
    %2312 = vmatpush1.msra.mxu0 0.0
    %2313 = vmatprep.subr.mxu0 0.0
    %2314 = vmatpush1.msra.mxu0 0.0
    %2315 = vmatprep.subr.mxu0 0.0
    %2316 = vmatpush1.msra.mxu0 0.0
    %2317 = vmatprep.subr.mxu0 0.0
    %2318 = vmatpush1.msra.mxu0 0.0
    %2319 = vmatprep.subr.mxu0 0.0
    %2320 = vmatpush1.msra.mxu0 0.0
    %2321 = vmatprep.subr.mxu0 0.0
    %2322 = vmatpush1.msra.mxu0 0.0
    %2323 = vmatprep.subr.mxu0 0.0
    %2324 = vmatpush1.msra.mxu0 0.0
    %2325 = vmatprep.subr.mxu0 0.0
    %2326 = vmatpush1.msra.mxu0 0.0
    %2327 = vmatprep.subr.mxu0 0.0
    %2328 = vmatpush1.msra.mxu0 0.0
    %2329 = vmatprep.subr.mxu0 0.0
    %2330 = vmatpush1.msra.mxu0 0.0
    %2331 = vmatprep.mubr.f32.mxu0 0.0
    %2332 = vmatmul.mubr.f32.gmra.mrb[0].mxu0 %v2265
    %v2333 = vpop.f32.mrb[0].mxu0
    %v2334 = vadd.f32 %v2258, %v2333
    %v2335 = vpop.f32.mrb[0].mxu0
    %2336 = vdwg.mxu0
    %v2337 = vadd.f32 %v2334, %v157
    %v2338 = vxor.u32 %v2337, 2147483648
    %v2339 = vmul.f32 %v2338, 1.442695
    %v2340 = vpow.pop %v2339
    %v2341 = vadd.f32 %v2340, 1.0
    %v2342 = vrcp.pop %v2341
    %v2343 = vmul.f32 1.0, %v2342
    %v2344 = vtanh.pop %v2337
    %v2345 = vmul.f32 %v2343, %v2078
    %2347 = vrot.lane.b32.xlu0 %v2344, 32
    %v2348 = vpop.permute.xlu0 %2347
    %v2350 = vmul.f32 %v2343, %v2348
    %2352 = vrot.lane.b32.xlu0 %v2350, 32
    %v2353 = vpop.permute.xlu0 %2352
    %v2355 = vadd.f32 %v2345, %v2353
    %v2356 = vtanh.pop %v2355
    %2358 = vrot.lane.b32.xlu0 %v2356, 32
    %v2359 = vpop.permute.xlu0 %2358
    %v2361 = vmul.f32 %v2343, %v2359
    %2363 = vrot.lane.b32.xlu0 %v2361, 64
    %v2364 = vpop.permute.xlu0 %2363
    %vm2366 = vcmask 254976
    %v2367 = vsel %vm2366, %v2364, 0.0
    %2368 = vadd.xlane.f32.xlu0 %v2367
    %v2369 = vpop.xlane.xlu0 %2368
    %v2370 = vrcp.pop 32.0
    %v2371 = vmul.f32 %v2369, %v2370
    %v2372 = vsub.f32 %v2361, %v2371
    %v2373 = vmul.f32 %v2372, %v2372
    %2375 = vrot.lane.b32.xlu0 %v2373, 64
    %v2376 = vpop.permute.xlu0 %2375
    %v2378 = vsel %vm2366, %v2376, 0.0
    %2379 = vadd.xlane.f32.xlu0 %v2378
    %v2380 = vpop.xlane.xlu0 %2379
    %v2381 = vmul.f32 %v2380, %v2370
    %v2382 = vadd.f32 %v2381, 1e-05
    %v2383 = vrsqrt.pop %v2382
    %v2384 = vmul.f32 %v2372, %v2383
    %v2385 = vld [vmem:[%s7] sm:$0x1]
    %v2387 = vlaneseq
    %v2388 = vshrl.u32 %v2387, 7
    %v2389 = vsub.s32 0, %v2388
    %v2390 = vrot.slane %v2385, %v2389
    %2391 = vrot.lane.b32.xlu0 %v2390, 64
    %v2392 = vpop.permute.xlu0 %2391
    %v2394 = vmul.f32 %v2384, %v2392
    %v2395 = vld [vmem:[%s8] sm:$0x1]
    %v2397 = vlaneseq
    %v2398 = vshrl.u32 %v2397, 7
    %v2399 = vsub.s32 0, %v2398
    %v2400 = vrot.slane %v2395, %v2399
    %2401 = vrot.lane.b32.xlu0 %v2400, 64
    %v2402 = vpop.permute.xlu0 %2401
    %v2404 = vadd.f32 %v2394, %v2402
    %v2405 = vld [vmem:[%s9] sm:$0xff]
    %v2406 = vld [vmem:[%s9 + $0x8] sm:$0xff]
    %v2407 = vld [vmem:[%s9 + $0x10] sm:$0xff]
    %v2408 = vld [vmem:[%s9 + $0x18] sm:$0xff]
    %v2409 = vld [vmem:[%s10] sm:$0x1]
    %v2411 = vlaneseq
    %v2412 = vshrl.u32 %v2411, 7
    %v2413 = vsub.s32 0, %v2412
    %v2414 = vrot.slane %v2409, %v2413
    %2417 = vrot.lane.b32.xlu0 %v2404, 64
    %v2418 = vpop.permute.xlu0 %2417
    %v2419 = vsel %vm70, %v2418, 0
    %2421 = vmatprep.subr.mxu0 0.0
    %2422 = vmatpush1.msra.mxu0 %v2405
    %2423 = vmatprep.subr.mxu0 0.0
    %2424 = vmatpush1.msra.mxu0 %v2406
    %2425 = vmatprep.subr.mxu0 0.0
    %2426 = vmatpush1.msra.mxu0 %v2407
    %2427 = vmatprep.subr.mxu0 0.0
    %2428 = vmatpush1.msra.mxu0 %v2408
    %2429 = vmatprep.subr.mxu0 0.0
    %2430 = vmatpush1.msra.mxu0 0.0
    %2431 = vmatprep.subr.mxu0 0.0
    %2432 = vmatpush1.msra.mxu0 0.0
    %2433 = vmatprep.subr.mxu0 0.0
    %2434 = vmatpush1.msra.mxu0 0.0
    %2435 = vmatprep.subr.mxu0 0.0
    %2436 = vmatpush1.msra.mxu0 0.0
    %2437 = vmatprep.subr.mxu0 0.0
    %2438 = vmatpush1.msra.mxu0 0.0
    %2439 = vmatprep.subr.mxu0 0.0
    %2440 = vmatpush1.msra.mxu0 0.0
    %2441 = vmatprep.subr.mxu0 0.0
    %2442 = vmatpush1.msra.mxu0 0.0
    %2443 = vmatprep.subr.mxu0 0.0
    %2444 = vmatpush1.msra.mxu0 0.0
    %2445 = vmatprep.subr.mxu0 0.0
    %2446 = vmatpush1.msra.mxu0 0.0
    %2447 = vmatprep.subr.mxu0 0.0
    %2448 = vmatpush1.msra.mxu0 0.0
    %2449 = vmatprep.subr.mxu0 0.0
    %2450 = vmatpush1.msra.mxu0 0.0
    %2451 = vmatprep.subr.mxu0 0.0
    %2452 = vmatpush1.msra.mxu0 0.0
    %2453 = vmatprep.subr.mxu0 0.0
    %2454 = vmatpush1.msra.mxu0 0.0
    %2455 = vmatprep.subr.mxu0 0.0
    %2456 = vmatpush1.msra.mxu0 0.0
    %2457 = vmatprep.subr.mxu0 0.0
    %2458 = vmatpush1.msra.mxu0 0.0
    %2459 = vmatprep.subr.mxu0 0.0
    %2460 = vmatpush1.msra.mxu0 0.0
    %2461 = vmatprep.subr.mxu0 0.0
    %2462 = vmatpush1.msra.mxu0 0.0
    %2463 = vmatprep.subr.mxu0 0.0
    %2464 = vmatpush1.msra.mxu0 0.0
    %2465 = vmatprep.subr.mxu0 0.0
    %2466 = vmatpush1.msra.mxu0 0.0
    %2467 = vmatprep.subr.mxu0 0.0
    %2468 = vmatpush1.msra.mxu0 0.0
    %2469 = vmatprep.subr.mxu0 0.0
    %2470 = vmatpush1.msra.mxu0 0.0
    %2471 = vmatprep.subr.mxu0 0.0
    %2472 = vmatpush1.msra.mxu0 0.0
    %2473 = vmatprep.subr.mxu0 0.0
    %2474 = vmatpush1.msra.mxu0 0.0
    %2475 = vmatprep.subr.mxu0 0.0
    %2476 = vmatpush1.msra.mxu0 0.0
    %2477 = vmatprep.subr.mxu0 0.0
    %2478 = vmatpush1.msra.mxu0 0.0
    %2479 = vmatprep.subr.mxu0 0.0
    %2480 = vmatpush1.msra.mxu0 0.0
    %2481 = vmatprep.subr.mxu0 0.0
    %2482 = vmatpush1.msra.mxu0 0.0
    %2483 = vmatprep.subr.mxu0 0.0
    %2484 = vmatpush1.msra.mxu0 0.0
    %2485 = vmatprep.mubr.f32.mxu0 0.0
    %2486 = vmatmul.mubr.f32.gmra.mrb[0].mxu0 %v2419
    %v2487 = vpop.f32.mrb[0].mxu0
    %v2488 = vadd.f32 %v2414, %v2487
    %v2489 = vpop.f32.mrb[0].mxu0
    %2490 = vdwg.mxu0
    %v2491 = vmax.f32 %v2488, 0.0
    %v2492 = vld [vmem:[%s11] sm:$0xff]
    %v2493 = vld [vmem:[%s11 + $0x8] sm:$0xff]
    %v2494 = vld [vmem:[%s12] sm:$0x1]
    %v2496 = vlaneseq
    %v2497 = vshrl.u32 %v2496, 7
    %v2498 = vsub.s32 0, %v2497
    %v2499 = vrot.slane %v2494, %v2498
    %vm2501 = vcmask 130048
    %v2503 = vsel %vm2501, %v2491, 0
    %2505 = vmatprep.subr.mxu0 0.0
    %2506 = vmatpush1.msra.mxu0 %v2492
    %2507 = vmatprep.subr.mxu0 0.0
    %2508 = vmatpush1.msra.mxu0 %v2493
    %2509 = vmatprep.subr.mxu0 0.0
    %2510 = vmatpush1.msra.mxu0 0.0
    %2511 = vmatprep.subr.mxu0 0.0
    %2512 = vmatpush1.msra.mxu0 0.0
    %2513 = vmatprep.subr.mxu0 0.0
    %2514 = vmatpush1.msra.mxu0 0.0
    %2515 = vmatprep.subr.mxu0 0.0
    %2516 = vmatpush1.msra.mxu0 0.0
    %2517 = vmatprep.subr.mxu0 0.0
    %2518 = vmatpush1.msra.mxu0 0.0
    %2519 = vmatprep.subr.mxu0 0.0
    %2520 = vmatpush1.msra.mxu0 0.0
    %2521 = vmatprep.subr.mxu0 0.0
    %2522 = vmatpush1.msra.mxu0 0.0
    %2523 = vmatprep.subr.mxu0 0.0
    %2524 = vmatpush1.msra.mxu0 0.0
    %2525 = vmatprep.subr.mxu0 0.0
    %2526 = vmatpush1.msra.mxu0 0.0
    %2527 = vmatprep.subr.mxu0 0.0
    %2528 = vmatpush1.msra.mxu0 0.0
    %2529 = vmatprep.subr.mxu0 0.0
    %2530 = vmatpush1.msra.mxu0 0.0
    %2531 = vmatprep.subr.mxu0 0.0
    %2532 = vmatpush1.msra.mxu0 0.0
    %2533 = vmatprep.subr.mxu0 0.0
    %2534 = vmatpush1.msra.mxu0 0.0
    %2535 = vmatprep.subr.mxu0 0.0
    %2536 = vmatpush1.msra.mxu0 0.0
    %2537 = vmatprep.subr.mxu0 0.0
    %2538 = vmatpush1.msra.mxu0 0.0
    %2539 = vmatprep.subr.mxu0 0.0
    %2540 = vmatpush1.msra.mxu0 0.0
    %2541 = vmatprep.subr.mxu0 0.0
    %2542 = vmatpush1.msra.mxu0 0.0
    %2543 = vmatprep.subr.mxu0 0.0
    %2544 = vmatpush1.msra.mxu0 0.0
    %2545 = vmatprep.subr.mxu0 0.0
    %2546 = vmatpush1.msra.mxu0 0.0
    %2547 = vmatprep.subr.mxu0 0.0
    %2548 = vmatpush1.msra.mxu0 0.0
    %2549 = vmatprep.subr.mxu0 0.0
    %2550 = vmatpush1.msra.mxu0 0.0
    %2551 = vmatprep.subr.mxu0 0.0
    %2552 = vmatpush1.msra.mxu0 0.0
    %2553 = vmatprep.subr.mxu0 0.0
    %2554 = vmatpush1.msra.mxu0 0.0
    %2555 = vmatprep.subr.mxu0 0.0
    %2556 = vmatpush1.msra.mxu0 0.0
    %2557 = vmatprep.subr.mxu0 0.0
    %2558 = vmatpush1.msra.mxu0 0.0
    %2559 = vmatprep.subr.mxu0 0.0
    %2560 = vmatpush1.msra.mxu0 0.0
    %2561 = vmatprep.subr.mxu0 0.0
    %2562 = vmatpush1.msra.mxu0 0.0
    %2563 = vmatprep.subr.mxu0 0.0
    %2564 = vmatpush1.msra.mxu0 0.0
    %2565 = vmatprep.subr.mxu0 0.0
    %2566 = vmatpush1.msra.mxu0 0.0
    %2567 = vmatprep.subr.mxu0 0.0
    %2568 = vmatpush1.msra.mxu0 0.0
    %2569 = vmatprep.mubr.f32.mxu0 0.0
    %2570 = vmatmul.mubr.f32.gmra.mrb[0].mxu0 %v2503
    %v2571 = vpop.f32.mrb[0].mxu0
    %v2572 = vadd.f32 %v2499, %v2571
    %v2573 = vpop.f32.mrb[0].mxu0
    %2574 = vdwg.mxu0
    %2575 = vst [vmem:[#allocation2] sm:$0x3] %v2572
    // Predicated region
    $region54: #{sentiment_forward.1} parent=1 // pred_check
      _
    $region55: #{sentiment_forward.1} parent=1 // pred_check_branch
      %2577 = sbr.rel (0) target = $region57
    $region56: #{sentiment_forward.1} parent=1 // pred_region
      %s2579 = ssub.s32 32, 32
      %2580 = vsyncadd [#allocation3], %s2579
      %s2582 = sshll.u32 [#allocation2], 4
      %s2583 = int_to_ptr.vmem [resolvable:$true] %s2582
      %2585 = dma.vmem_to_hbm [thread:$0]  %s2583, 32, %s13, [#allocation3]
    $region57: #{sentiment_forward.1} parent=1 // pred_fallthru
      _
    // Predicated region
    $region58: #{sentiment_forward.1} parent=1 // pred_check
      _
    $region59: #{sentiment_forward.1} parent=1 // pred_check_branch
      %2587 = sbr.rel (0) target = $region61
    $region60: #{sentiment_forward.1} parent=1 // pred_region
      %2588 = dma.done [#allocation3], 32
    $region61: #{sentiment_forward.1} parent=1 // pred_fallthru
      _
    %2589 = vsyncpa [#allocation3], 1

</llo_original>
